<compile_context>
chip_gen: v7x
topology: tpu7x:2x2x1
jax: 0.10.0
libtpu: 0.0.40
codegen_flags: <defaults>
</compile_context>

<pallas_src>
import functools

import jax
import jax.numpy as jnp
from jax.experimental import pallas as pl
from jax.experimental.pallas import tpu as pltpu


# ----------------------------------------------------------------------------
# Kernel A: one M-tile of the im2col matmul + fused BN partial statistics.
#   p_ref   : (TM, KKC)    im2col patches tile (compute dtype)
#   w_ref   : (KKC, COUT)  weight matrix (compute dtype, constant block)
#   o_ref   : (TM, COUT)   conv output tile (compute dtype, unpadded channels)
#   stat_ref: (8, 2*COUT)  packed per-tile stats: cols [:C] = channel sums,
#                          cols [C:] = channel sum-of-squares (8 identical rows,
#                          one unmasked store).
# ----------------------------------------------------------------------------
def _conv_bnstats_kernel(p_ref, w_ref, o_ref, stat_ref, *, precision):
    acc = jnp.dot(p_ref[...], w_ref[...],
                  preferred_element_type=jnp.float32, precision=precision)
    o_ref[...] = acc.astype(o_ref.dtype)
    s = jnp.sum(acc, axis=0, keepdims=True)            # (1, C)
    ss = jnp.sum(acc * acc, axis=0, keepdims=True)     # (1, C)
    stat_ref[...] = jnp.broadcast_to(
        jnp.concatenate([s, ss], axis=1), stat_ref.shape)


# ----------------------------------------------------------------------------
# Kernel B: fused BN affine + ReLU + non-overlapping 2x2 max-pool on NHWC rows.
#   x_ref    : (1, 2*RB, Wo, C)  conv rows (compute dtype): 2 rows per output row
#   scale_ref: (1, C)            folded BN scale = gamma * rsqrt(var + eps)
#   shift_ref: (1, C)            folded BN shift = beta - mean * scale
#   o_ref    : (1, RB, Qo, C)    pooled output rows (f32)
# ----------------------------------------------------------------------------
def _bn_relu_maxpool_kernel(x_ref, scale_ref, shift_ref, o_ref):
    _, rb, qo, c = o_ref.shape
    x = x_ref[...].astype(jnp.float32)                          # (1, 2RB, Wo, C)
    y = jnp.maximum(x * scale_ref[...] + shift_ref[...], 0.0)   # BN affine + ReLU
    # Column (W) pooling: split Wo -> (Qo, 2), channel (lane) dim untouched.
    col = jnp.max(y.reshape(1, 2 * rb, qo, 2, c), axis=3)       # (1, 2RB, Qo, C)
    # Row (H) pooling: pure leading-dim regroup (minor (Qo, C) dims untouched).
    out = jnp.max(col.reshape(1, rb, 2, qo, c), axis=2)         # (1, RB, Qo, C)
    o_ref[...] = out.astype(o_ref.dtype)


def _largest_divisor_leq(n, cap):
    cap = max(1, min(n, cap))
    for d in range(cap, 0, -1):
        if n % d == 0:
            return d
    return 1


def _pick_tile_m(m, cap):
    """Pick an M tile: prefer a divisor of m (no pad/slice copies), 256-multiples first."""
    cap = max(8, cap)
    if m <= cap:
        return m                      # single full block (block == full dim is legal)
    t = cap - cap % 256
    while t >= 256:
        if m % t == 0:
            return t
        t -= 256
    t = cap - cap % 8
    while t >= 8:
        if m % t == 0:
            return t
        t -= 8
    return max(8, cap - cap % 8)      # fall back: pad the tail tile


# ----------------------------------------------------------------------------
# ConvUnit forward
# ----------------------------------------------------------------------------
@functools.partial(
    jax.jit,
    static_argnames=(
        "stride", "padding", "pool_kernel_size", "pool_stride", "compute_dtype",
    ),
)
def conv_unit_forward(
    x_nchw,      # (N, Cin, H, W)
    conv_w,      # (Cout, Cin, K, K)  -- PyTorch OIHW
    conv_b,      # (Cout,)            -- cancelled exactly by batch-stat BN
    bn_gamma,    # (Cout,)
    bn_beta,     # (Cout,)
    *,
    stride=1,
    padding=1,
    pool_kernel_size=2,
    pool_stride=2,
    eps=1e-5,
    compute_dtype=jnp.bfloat16,
):
    # A per-channel additive conv bias is exactly cancelled by the train-mode
    # batch-statistics mean subtraction in BN, so it is dropped (saves a broadcast
    # add + one input DMA).  ONLY valid for batch-stat BN — an eval-mode
    # (running-stats) path must reinstate it.  Guarded by the f32 check in main.
    del conv_b

    n, cin, h, w = x_nchw.shape
    cout, _, kh, kw = conv_w.shape

    assert pool_kernel_size == 2 and pool_stride == 2, "only 2x2/2 pooling implemented"
    ho = (h + 2 * padding - kh) // stride + 1
    wo = (w + 2 * padding - kw) // stride + 1
    assert ho % 2 == 0 and wo % 2 == 0, "pooling path assumes even conv output dims"
    po, qo = ho // 2, wo // 2
    m = n * ho * wo
    kkc = kh * kw * cin
    itm = jnp.dtype(compute_dtype).itemsize

    # Full-precision MXU path only for the bit-accurate f32 validation mode.
    precision = (jax.lax.Precision.HIGHEST
                 if compute_dtype == jnp.float32 else None)

    # ---- glue: pad + im2col in the (narrow) compute dtype ----
    # TODO(synk): fold the kh*kw taps into Kernel A's grid (element-offset
    # BlockSpecs on the padded NHWC input) so the (M, KKC) patch matrix never
    # round-trips through HBM.
    x = jnp.transpose(x_nchw, (0, 2, 3, 1)).astype(compute_dtype)      # NHWC
    xp = jnp.pad(x, ((0, 0), (padding, padding), (padding, padding), (0, 0)))
    taps = []
    for ky in range(kh):
        for kx in range(kw):
            taps.append(
                xp[:, ky: ky + (ho - 1) * stride + 1: stride,
                      kx: kx + (wo - 1) * stride + 1: stride, :]
            )
    patches = jnp.stack(taps, axis=3).reshape(m, kkc)                  # (M, KKC)
    w2d = jnp.transpose(conv_w, (2, 3, 1, 0)).reshape(kkc, cout).astype(compute_dtype)

    # ---- Kernel A tiling: grid over M only (KKC is small -> one dot per tile).
    # VMEM budget derived against the smallest scoped-VMEM default (16 MiB, v5e),
    # double buffered, so it is safe on v5e/v6e/v7x without vmem_limit overrides.
    row_bytes_a = (kkc + cout) * itm
    cap_a = (6 * 1024 * 1024) // (2 * max(1, row_bytes_a))
    if cap_a >= 256:
        cap_a -= cap_a % 256
    cap_a = max(8, min(2048, cap_a))
    tm = _pick_tile_m(m, cap_a)
    mt = pl.cdiv(m, tm)
    m_pad = mt * tm
    if m_pad != m:
        # Zero rows contribute exactly 0 to sum/sumsq (no bias) and are sliced
        # off before Kernel B.
        patches = jnp.pad(patches, ((0, m_pad - m), (0, 0)))

    conv_flat, stats = pl.pallas_call(
        functools.partial(_conv_bnstats_kernel, precision=precision),
        grid=(mt,),
        in_specs=[
            pl.BlockSpec((tm, kkc), lambda i: (i, 0)),
            pl.BlockSpec((kkc, cout), lambda i: (0, 0)),      # constant block
        ],
        out_specs=(
            pl.BlockSpec((tm, cout), lambda i: (i, 0)),       # unpadded channels
            pl.BlockSpec((8, 2 * cout), lambda i: (i, 0)),
        ),
        out_shape=(
            jax.ShapeDtypeStruct((m_pad, cout), compute_dtype),
            jax.ShapeDtypeStruct((mt * 8, 2 * cout), jnp.float32),
        ),
        compiler_params=pltpu.CompilerParams(
            dimension_semantics=("parallel",)),
    )(patches, w2d)

    # ---- BN scale/shift from the fused partial statistics (tiny epilogue) ----
    # TODO(synk): switch to mean-shifted / Welford-style tile combines if M grows
    # to where E[x^2] - mean^2 cancellation matters in f32.
    row0 = stats.reshape(mt, 8, 2 * cout)[:, 0, :]            # rows identical per tile
    count = float(m)
    mean = jnp.sum(row0[:, :cout], axis=0) / count
    var = jnp.maximum(jnp.sum(row0[:, cout:], axis=0) / count - mean * mean, 0.0)
    scale = bn_gamma.astype(jnp.float32) * jax.lax.rsqrt(var + eps)
    shift = bn_beta.astype(jnp.float32) - mean * scale

    # ---- Kernel B: BN affine + ReLU + 2x2 max-pool reading NHWC rows directly ----
    conv_m = conv_flat if m_pad == m else conv_flat[:m]
    conv_nhwc = conv_m.reshape(n, ho, wo, cout)               # free row-major reshape

    # Rows-per-step budget: 2 conv rows in + 1 pooled f32 row out, double buffered,
    # against the 16 MiB v5e scoped default (v6e/v7x have more headroom).
    row_bytes_b = 2 * wo * cout * itm + qo * cout * 4
    rb_cap = max(1, (6 * 1024 * 1024) // (2 * row_bytes_b))
    # TODO(synk): use a cdiv grid with a masked tail block if po can be prime and
    # larger than rb_cap (the divisor search would collapse to rb=1).
    rb = _largest_divisor_leq(po, rb_cap)

    pooled = pl.pallas_call(
        _bn_relu_maxpool_kernel,
        grid=(n, po // rb),
        in_specs=[
            pl.BlockSpec((1, 2 * rb, wo, cout), lambda b, r: (b, r, 0, 0)),
            pl.BlockSpec((1, cout), lambda b, r: (0, 0)),
            pl.BlockSpec((1, cout), lambda b, r: (0, 0)),
        ],
        out_specs=pl.BlockSpec((1, rb, qo, cout), lambda b, r: (b, r, 0, 0)),
        out_shape=jax.ShapeDtypeStruct((n, po, qo, cout), jnp.float32),
        compiler_params=pltpu.CompilerParams(
            dimension_semantics=("parallel", "parallel")),
    )(conv_nhwc, scale.reshape(1, cout), shift.reshape(1, cout))

    # Pooled tensor is 4x smaller than the conv activation; one small XLA transpose
    # back to the module's NCHW output layout.
    return jnp.transpose(pooled, (0, 3, 1, 2))


# ----------------------------------------------------------------------------
# Pure-JAX reference (same math, f32, with bias) for a sanity check.
# ----------------------------------------------------------------------------
def _reference_forward(x, w, b, gamma, beta, *, stride, padding, eps=1e-5):
    conv = jax.lax.conv_general_dilated(
        x.astype(jnp.float32), w.astype(jnp.float32),
        window_strides=(stride, stride),
        padding=[(padding, padding), (padding, padding)],
        dimension_numbers=("NCHW", "OIHW", "NCHW"),
        precision=jax.lax.Precision.HIGHEST,
    ) + b[None, :, None, None]
    mean = conv.mean(axis=(0, 2, 3))
    var = ((conv - mean[None, :, None, None]) ** 2).mean(axis=(0, 2, 3))
    y = (conv - mean[None, :, None, None]) * jax.lax.rsqrt(var + eps)[None, :, None, None]
    y = y * gamma[None, :, None, None] + beta[None, :, None, None]
    y = jnp.maximum(y, 0.0)
    n_, c_, h_, w_ = y.shape
    y = y.reshape(n_, c_, h_ // 2, 2, w_ // 2, 2).max(axis=(3, 5))
    return y


if __name__ == "__main__":
    # ConvUnit(input_channels=4, output_channels=8, kernel_size=3, stride=1,
    #          padding=1, pool_type='max', pool_kernel_size=2, pool_stride=2,
    #          activ_type='relu')
    key = jax.random.PRNGKey(0)
    k_x, k_w, k_b, k_g, k_be = jax.random.split(key, 5)

    N, CIN, H, W = 2, 4, 16, 16
    COUT, K = 8, 3

    x = jax.random.normal(k_x, (N, CIN, H, W), dtype=jnp.float32)
    conv_w = 0.1 * jax.random.normal(k_w, (COUT, CIN, K, K), dtype=jnp.float32)
    conv_b = 0.1 * jax.random.normal(k_b, (COUT,), dtype=jnp.float32)
    bn_gamma = 1.0 + 0.1 * jax.random.normal(k_g, (COUT,), dtype=jnp.float32)
    bn_beta = 0.1 * jax.random.normal(k_be, (COUT,), dtype=jnp.float32)

    ref = _reference_forward(x, conv_w, conv_b, bn_gamma, bn_beta,
                             stride=1, padding=1)

    # f32 compute path: tight check of the kernel math (also validates that
    # dropping the conv bias under batch-stat BN is exact).
    out_f32 = conv_unit_forward(
        x, conv_w, conv_b, bn_gamma, bn_beta,
        stride=1, padding=1, pool_kernel_size=2, pool_stride=2,
        compute_dtype=jnp.float32,
    )
    out_f32 = jax.block_until_ready(out_f32)
    assert out_f32.shape == (N, COUT, H // 2, W // 2), out_f32.shape
    assert jnp.allclose(out_f32, ref, atol=1e-3, rtol=1e-3), \
        float(jnp.abs(out_f32 - ref).max())

    # Default bf16-matmul / bf16-intermediate path (f32 accumulation): looser tol.
    out_bf16 = conv_unit_forward(
        x, conv_w, conv_b, bn_gamma, bn_beta,
        stride=1, padding=1, pool_kernel_size=2, pool_stride=2,
    )
    out_bf16 = jax.block_until_ready(out_bf16)
    assert out_bf16.shape == (N, COUT, H // 2, W // 2), out_bf16.shape
    assert jnp.allclose(out_bf16, ref, atol=7e-2, rtol=7e-2), \
        float(jnp.abs(out_bf16 - ref).max())

    print("KERNEL_OK")
</pallas_src>

<mosaic_0001>
module attributes {stable_mosaic.version = 11 : i64} {
  func.func @_conv_bnstats_kernel(%arg0: i32, %arg1: memref<512x36xf32, #tpu.memory_space<vmem>>, %arg2: memref<36x8xf32, #tpu.memory_space<vmem>>, %arg3: memref<512x8xf32, #tpu.memory_space<vmem>>, %arg4: memref<8x16xf32, #tpu.memory_space<vmem>>) attributes {dimension_semantics = [#tpu.dimension_semantics<parallel>], iteration_bounds = array<i64: 1>, scalar_prefetch = 0 : i64, scratch_operands = 0 : i64, tpu.core_type = #tpu.core_type<tc>, window_params = [{transform_indices = @transform_0, window_bounds = array<i64: 512, 36>}, {pipeline_mode = #tpu.pipeline_mode<synchronous>, transform_indices = @transform_1, window_bounds = array<i64: 36, 8>}, {transform_indices = @transform_2, window_bounds = array<i64: 512, 8>}, {transform_indices = @transform_3, window_bounds = array<i64: 8, 16>}]} {
    %c0 = arith.constant 0 : index
    %c0_0 = arith.constant 0 : index
    %0 = vector.load %arg1[%c0, %c0_0] : memref<512x36xf32, #tpu.memory_space<vmem>>, vector<512x36xf32>
    %c0_1 = arith.constant 0 : index
    %c0_2 = arith.constant 0 : index
    %1 = vector.load %arg2[%c0_1, %c0_2] : memref<36x8xf32, #tpu.memory_space<vmem>>, vector<36x8xf32>
    %cst = arith.constant dense<0.000000e+00> : vector<512x8xf32>
    %2 = tpu.matmul %0, %1, %cst {dimension_numbers = #tpu.dot_dimension_numbers<[1], [0], [0], [1], [0, 0, 1, 1], [], []>, precision = #tpu.contract_precision<fp32>} : vector<512x36xf32>, vector<36x8xf32>, vector<512x8xf32> -> vector<512x8xf32>
    %c0_3 = arith.constant 0 : index
    %c0_4 = arith.constant 0 : index
    %3 = vector.load %arg3[%c0_3, %c0_4] : memref<512x8xf32, #tpu.memory_space<vmem>>, vector<512x8xf32>
    tpu.vector_store %arg3[%c0_3, %c0_4], %2 {strides = array<i32>} : memref<512x8xf32, #tpu.memory_space<vmem>>, vector<512x8xf32>,
    %cst_5 = arith.constant dense<0.000000e+00> : vector<8xf32>
    %4 = vector.multi_reduction <add>, %2, %cst_5 [0] : vector<512x8xf32> to vector<8xf32>
    %5 = vector.shape_cast %4 : vector<8xf32> to vector<1x8xf32>
    %6 = arith.mulf %2, %2 : vector<512x8xf32>
    %cst_6 = arith.constant dense<0.000000e+00> : vector<8xf32>
    %7 = vector.multi_reduction <add>, %6, %cst_6 [0] : vector<512x8xf32> to vector<8xf32>
    %8 = vector.shape_cast %7 : vector<8xf32> to vector<1x8xf32>
    %9 = tpu.concatenate %5, %8 in 1 : vector<1x8xf32>, vector<1x8xf32> -> vector<1x16xf32>
    %10 = vector.shape_cast %9 : vector<1x16xf32> to vector<1x16xf32>
    %11 = vector.broadcast %10 : vector<1x16xf32> to vector<8x16xf32>
    %c0_7 = arith.constant 0 : index
    %c0_8 = arith.constant 0 : index
    %12 = vector.load %arg4[%c0_7, %c0_8] : memref<8x16xf32, #tpu.memory_space<vmem>>, vector<8x16xf32>
    tpu.vector_store %arg4[%c0_7, %c0_8], %11 {strides = array<i32>} : memref<8x16xf32, #tpu.memory_space<vmem>>, vector<8x16xf32>,
    return
  }
  func.func @transform_0(%arg0: i32) -> (i32, i32) {
    %c0_i32 = arith.constant 0 : i32
    %c0_i32_0 = arith.constant 0 : i32
    return %arg0, %c0_i32 : i32, i32
  }
  func.func @transform_1(%arg0: i32) -> (i32, i32) {
    %c0_i32 = arith.constant 0 : i32
    %c0_i32_0 = arith.constant 0 : i32
    %c0_i32_1 = arith.constant 0 : i32
    return %c0_i32, %c0_i32_0 : i32, i32
  }
  func.func @transform_2(%arg0: i32) -> (i32, i32) {
    %c0_i32 = arith.constant 0 : i32
    %c0_i32_0 = arith.constant 0 : i32
    return %arg0, %c0_i32 : i32, i32
  }
  func.func @transform_3(%arg0: i32) -> (i32, i32) {
    %c0_i32 = arith.constant 0 : i32
    %c0_i32_0 = arith.constant 0 : i32
    return %arg0, %c0_i32 : i32, i32
  }
}

module attributes {stable_mosaic.version = 11 : i64} {
  func.func @_bn_relu_maxpool_kernel(%arg0: i32, %arg1: i32, %arg2: memref<1x16x16x8xf32, #tpu.memory_space<vmem>>, %arg3: memref<1x8xf32, #tpu.memory_space<vmem>>, %arg4: memref<1x8xf32, #tpu.memory_space<vmem>>, %arg5: memref<1x8x8x8xf32, #tpu.memory_space<vmem>>) attributes {dimension_semantics = [#tpu.dimension_semantics<parallel>, #tpu.dimension_semantics<parallel>], iteration_bounds = array<i64: 2, 1>, scalar_prefetch = 0 : i64, scratch_operands = 0 : i64, tpu.core_type = #tpu.core_type<tc>, window_params = [{transform_indices = @transform_0, window_bounds = array<i64: 1, 16, 16, 8>}, {pipeline_mode = #tpu.pipeline_mode<synchronous>, transform_indices = @transform_1, window_bounds = array<i64: 1, 8>}, {pipeline_mode = #tpu.pipeline_mode<synchronous>, transform_indices = @transform_2, window_bounds = array<i64: 1, 8>}, {transform_indices = @transform_3, window_bounds = array<i64: 1, 8, 8, 8>}]} {
    %c0 = arith.constant 0 : index
    %c0_0 = arith.constant 0 : index
    %c0_1 = arith.constant 0 : index
    %c0_2 = arith.constant 0 : index
    %0 = vector.load %arg2[%c0, %c0_0, %c0_1, %c0_2] : memref<1x16x16x8xf32, #tpu.memory_space<vmem>>, vector<1x16x16x8xf32>
    %c0_3 = arith.constant 0 : index
    %c0_4 = arith.constant 0 : index
    %1 = vector.load %arg3[%c0_3, %c0_4] : memref<1x8xf32, #tpu.memory_space<vmem>>, vector<1x8xf32>
    %2 = vector.shape_cast %1 : vector<1x8xf32> to vector<1x1x1x8xf32>
    %3 = vector.broadcast %2 : vector<1x1x1x8xf32> to vector<1x16x16x8xf32>
    %4 = arith.mulf %0, %3 : vector<1x16x16x8xf32>
    %c0_5 = arith.constant 0 : index
    %c0_6 = arith.constant 0 : index
    %5 = vector.load %arg4[%c0_5, %c0_6] : memref<1x8xf32, #tpu.memory_space<vmem>>, vector<1x8xf32>
    %6 = vector.shape_cast %5 : vector<1x8xf32> to vector<1x1x1x8xf32>
    %7 = vector.broadcast %6 : vector<1x1x1x8xf32> to vector<1x16x16x8xf32>
    %8 = arith.addf %4, %7 : vector<1x16x16x8xf32>
    %cst = arith.constant 0.000000e+00 : f32
    %9 = vector.broadcast %cst : f32 to vector<1x16x16x8xf32>
    %10 = arith.maximumf %8, %9 : vector<1x16x16x8xf32>
    %11 = vector.shape_cast %10 : vector<1x16x16x8xf32> to vector<1x16x8x2x8xf32>
    %cst_7 = arith.constant dense<0xFF800000> : vector<1x16x8x8xf32>
    %12 = vector.multi_reduction <maximumf>, %11, %cst_7 [3] : vector<1x16x8x2x8xf32> to vector<1x16x8x8xf32>
    %13 = vector.shape_cast %12 : vector<1x16x8x8xf32> to vector<1x8x2x8x8xf32>
    %cst_8 = arith.constant dense<0xFF800000> : vector<1x8x8x8xf32>
    %14 = vector.multi_reduction <maximumf>, %13, %cst_8 [2] : vector<1x8x2x8x8xf32> to vector<1x8x8x8xf32>
    %c0_9 = arith.constant 0 : index
    %c0_10 = arith.constant 0 : index
    %c0_11 = arith.constant 0 : index
    %c0_12 = arith.constant 0 : index
    %15 = vector.load %arg5[%c0_9, %c0_10, %c0_11, %c0_12] : memref<1x8x8x8xf32, #tpu.memory_space<vmem>>, vector<1x8x8x8xf32>
    tpu.vector_store %arg5[%c0_9, %c0_10, %c0_11, %c0_12], %14 {strides = array<i32>} : memref<1x8x8x8xf32, #tpu.memory_space<vmem>>, vector<1x8x8x8xf32>,
    return
  }
  func.func @transform_0(%arg0: i32, %arg1: i32) -> (i32, i32, i32, i32) {
    %c0_i32 = arith.constant 0 : i32
    %c0_i32_0 = arith.constant 0 : i32
    %c0_i32_1 = arith.constant 0 : i32
    return %arg0, %arg1, %c0_i32, %c0_i32_0 : i32, i32, i32, i32
  }
  func.func @transform_1(%arg0: i32, %arg1: i32) -> (i32, i32) {
    %c0_i32 = arith.constant 0 : i32
    %c0_i32_0 = arith.constant 0 : i32
    %c0_i32_1 = arith.constant 0 : i32
    return %c0_i32, %c0_i32_0 : i32, i32
  }
  func.func @transform_2(%arg0: i32, %arg1: i32) -> (i32, i32) {
    %c0_i32 = arith.constant 0 : i32
    %c0_i32_0 = arith.constant 0 : i32
    %c0_i32_1 = arith.constant 0 : i32
    return %c0_i32, %c0_i32_0 : i32, i32
  }
  func.func @transform_3(%arg0: i32, %arg1: i32) -> (i32, i32, i32, i32) {
    %c0_i32 = arith.constant 0 : i32
    %c0_i32_0 = arith.constant 0 : i32
    %c0_i32_1 = arith.constant 0 : i32
    return %arg0, %arg1, %c0_i32, %c0_i32_0 : i32, i32, i32, i32
  }
}

</mosaic_0001>

<llo_original>
// kernel: conv_unit_forward.3
$region0: #{conv_unit_forward.3}
  #allocation0 [shape = 'u32[]', space=smem, size = 0x4, offset = 0x4, fixed_abs, tag = 'smem constant byte address 0x4 - core index']
  #allocation1 [shape = 'u32[144,128]{1,0:T(1,128)}', space=vmem, size = 0x12000, scoped, tag = 'internal scratch']
  %s0 = inlined_call_operand.vmem [shape: f32[2,16,16,8], index: 0, kind: input, shape index: {}]
  %s1 = inlined_call_operand.vmem [shape: f32[1,8], index: 1, kind: input, shape index: {}]
  %s2 = inlined_call_operand.vmem [shape: f32[1,8], index: 2, kind: input, shape index: {}]
  %s3 = inlined_call_operand.vmem [shape: f32[2,8,8,8], index: 3, kind: output, shape index: {}]
  %s4 = sld [smem:[#allocation0]]
  $region45: #{conv_unit_forward.3} parent=0
    _
  %s6 = ssub.s32 1, %s4
  %s7 = scalar_select 0, %s6, %s4
  loop: start=0, step=1, limit=4
  $region2: #{conv_unit_forward.3} parent=0 // loop_pre_header
    _
  $region3: #{conv_unit_forward.3} parent=0 // loop_header
    %s9 = sphi 0, %s13
    %p10 = scmp.ge.s32.totalorder %s9, 4
    %s16 = sphi 0, %s28
    %s17 = sphi 0, %s24
    %s18 = sphi 0, %s16
    %s19 = sphi 0, %s17
    %s20 = sphi 0, %s18
    %s21 = sphi 0, %s19
    %s33 = sphi 0, %s35
    %s36 = sphi 0, %s33
    %s37 = sphi 0, %s36
    %s53 = sphi 0, %s37
    %s57 = sphi 0, %s57
    %s59 = sphi 0, %s57
    %s60 = sphi 0, %s59
    %s74 = sphi 0, %s60
    %s78 = sphi 0, %s78
    %s80 = sphi 0, %s78
    %s81 = sphi 0, %s80
    %s95 = sphi 0, %s81
    %s103 = sphi 0, %s105
    %s106 = sphi 0, %s103
    %s107 = sphi 0, %s106
    %s123 = sphi 0, %s107
  $region4: #{conv_unit_forward.3} parent=0 // loop_header_branch
    %12 = sbr.rel (%p10) target = $region8
  $region5: #{conv_unit_forward.3} parent=0 // loop_body
    %s14 = ssub.s32 %s9, 1
    %s15 = ssub.s32 %s9, 2
    %s22 = sadd.s32 1, %s17
    %p23 = scmp.ge.s32.totalorder %s22, 1
    %s24 = scalar_select %p23, 0, %s22
    %s25 = sadd.s32 1, %s16
    %s26 = scalar_select %p23, %s25, %s16
    %p27 = scmp.ge.s32.totalorder %s26, 2
    %s28 = scalar_select %p27, 0, %s26
    %s29 = ssub.s32 %s16, %s28
    %s30 = ssub.s32 %s17, %s24
    %s31 = sor.u32 %s29, %s30
    %p32 = scmp.eq.s32.totalorder %s31, 0
    %s34 = sadd.s32 %s33, 1
    %s35 = scalar_select %p32, %s33, %s34
    %p38 = pneg %p32
    %p39 = scmp.eq.s32.totalorder %s9, 1
    %p40 = por %p38, %p39
    %p41 = scmp.ne.s32.totalorder %s33, %s36
    %p42 = scmp.eq.s32.totalorder %s9, 0
    %p43 = por %p41, %p42
    %p44 = scmp.ne.s32.totalorder %s33, %s36
    %p45 = scmp.eq.s32.totalorder %s14, 1
    %p46 = por %p44, %p45
    %p47 = scmp.ne.s32.totalorder %s36, %s37
    %p48 = scmp.eq.s32.totalorder %s14, 0
    %p49 = por %p47, %p48
    %p50 = scmp.ne.s32.totalorder %s36, %s37
    %p51 = scmp.eq.s32.totalorder %s15, 1
    %p52 = por %p50, %p51
    %p54 = scmp.ne.s32.totalorder %s37, %s53
    %p55 = scmp.eq.s32.totalorder %s15, 0
    %p56 = por %p54, %p55
    %s58 = sadd.s32 %s57, 1
    %p61 = scmp.eq.s32.totalorder %s9, 1
    %p62 = scmp.ne.s32.totalorder %s57, %s59
    %p63 = scmp.eq.s32.totalorder %s9, 0
    %p64 = por %p62, %p63
    %p65 = scmp.ne.s32.totalorder %s57, %s59
    %p66 = scmp.eq.s32.totalorder %s14, 1
    %p67 = por %p65, %p66
    %p68 = scmp.ne.s32.totalorder %s59, %s60
    %p69 = scmp.eq.s32.totalorder %s14, 0
    %p70 = por %p68, %p69
    %p71 = scmp.ne.s32.totalorder %s59, %s60
    %p72 = scmp.eq.s32.totalorder %s15, 1
    %p73 = por %p71, %p72
    %p75 = scmp.ne.s32.totalorder %s60, %s74
    %p76 = scmp.eq.s32.totalorder %s15, 0
    %p77 = por %p75, %p76
    %s79 = sadd.s32 %s78, 1
    %p82 = scmp.eq.s32.totalorder %s9, 1
    %p83 = scmp.ne.s32.totalorder %s78, %s80
    %p84 = scmp.eq.s32.totalorder %s9, 0
    %p85 = por %p83, %p84
    %p86 = scmp.ne.s32.totalorder %s78, %s80
    %p87 = scmp.eq.s32.totalorder %s14, 1
    %p88 = por %p86, %p87
    %p89 = scmp.ne.s32.totalorder %s80, %s81
    %p90 = scmp.eq.s32.totalorder %s14, 0
    %p91 = por %p89, %p90
    %p92 = scmp.ne.s32.totalorder %s80, %s81
    %p93 = scmp.eq.s32.totalorder %s15, 1
    %p94 = por %p92, %p93
    %p96 = scmp.ne.s32.totalorder %s81, %s95
    %p97 = scmp.eq.s32.totalorder %s15, 0
    %p98 = por %p96, %p97
    %s99 = ssub.s32 %s16, %s28
    %s100 = ssub.s32 %s17, %s24
    %s101 = sor.u32 %s99, %s100
    %p102 = scmp.eq.s32.totalorder %s101, 0
    %s104 = sadd.s32 %s103, 1
    %s105 = scalar_select %p102, %s103, %s104
    %p108 = pneg %p102
    %p109 = scmp.eq.s32.totalorder %s9, 1
    %p110 = por %p108, %p109
    %p111 = scmp.ne.s32.totalorder %s103, %s106
    %p112 = scmp.eq.s32.totalorder %s9, 0
    %p113 = por %p111, %p112
    %p114 = scmp.ne.s32.totalorder %s103, %s106
    %p115 = scmp.eq.s32.totalorder %s14, 1
    %p116 = por %p114, %p115
    %p117 = scmp.ne.s32.totalorder %s106, %s107
    %p118 = scmp.eq.s32.totalorder %s14, 0
    %p119 = por %p117, %p118
    %p120 = scmp.ne.s32.totalorder %s106, %s107
    %p121 = scmp.eq.s32.totalorder %s15, 1
    %p122 = por %p120, %p121
    %p124 = scmp.ne.s32.totalorder %s107, %s123
    %p125 = scmp.eq.s32.totalorder %s15, 0
    %p126 = por %p124, %p125
    %p127 = scmp.le.s32.totalorder 1, %s9
    %p128 = scmp.lt.s32.totalorder %s9, 3
    %p129 = pnand %p127, %p128
    %p130 = pneg %p129
    // Predicated region
    $region9: #{conv_unit_forward.3} parent=5 // pred_check
      _
    $region10: #{conv_unit_forward.3} parent=5 // pred_check_branch
      %132 = sbr.rel (%p129) target = $region12
    $region11: #{conv_unit_forward.3} parent=5 // pred_region
      %s133 = ssub.s32 %s9, 1
      // Predicated region
      $region13: #{conv_unit_forward.3} parent=11 // pred_check
        %p134 = pneg %p70
      $region14: #{conv_unit_forward.3} parent=11 // pred_check_branch
        %136 = sbr.rel (%p134) target = $region16
      $region15: #{conv_unit_forward.3} parent=11 // pred_region
        _
      $region16: #{conv_unit_forward.3} parent=11 // pred_fallthru
        _
      // Predicated region
      $region17: #{conv_unit_forward.3} parent=11 // pred_check
        %p137 = pneg %p91
      $region18: #{conv_unit_forward.3} parent=11 // pred_check_branch
        %139 = sbr.rel (%p137) target = $region20
      $region19: #{conv_unit_forward.3} parent=11 // pred_region
        _
      $region20: #{conv_unit_forward.3} parent=11 // pred_fallthru
        _
    $region12: #{conv_unit_forward.3} parent=5 // pred_fallthru
      _
    %p140 = scmp.lt.s32.totalorder %s9, 2
    // Predicated region
    $region21: #{conv_unit_forward.3} parent=5 // pred_check
      %p141 = pneg %p140
    $region22: #{conv_unit_forward.3} parent=5 // pred_check_branch
      %143 = sbr.rel (%p141) target = $region24
    $region23: #{conv_unit_forward.3} parent=5 // pred_region
      // Predicated region
      $region25: #{conv_unit_forward.3} parent=23 // pred_check
        %p144 = pneg %p43
      $region26: #{conv_unit_forward.3} parent=23 // pred_check_branch
        %146 = sbr.rel (%p144) target = $region28
      $region27: #{conv_unit_forward.3} parent=23 // pred_region
        %s147 = smul.u32 16, %s17
        %p148 = scmp.lt.s32.totalorder %s16, 1
        %s149 = scalar_select %p148, %s16, 1
        %p150 = scmp.lt.s32.totalorder %s147, 15
        %s151 = scalar_select %p150, %s147, 15
        %s152 = smul.addr %s151, 2
        %s153 = smul.addr %s149, 32
        %s154 = sadd.s32 %s152, %s153
        %s155 = smul.addr %s154, 8
        %s156 = scalar_lea.vmem %s0, %s155
        %s157 = smul.u32 16, %s17
      $region28: #{conv_unit_forward.3} parent=23 // pred_fallthru
        _
    $region24: #{conv_unit_forward.3} parent=5 // pred_fallthru
      _
    %p158 = scmp.le.s32.totalorder 1, %s9
    %p159 = scmp.lt.s32.totalorder %s9, 3
    %p160 = pnand %p158, %p159
    %p161 = pneg %p160
    // Predicated region
    $region29: #{conv_unit_forward.3} parent=5 // pred_check
      _
    $region30: #{conv_unit_forward.3} parent=5 // pred_check_branch
      %163 = sbr.rel (%p160) target = $region32
    $region31: #{conv_unit_forward.3} parent=5 // pred_region
      %s164 = ssub.s32 %s9, 1
      %s165 = smul.u32 16, %s19
      %p166 = scmp.lt.s32.totalorder %s18, 1
      %s167 = scalar_select %p166, %s18, 1
      %p168 = scmp.lt.s32.totalorder %s165, 15
      %s169 = scalar_select %p168, %s165, 15
      %s170 = smul.addr %s169, 2
      %s171 = smul.addr %s167, 32
      %s172 = sadd.s32 %s170, %s171
      %s173 = smul.addr %s172, 8
      %s174 = scalar_lea.vmem %s0, %s173
      %p175 = pneg %p49
      %p176 = pneg %p46
      %p177 = pneg %p70
      %p178 = pneg %p67
      %p179 = pneg %p91
      %p180 = pneg %p88
      %p181 = pneg %p119
      %p182 = pneg %p116
      %s183 = smul.u32 8, %s19
      %p184 = scmp.lt.s32.totalorder %s18, 1
      %s185 = scalar_select %p184, %s18, 1
      %p186 = scmp.lt.s32.totalorder %s183, 7
      %s187 = scalar_select %p186, %s183, 7
      %s188 = smul.addr %s185, 8
      %s189 = sadd.s32 %s187, %s188
      %s190 = smul.addr %s189, 8
      %s191 = scalar_lea.vmem %s3, %s190
      %s192 = smul.u32 16, %s19
      %p193 = scmp.lt.s32.totalorder %s18, 1
      %s194 = scalar_select %p193, %s18, 1
      %p195 = scmp.lt.s32.totalorder %s192, 15
      %s196 = scalar_select %p195, %s192, 15
      %s197 = smul.addr %s196, 2
      %s198 = smul.addr %s194, 32
      %s199 = sadd.s32 %s197, %s198
      %s200 = smul.addr %s199, 8
      %s201 = scalar_lea.vmem %s0, %s200
      %s202 = smul.u32 16, %s19
      %s203 = smul.u32 8, %s19
      %p204 = scmp.lt.s32.totalorder %s18, 1
      %s205 = scalar_select %p204, %s18, 1
      %p206 = scmp.lt.s32.totalorder %s203, 7
      %s207 = scalar_select %p206, %s203, 7
      %s208 = smul.addr %s205, 8
      %s209 = sadd.s32 %s207, %s208
      %s210 = smul.addr %s209, 8
      %s211 = scalar_lea.vmem %s3, %s210
      %s212 = smul.u32 8, %s19
      %v213 = vld [vmem:[%s201] sm:$0xff]
      %v214 = vld [vmem:[%s201 + $0x8] sm:$0xff]
      %v215 = vld [vmem:[%s201 + $0x10] sm:$0xff]
      %v216 = vld [vmem:[%s201 + $0x18] sm:$0xff]
      %v217 = vld [vmem:[%s201 + $0x20] sm:$0xff]
      %v218 = vld [vmem:[%s201 + $0x28] sm:$0xff]
      %v219 = vld [vmem:[%s201 + $0x30] sm:$0xff]
      %v220 = vld [vmem:[%s201 + $0x38] sm:$0xff]
      %v221 = vld [vmem:[%s201 + $0x40] sm:$0xff]
      %v222 = vld [vmem:[%s201 + $0x48] sm:$0xff]
      %v223 = vld [vmem:[%s201 + $0x50] sm:$0xff]
      %v224 = vld [vmem:[%s201 + $0x58] sm:$0xff]
      %v225 = vld [vmem:[%s201 + $0x60] sm:$0xff]
      %v226 = vld [vmem:[%s201 + $0x68] sm:$0xff]
      %v227 = vld [vmem:[%s201 + $0x70] sm:$0xff]
      %v228 = vld [vmem:[%s201 + $0x78] sm:$0xff]
      %v229 = vld [vmem:[%s201 + $0x80] sm:$0xff]
      %v230 = vld [vmem:[%s201 + $0x88] sm:$0xff]
      %v231 = vld [vmem:[%s201 + $0x90] sm:$0xff]
      %v232 = vld [vmem:[%s201 + $0x98] sm:$0xff]
      %v233 = vld [vmem:[%s201 + $0xa0] sm:$0xff]
      %v234 = vld [vmem:[%s201 + $0xa8] sm:$0xff]
      %v235 = vld [vmem:[%s201 + $0xb0] sm:$0xff]
      %v236 = vld [vmem:[%s201 + $0xb8] sm:$0xff]
      %v237 = vld [vmem:[%s201 + $0xc0] sm:$0xff]
      %v238 = vld [vmem:[%s201 + $0xc8] sm:$0xff]
      %v239 = vld [vmem:[%s201 + $0xd0] sm:$0xff]
      %v240 = vld [vmem:[%s201 + $0xd8] sm:$0xff]
      %v241 = vld [vmem:[%s201 + $0xe0] sm:$0xff]
      %v242 = vld [vmem:[%s201 + $0xe8] sm:$0xff]
      %v243 = vld [vmem:[%s201 + $0xf0] sm:$0xff]
      %v244 = vld [vmem:[%s201 + $0xf8] sm:$0xff]
      %v245 = vld [vmem:[%s1] sm:$0x1]
      %v247 = vlaneseq
      %v248 = vshrl.u32 %v247, 7
      %v249 = vsub.s32 0, %v248
      %v250 = vrot.slane %v245, %v249
      %v252 = vmul.f32 %v213, %v250
      %v253 = vmul.f32 %v214, %v250
      %v254 = vmul.f32 %v215, %v250
      %v255 = vmul.f32 %v216, %v250
      %v256 = vmul.f32 %v217, %v250
      %v257 = vmul.f32 %v218, %v250
      %v258 = vmul.f32 %v219, %v250
      %v259 = vmul.f32 %v220, %v250
      %v260 = vmul.f32 %v221, %v250
      %v261 = vmul.f32 %v222, %v250
      %v262 = vmul.f32 %v223, %v250
      %v263 = vmul.f32 %v224, %v250
      %v264 = vmul.f32 %v225, %v250
      %v265 = vmul.f32 %v226, %v250
      %v266 = vmul.f32 %v227, %v250
      %v267 = vmul.f32 %v228, %v250
      %v268 = vmul.f32 %v229, %v250
      %v269 = vmul.f32 %v230, %v250
      %v270 = vmul.f32 %v231, %v250
      %v271 = vmul.f32 %v232, %v250
      %v272 = vmul.f32 %v233, %v250
      %v273 = vmul.f32 %v234, %v250
      %v274 = vmul.f32 %v235, %v250
      %v275 = vmul.f32 %v236, %v250
      %v276 = vmul.f32 %v237, %v250
      %v277 = vmul.f32 %v238, %v250
      %v278 = vmul.f32 %v239, %v250
      %v279 = vmul.f32 %v240, %v250
      %v280 = vmul.f32 %v241, %v250
      %v281 = vmul.f32 %v242, %v250
      %v282 = vmul.f32 %v243, %v250
      %v283 = vmul.f32 %v244, %v250
      %v284 = vld [vmem:[%s2] sm:$0x1]
      %v286 = vlaneseq
      %v287 = vshrl.u32 %v286, 7
      %v288 = vsub.s32 0, %v287
      %v289 = vrot.slane %v284, %v288
      %v291 = vadd.f32 %v252, %v289
      %v292 = vadd.f32 %v253, %v289
      %v293 = vadd.f32 %v254, %v289
      %v294 = vadd.f32 %v255, %v289
      %v295 = vadd.f32 %v256, %v289
      %v296 = vadd.f32 %v257, %v289
      %v297 = vadd.f32 %v258, %v289
      %v298 = vadd.f32 %v259, %v289
      %v299 = vadd.f32 %v260, %v289
      %v300 = vadd.f32 %v261, %v289
      %v301 = vadd.f32 %v262, %v289
      %v302 = vadd.f32 %v263, %v289
      %v303 = vadd.f32 %v264, %v289
      %v304 = vadd.f32 %v265, %v289
      %v305 = vadd.f32 %v266, %v289
      %v306 = vadd.f32 %v267, %v289
      %v307 = vadd.f32 %v268, %v289
      %v308 = vadd.f32 %v269, %v289
      %v309 = vadd.f32 %v270, %v289
      %v310 = vadd.f32 %v271, %v289
      %v311 = vadd.f32 %v272, %v289
      %v312 = vadd.f32 %v273, %v289
      %v313 = vadd.f32 %v274, %v289
      %v314 = vadd.f32 %v275, %v289
      %v315 = vadd.f32 %v276, %v289
      %v316 = vadd.f32 %v277, %v289
      %v317 = vadd.f32 %v278, %v289
      %v318 = vadd.f32 %v279, %v289
      %v319 = vadd.f32 %v280, %v289
      %v320 = vadd.f32 %v281, %v289
      %v321 = vadd.f32 %v282, %v289
      %v322 = vadd.f32 %v283, %v289
      %v323 = vmax.f32 %v291, 0.0
      %v324 = vmax.f32 %v292, 0.0
      %v325 = vmax.f32 %v293, 0.0
      %v326 = vmax.f32 %v294, 0.0
      %v327 = vmax.f32 %v295, 0.0
      %v328 = vmax.f32 %v296, 0.0
      %v329 = vmax.f32 %v297, 0.0
      %v330 = vmax.f32 %v298, 0.0
      %v331 = vmax.f32 %v299, 0.0
      %v332 = vmax.f32 %v300, 0.0
      %v333 = vmax.f32 %v301, 0.0
      %v334 = vmax.f32 %v302, 0.0
      %v335 = vmax.f32 %v303, 0.0
      %v336 = vmax.f32 %v304, 0.0
      %v337 = vmax.f32 %v305, 0.0
      %v338 = vmax.f32 %v306, 0.0
      %v339 = vmax.f32 %v307, 0.0
      %v340 = vmax.f32 %v308, 0.0
      %v341 = vmax.f32 %v309, 0.0
      %v342 = vmax.f32 %v310, 0.0
      %v343 = vmax.f32 %v311, 0.0
      %v344 = vmax.f32 %v312, 0.0
      %v345 = vmax.f32 %v313, 0.0
      %v346 = vmax.f32 %v314, 0.0
      %v347 = vmax.f32 %v315, 0.0
      %v348 = vmax.f32 %v316, 0.0
      %v349 = vmax.f32 %v317, 0.0
      %v350 = vmax.f32 %v318, 0.0
      %v351 = vmax.f32 %v319, 0.0
      %v352 = vmax.f32 %v320, 0.0
      %v353 = vmax.f32 %v321, 0.0
      %v354 = vmax.f32 %v322, 0.0
      %v387 = vcombine.high %v323, %v323
      %v389 = vunpack.c.l.s4 1983009808
      %v390 = vunpack.c.0.s8 %v389
      %v391 = vlaneseq
      %v392 = vshrl.u32 %v391, 7
      %v393 = vsub.s32 %v390, %v392
      %v394 = vrot.slane %v323, %v393
      %v396 = vunpack.c.l.s4 1983009808
      %v397 = vunpack.c.0.s8 %v396
      %v398 = vlaneseq
      %v399 = vshrl.u32 %v398, 7
      %v400 = vsub.s32 %v397, %v399
      %v401 = vrot.slane %v387, %v400
      %v402 = vcombine.high %v394, %v394
      %v403 = vcombine.high %v401, %v401
      %v404 = vcombine.high %v324, %v324
      %v406 = vunpack.c.l.s4 1983009808
      %v407 = vunpack.c.0.s8 %v406
      %v408 = vlaneseq
      %v409 = vshrl.u32 %v408, 7
      %v410 = vsub.s32 %v407, %v409
      %v411 = vrot.slane %v324, %v410
      %v413 = vunpack.c.l.s4 1983009808
      %v414 = vunpack.c.0.s8 %v413
      %v415 = vlaneseq
      %v416 = vshrl.u32 %v415, 7
      %v417 = vsub.s32 %v414, %v416
      %v418 = vrot.slane %v404, %v417
      %v419 = vcombine.high %v411, %v411
      %v420 = vcombine.high %v418, %v418
      %v421 = vcombine.high %v325, %v325
      %v423 = vunpack.c.l.s4 1983009808
      %v424 = vunpack.c.0.s8 %v423
      %v425 = vlaneseq
      %v426 = vshrl.u32 %v425, 7
      %v427 = vsub.s32 %v424, %v426
      %v428 = vrot.slane %v325, %v427
      %v430 = vunpack.c.l.s4 1983009808
      %v431 = vunpack.c.0.s8 %v430
      %v432 = vlaneseq
      %v433 = vshrl.u32 %v432, 7
      %v434 = vsub.s32 %v431, %v433
      %v435 = vrot.slane %v421, %v434
      %v436 = vcombine.high %v428, %v428
      %v437 = vcombine.high %v435, %v435
      %v438 = vcombine.high %v326, %v326
      %v440 = vunpack.c.l.s4 1983009808
      %v441 = vunpack.c.0.s8 %v440
      %v442 = vlaneseq
      %v443 = vshrl.u32 %v442, 7
      %v444 = vsub.s32 %v441, %v443
      %v445 = vrot.slane %v326, %v444
      %v447 = vunpack.c.l.s4 1983009808
      %v448 = vunpack.c.0.s8 %v447
      %v449 = vlaneseq
      %v450 = vshrl.u32 %v449, 7
      %v451 = vsub.s32 %v448, %v450
      %v452 = vrot.slane %v438, %v451
      %v453 = vcombine.high %v445, %v445
      %v454 = vcombine.high %v452, %v452
      %v455 = vcombine.high %v327, %v327
      %v457 = vunpack.c.l.s4 1983009808
      %v458 = vunpack.c.0.s8 %v457
      %v459 = vlaneseq
      %v460 = vshrl.u32 %v459, 7
      %v461 = vsub.s32 %v458, %v460
      %v462 = vrot.slane %v327, %v461
      %v464 = vunpack.c.l.s4 1983009808
      %v465 = vunpack.c.0.s8 %v464
      %v466 = vlaneseq
      %v467 = vshrl.u32 %v466, 7
      %v468 = vsub.s32 %v465, %v467
      %v469 = vrot.slane %v455, %v468
      %v470 = vcombine.high %v462, %v462
      %v471 = vcombine.high %v469, %v469
      %v472 = vcombine.high %v328, %v328
      %v474 = vunpack.c.l.s4 1983009808
      %v475 = vunpack.c.0.s8 %v474
      %v476 = vlaneseq
      %v477 = vshrl.u32 %v476, 7
      %v478 = vsub.s32 %v475, %v477
      %v479 = vrot.slane %v328, %v478
      %v481 = vunpack.c.l.s4 1983009808
      %v482 = vunpack.c.0.s8 %v481
      %v483 = vlaneseq
      %v484 = vshrl.u32 %v483, 7
      %v485 = vsub.s32 %v482, %v484
      %v486 = vrot.slane %v472, %v485
      %v487 = vcombine.high %v479, %v479
      %v488 = vcombine.high %v486, %v486
      %v489 = vcombine.high %v329, %v329
      %v491 = vunpack.c.l.s4 1983009808
      %v492 = vunpack.c.0.s8 %v491
      %v493 = vlaneseq
      %v494 = vshrl.u32 %v493, 7
      %v495 = vsub.s32 %v492, %v494
      %v496 = vrot.slane %v329, %v495
      %v498 = vunpack.c.l.s4 1983009808
      %v499 = vunpack.c.0.s8 %v498
      %v500 = vlaneseq
      %v501 = vshrl.u32 %v500, 7
      %v502 = vsub.s32 %v499, %v501
      %v503 = vrot.slane %v489, %v502
      %v504 = vcombine.high %v496, %v496
      %v505 = vcombine.high %v503, %v503
      %v506 = vcombine.high %v330, %v330
      %v508 = vunpack.c.l.s4 1983009808
      %v509 = vunpack.c.0.s8 %v508
      %v510 = vlaneseq
      %v511 = vshrl.u32 %v510, 7
      %v512 = vsub.s32 %v509, %v511
      %v513 = vrot.slane %v330, %v512
      %v515 = vunpack.c.l.s4 1983009808
      %v516 = vunpack.c.0.s8 %v515
      %v517 = vlaneseq
      %v518 = vshrl.u32 %v517, 7
      %v519 = vsub.s32 %v516, %v518
      %v520 = vrot.slane %v506, %v519
      %v521 = vcombine.high %v513, %v513
      %v522 = vcombine.high %v520, %v520
      %v523 = vcombine.high %v331, %v331
      %v525 = vunpack.c.l.s4 1983009808
      %v526 = vunpack.c.0.s8 %v525
      %v527 = vlaneseq
      %v528 = vshrl.u32 %v527, 7
      %v529 = vsub.s32 %v526, %v528
      %v530 = vrot.slane %v331, %v529
      %v532 = vunpack.c.l.s4 1983009808
      %v533 = vunpack.c.0.s8 %v532
      %v534 = vlaneseq
      %v535 = vshrl.u32 %v534, 7
      %v536 = vsub.s32 %v533, %v535
      %v537 = vrot.slane %v523, %v536
      %v538 = vcombine.high %v530, %v530
      %v539 = vcombine.high %v537, %v537
      %v540 = vcombine.high %v332, %v332
      %v542 = vunpack.c.l.s4 1983009808
      %v543 = vunpack.c.0.s8 %v542
      %v544 = vlaneseq
      %v545 = vshrl.u32 %v544, 7
      %v546 = vsub.s32 %v543, %v545
      %v547 = vrot.slane %v332, %v546
      %v549 = vunpack.c.l.s4 1983009808
      %v550 = vunpack.c.0.s8 %v549
      %v551 = vlaneseq
      %v552 = vshrl.u32 %v551, 7
      %v553 = vsub.s32 %v550, %v552
      %v554 = vrot.slane %v540, %v553
      %v555 = vcombine.high %v547, %v547
      %v556 = vcombine.high %v554, %v554
      %v557 = vcombine.high %v333, %v333
      %v559 = vunpack.c.l.s4 1983009808
      %v560 = vunpack.c.0.s8 %v559
      %v561 = vlaneseq
      %v562 = vshrl.u32 %v561, 7
      %v563 = vsub.s32 %v560, %v562
      %v564 = vrot.slane %v333, %v563
      %v566 = vunpack.c.l.s4 1983009808
      %v567 = vunpack.c.0.s8 %v566
      %v568 = vlaneseq
      %v569 = vshrl.u32 %v568, 7
      %v570 = vsub.s32 %v567, %v569
      %v571 = vrot.slane %v557, %v570
      %v572 = vcombine.high %v564, %v564
      %v573 = vcombine.high %v571, %v571
      %v574 = vcombine.high %v334, %v334
      %v576 = vunpack.c.l.s4 1983009808
      %v577 = vunpack.c.0.s8 %v576
      %v578 = vlaneseq
      %v579 = vshrl.u32 %v578, 7
      %v580 = vsub.s32 %v577, %v579
      %v581 = vrot.slane %v334, %v580
      %v583 = vunpack.c.l.s4 1983009808
      %v584 = vunpack.c.0.s8 %v583
      %v585 = vlaneseq
      %v586 = vshrl.u32 %v585, 7
      %v587 = vsub.s32 %v584, %v586
      %v588 = vrot.slane %v574, %v587
      %v589 = vcombine.high %v581, %v581
      %v590 = vcombine.high %v588, %v588
      %v591 = vcombine.high %v335, %v335
      %v593 = vunpack.c.l.s4 1983009808
      %v594 = vunpack.c.0.s8 %v593
      %v595 = vlaneseq
      %v596 = vshrl.u32 %v595, 7
      %v597 = vsub.s32 %v594, %v596
      %v598 = vrot.slane %v335, %v597
      %v600 = vunpack.c.l.s4 1983009808
      %v601 = vunpack.c.0.s8 %v600
      %v602 = vlaneseq
      %v603 = vshrl.u32 %v602, 7
      %v604 = vsub.s32 %v601, %v603
      %v605 = vrot.slane %v591, %v604
      %v606 = vcombine.high %v598, %v598
      %v607 = vcombine.high %v605, %v605
      %v608 = vcombine.high %v336, %v336
      %v610 = vunpack.c.l.s4 1983009808
      %v611 = vunpack.c.0.s8 %v610
      %v612 = vlaneseq
      %v613 = vshrl.u32 %v612, 7
      %v614 = vsub.s32 %v611, %v613
      %v615 = vrot.slane %v336, %v614
      %v617 = vunpack.c.l.s4 1983009808
      %v618 = vunpack.c.0.s8 %v617
      %v619 = vlaneseq
      %v620 = vshrl.u32 %v619, 7
      %v621 = vsub.s32 %v618, %v620
      %v622 = vrot.slane %v608, %v621
      %v623 = vcombine.high %v615, %v615
      %v624 = vcombine.high %v622, %v622
      %v625 = vcombine.high %v337, %v337
      %v627 = vunpack.c.l.s4 1983009808
      %v628 = vunpack.c.0.s8 %v627
      %v629 = vlaneseq
      %v630 = vshrl.u32 %v629, 7
      %v631 = vsub.s32 %v628, %v630
      %v632 = vrot.slane %v337, %v631
      %v634 = vunpack.c.l.s4 1983009808
      %v635 = vunpack.c.0.s8 %v634
      %v636 = vlaneseq
      %v637 = vshrl.u32 %v636, 7
      %v638 = vsub.s32 %v635, %v637
      %v639 = vrot.slane %v625, %v638
      %v640 = vcombine.high %v632, %v632
      %v641 = vcombine.high %v639, %v639
      %v642 = vcombine.high %v338, %v338
      %v644 = vunpack.c.l.s4 1983009808
      %v645 = vunpack.c.0.s8 %v644
      %v646 = vlaneseq
      %v647 = vshrl.u32 %v646, 7
      %v648 = vsub.s32 %v645, %v647
      %v649 = vrot.slane %v338, %v648
      %v651 = vunpack.c.l.s4 1983009808
      %v652 = vunpack.c.0.s8 %v651
      %v653 = vlaneseq
      %v654 = vshrl.u32 %v653, 7
      %v655 = vsub.s32 %v652, %v654
      %v656 = vrot.slane %v642, %v655
      %v657 = vcombine.high %v649, %v649
      %v658 = vcombine.high %v656, %v656
      %v659 = vcombine.high %v339, %v339
      %v661 = vunpack.c.l.s4 1983009808
      %v662 = vunpack.c.0.s8 %v661
      %v663 = vlaneseq
      %v664 = vshrl.u32 %v663, 7
      %v665 = vsub.s32 %v662, %v664
      %v666 = vrot.slane %v339, %v665
      %v668 = vunpack.c.l.s4 1983009808
      %v669 = vunpack.c.0.s8 %v668
      %v670 = vlaneseq
      %v671 = vshrl.u32 %v670, 7
      %v672 = vsub.s32 %v669, %v671
      %v673 = vrot.slane %v659, %v672
      %v674 = vcombine.high %v666, %v666
      %v675 = vcombine.high %v673, %v673
      %v676 = vcombine.high %v340, %v340
      %v678 = vunpack.c.l.s4 1983009808
      %v679 = vunpack.c.0.s8 %v678
      %v680 = vlaneseq
      %v681 = vshrl.u32 %v680, 7
      %v682 = vsub.s32 %v679, %v681
      %v683 = vrot.slane %v340, %v682
      %v685 = vunpack.c.l.s4 1983009808
      %v686 = vunpack.c.0.s8 %v685
      %v687 = vlaneseq
      %v688 = vshrl.u32 %v687, 7
      %v689 = vsub.s32 %v686, %v688
      %v690 = vrot.slane %v676, %v689
      %v691 = vcombine.high %v683, %v683
      %v692 = vcombine.high %v690, %v690
      %v693 = vcombine.high %v341, %v341
      %v695 = vunpack.c.l.s4 1983009808
      %v696 = vunpack.c.0.s8 %v695
      %v697 = vlaneseq
      %v698 = vshrl.u32 %v697, 7
      %v699 = vsub.s32 %v696, %v698
      %v700 = vrot.slane %v341, %v699
      %v702 = vunpack.c.l.s4 1983009808
      %v703 = vunpack.c.0.s8 %v702
      %v704 = vlaneseq
      %v705 = vshrl.u32 %v704, 7
      %v706 = vsub.s32 %v703, %v705
      %v707 = vrot.slane %v693, %v706
      %v708 = vcombine.high %v700, %v700
      %v709 = vcombine.high %v707, %v707
      %v710 = vcombine.high %v342, %v342
      %v712 = vunpack.c.l.s4 1983009808
      %v713 = vunpack.c.0.s8 %v712
      %v714 = vlaneseq
      %v715 = vshrl.u32 %v714, 7
      %v716 = vsub.s32 %v713, %v715
      %v717 = vrot.slane %v342, %v716
      %v719 = vunpack.c.l.s4 1983009808
      %v720 = vunpack.c.0.s8 %v719
      %v721 = vlaneseq
      %v722 = vshrl.u32 %v721, 7
      %v723 = vsub.s32 %v720, %v722
      %v724 = vrot.slane %v710, %v723
      %v725 = vcombine.high %v717, %v717
      %v726 = vcombine.high %v724, %v724
      %v727 = vcombine.high %v343, %v343
      %v729 = vunpack.c.l.s4 1983009808
      %v730 = vunpack.c.0.s8 %v729
      %v731 = vlaneseq
      %v732 = vshrl.u32 %v731, 7
      %v733 = vsub.s32 %v730, %v732
      %v734 = vrot.slane %v343, %v733
      %v736 = vunpack.c.l.s4 1983009808
      %v737 = vunpack.c.0.s8 %v736
      %v738 = vlaneseq
      %v739 = vshrl.u32 %v738, 7
      %v740 = vsub.s32 %v737, %v739
      %v741 = vrot.slane %v727, %v740
      %v742 = vcombine.high %v734, %v734
      %v743 = vcombine.high %v741, %v741
      %v744 = vcombine.high %v344, %v344
      %v746 = vunpack.c.l.s4 1983009808
      %v747 = vunpack.c.0.s8 %v746
      %v748 = vlaneseq
      %v749 = vshrl.u32 %v748, 7
      %v750 = vsub.s32 %v747, %v749
      %v751 = vrot.slane %v344, %v750
      %v753 = vunpack.c.l.s4 1983009808
      %v754 = vunpack.c.0.s8 %v753
      %v755 = vlaneseq
      %v756 = vshrl.u32 %v755, 7
      %v757 = vsub.s32 %v754, %v756
      %v758 = vrot.slane %v744, %v757
      %v759 = vcombine.high %v751, %v751
      %v760 = vcombine.high %v758, %v758
      %v761 = vcombine.high %v345, %v345
      %v763 = vunpack.c.l.s4 1983009808
      %v764 = vunpack.c.0.s8 %v763
      %v765 = vlaneseq
      %v766 = vshrl.u32 %v765, 7
      %v767 = vsub.s32 %v764, %v766
      %v768 = vrot.slane %v345, %v767
      %v770 = vunpack.c.l.s4 1983009808
      %v771 = vunpack.c.0.s8 %v770
      %v772 = vlaneseq
      %v773 = vshrl.u32 %v772, 7
      %v774 = vsub.s32 %v771, %v773
      %v775 = vrot.slane %v761, %v774
      %v776 = vcombine.high %v768, %v768
      %v777 = vcombine.high %v775, %v775
      %v778 = vcombine.high %v346, %v346
      %v780 = vunpack.c.l.s4 1983009808
      %v781 = vunpack.c.0.s8 %v780
      %v782 = vlaneseq
      %v783 = vshrl.u32 %v782, 7
      %v784 = vsub.s32 %v781, %v783
      %v785 = vrot.slane %v346, %v784
      %v787 = vunpack.c.l.s4 1983009808
      %v788 = vunpack.c.0.s8 %v787
      %v789 = vlaneseq
      %v790 = vshrl.u32 %v789, 7
      %v791 = vsub.s32 %v788, %v790
      %v792 = vrot.slane %v778, %v791
      %v793 = vcombine.high %v785, %v785
      %v794 = vcombine.high %v792, %v792
      %v795 = vcombine.high %v347, %v347
      %v797 = vunpack.c.l.s4 1983009808
      %v798 = vunpack.c.0.s8 %v797
      %v799 = vlaneseq
      %v800 = vshrl.u32 %v799, 7
      %v801 = vsub.s32 %v798, %v800
      %v802 = vrot.slane %v347, %v801
      %v804 = vunpack.c.l.s4 1983009808
      %v805 = vunpack.c.0.s8 %v804
      %v806 = vlaneseq
      %v807 = vshrl.u32 %v806, 7
      %v808 = vsub.s32 %v805, %v807
      %v809 = vrot.slane %v795, %v808
      %v810 = vcombine.high %v802, %v802
      %v811 = vcombine.high %v809, %v809
      %v812 = vcombine.high %v348, %v348
      %v814 = vunpack.c.l.s4 1983009808
      %v815 = vunpack.c.0.s8 %v814
      %v816 = vlaneseq
      %v817 = vshrl.u32 %v816, 7
      %v818 = vsub.s32 %v815, %v817
      %v819 = vrot.slane %v348, %v818
      %v821 = vunpack.c.l.s4 1983009808
      %v822 = vunpack.c.0.s8 %v821
      %v823 = vlaneseq
      %v824 = vshrl.u32 %v823, 7
      %v825 = vsub.s32 %v822, %v824
      %v826 = vrot.slane %v812, %v825
      %v827 = vcombine.high %v819, %v819
      %v828 = vcombine.high %v826, %v826
      %v829 = vcombine.high %v349, %v349
      %v831 = vunpack.c.l.s4 1983009808
      %v832 = vunpack.c.0.s8 %v831
      %v833 = vlaneseq
      %v834 = vshrl.u32 %v833, 7
      %v835 = vsub.s32 %v832, %v834
      %v836 = vrot.slane %v349, %v835
      %v838 = vunpack.c.l.s4 1983009808
      %v839 = vunpack.c.0.s8 %v838
      %v840 = vlaneseq
      %v841 = vshrl.u32 %v840, 7
      %v842 = vsub.s32 %v839, %v841
      %v843 = vrot.slane %v829, %v842
      %v844 = vcombine.high %v836, %v836
      %v845 = vcombine.high %v843, %v843
      %v846 = vcombine.high %v350, %v350
      %v848 = vunpack.c.l.s4 1983009808
      %v849 = vunpack.c.0.s8 %v848
      %v850 = vlaneseq
      %v851 = vshrl.u32 %v850, 7
      %v852 = vsub.s32 %v849, %v851
      %v853 = vrot.slane %v350, %v852
      %v855 = vunpack.c.l.s4 1983009808
      %v856 = vunpack.c.0.s8 %v855
      %v857 = vlaneseq
      %v858 = vshrl.u32 %v857, 7
      %v859 = vsub.s32 %v856, %v858
      %v860 = vrot.slane %v846, %v859
      %v861 = vcombine.high %v853, %v853
      %v862 = vcombine.high %v860, %v860
      %v863 = vcombine.high %v351, %v351
      %v865 = vunpack.c.l.s4 1983009808
      %v866 = vunpack.c.0.s8 %v865
      %v867 = vlaneseq
      %v868 = vshrl.u32 %v867, 7
      %v869 = vsub.s32 %v866, %v868
      %v870 = vrot.slane %v351, %v869
      %v872 = vunpack.c.l.s4 1983009808
      %v873 = vunpack.c.0.s8 %v872
      %v874 = vlaneseq
      %v875 = vshrl.u32 %v874, 7
      %v876 = vsub.s32 %v873, %v875
      %v877 = vrot.slane %v863, %v876
      %v878 = vcombine.high %v870, %v870
      %v879 = vcombine.high %v877, %v877
      %v880 = vcombine.high %v352, %v352
      %v882 = vunpack.c.l.s4 1983009808
      %v883 = vunpack.c.0.s8 %v882
      %v884 = vlaneseq
      %v885 = vshrl.u32 %v884, 7
      %v886 = vsub.s32 %v883, %v885
      %v887 = vrot.slane %v352, %v886
      %v889 = vunpack.c.l.s4 1983009808
      %v890 = vunpack.c.0.s8 %v889
      %v891 = vlaneseq
      %v892 = vshrl.u32 %v891, 7
      %v893 = vsub.s32 %v890, %v892
      %v894 = vrot.slane %v880, %v893
      %v895 = vcombine.high %v887, %v887
      %v896 = vcombine.high %v894, %v894
      %v897 = vcombine.high %v353, %v353
      %v899 = vunpack.c.l.s4 1983009808
      %v900 = vunpack.c.0.s8 %v899
      %v901 = vlaneseq
      %v902 = vshrl.u32 %v901, 7
      %v903 = vsub.s32 %v900, %v902
      %v904 = vrot.slane %v353, %v903
      %v906 = vunpack.c.l.s4 1983009808
      %v907 = vunpack.c.0.s8 %v906
      %v908 = vlaneseq
      %v909 = vshrl.u32 %v908, 7
      %v910 = vsub.s32 %v907, %v909
      %v911 = vrot.slane %v897, %v910
      %v912 = vcombine.high %v904, %v904
      %v913 = vcombine.high %v911, %v911
      %v914 = vcombine.high %v354, %v354
      %v916 = vunpack.c.l.s4 1983009808
      %v917 = vunpack.c.0.s8 %v916
      %v918 = vlaneseq
      %v919 = vshrl.u32 %v918, 7
      %v920 = vsub.s32 %v917, %v919
      %v921 = vrot.slane %v354, %v920
      %v923 = vunpack.c.l.s4 1983009808
      %v924 = vunpack.c.0.s8 %v923
      %v925 = vlaneseq
      %v926 = vshrl.u32 %v925, 7
      %v927 = vsub.s32 %v924, %v926
      %v928 = vrot.slane %v914, %v927
      %v929 = vcombine.high %v921, %v921
      %v930 = vcombine.high %v928, %v928
      %vm1059 = vcmask 58368
      %v1060 = vsel %vm1059, %v394, -inf
      %v1061 = vrot.slane %v1060, 4
      %v1062 = vmax.f32 %v1060, %v1061
      %v1063 = vrot.slane %v1062, 2
      %v1064 = vmax.f32 %v1062, %v1063
      %v1065 = vrot.slane %v1064, 1
      %v1066 = vmax.f32 %v1064, %v1065
      %v1067 = vsel %vm1059, %v402, -inf
      %v1068 = vrot.slane %v1067, 4
      %v1069 = vmax.f32 %v1067, %v1068
      %v1070 = vrot.slane %v1069, 2
      %v1071 = vmax.f32 %v1069, %v1070
      %v1072 = vrot.slane %v1071, 1
      %v1073 = vmax.f32 %v1071, %v1072
      %v1074 = vsel %vm1059, %v401, -inf
      %v1075 = vrot.slane %v1074, 4
      %v1076 = vmax.f32 %v1074, %v1075
      %v1077 = vrot.slane %v1076, 2
      %v1078 = vmax.f32 %v1076, %v1077
      %v1079 = vrot.slane %v1078, 1
      %v1080 = vmax.f32 %v1078, %v1079
      %v1081 = vsel %vm1059, %v403, -inf
      %v1082 = vrot.slane %v1081, 4
      %v1083 = vmax.f32 %v1081, %v1082
      %v1084 = vrot.slane %v1083, 2
      %v1085 = vmax.f32 %v1083, %v1084
      %v1086 = vrot.slane %v1085, 1
      %v1087 = vmax.f32 %v1085, %v1086
      %v1088 = vsel %vm1059, %v411, -inf
      %v1089 = vrot.slane %v1088, 4
      %v1090 = vmax.f32 %v1088, %v1089
      %v1091 = vrot.slane %v1090, 2
      %v1092 = vmax.f32 %v1090, %v1091
      %v1093 = vrot.slane %v1092, 1
      %v1094 = vmax.f32 %v1092, %v1093
      %v1095 = vsel %vm1059, %v419, -inf
      %v1096 = vrot.slane %v1095, 4
      %v1097 = vmax.f32 %v1095, %v1096
      %v1098 = vrot.slane %v1097, 2
      %v1099 = vmax.f32 %v1097, %v1098
      %v1100 = vrot.slane %v1099, 1
      %v1101 = vmax.f32 %v1099, %v1100
      %v1102 = vsel %vm1059, %v418, -inf
      %v1103 = vrot.slane %v1102, 4
      %v1104 = vmax.f32 %v1102, %v1103
      %v1105 = vrot.slane %v1104, 2
      %v1106 = vmax.f32 %v1104, %v1105
      %v1107 = vrot.slane %v1106, 1
      %v1108 = vmax.f32 %v1106, %v1107
      %v1109 = vsel %vm1059, %v420, -inf
      %v1110 = vrot.slane %v1109, 4
      %v1111 = vmax.f32 %v1109, %v1110
      %v1112 = vrot.slane %v1111, 2
      %v1113 = vmax.f32 %v1111, %v1112
      %v1114 = vrot.slane %v1113, 1
      %v1115 = vmax.f32 %v1113, %v1114
      %v1116 = vsel %vm1059, %v428, -inf
      %v1117 = vrot.slane %v1116, 4
      %v1118 = vmax.f32 %v1116, %v1117
      %v1119 = vrot.slane %v1118, 2
      %v1120 = vmax.f32 %v1118, %v1119
      %v1121 = vrot.slane %v1120, 1
      %v1122 = vmax.f32 %v1120, %v1121
      %v1123 = vsel %vm1059, %v436, -inf
      %v1124 = vrot.slane %v1123, 4
      %v1125 = vmax.f32 %v1123, %v1124
      %v1126 = vrot.slane %v1125, 2
      %v1127 = vmax.f32 %v1125, %v1126
      %v1128 = vrot.slane %v1127, 1
      %v1129 = vmax.f32 %v1127, %v1128
      %v1130 = vsel %vm1059, %v435, -inf
      %v1131 = vrot.slane %v1130, 4
      %v1132 = vmax.f32 %v1130, %v1131
      %v1133 = vrot.slane %v1132, 2
      %v1134 = vmax.f32 %v1132, %v1133
      %v1135 = vrot.slane %v1134, 1
      %v1136 = vmax.f32 %v1134, %v1135
      %v1137 = vsel %vm1059, %v437, -inf
      %v1138 = vrot.slane %v1137, 4
      %v1139 = vmax.f32 %v1137, %v1138
      %v1140 = vrot.slane %v1139, 2
      %v1141 = vmax.f32 %v1139, %v1140
      %v1142 = vrot.slane %v1141, 1
      %v1143 = vmax.f32 %v1141, %v1142
      %v1144 = vsel %vm1059, %v445, -inf
      %v1145 = vrot.slane %v1144, 4
      %v1146 = vmax.f32 %v1144, %v1145
      %v1147 = vrot.slane %v1146, 2
      %v1148 = vmax.f32 %v1146, %v1147
      %v1149 = vrot.slane %v1148, 1
      %v1150 = vmax.f32 %v1148, %v1149
      %v1151 = vsel %vm1059, %v453, -inf
      %v1152 = vrot.slane %v1151, 4
      %v1153 = vmax.f32 %v1151, %v1152
      %v1154 = vrot.slane %v1153, 2
      %v1155 = vmax.f32 %v1153, %v1154
      %v1156 = vrot.slane %v1155, 1
      %v1157 = vmax.f32 %v1155, %v1156
      %v1158 = vsel %vm1059, %v452, -inf
      %v1159 = vrot.slane %v1158, 4
      %v1160 = vmax.f32 %v1158, %v1159
      %v1161 = vrot.slane %v1160, 2
      %v1162 = vmax.f32 %v1160, %v1161
      %v1163 = vrot.slane %v1162, 1
      %v1164 = vmax.f32 %v1162, %v1163
      %v1165 = vsel %vm1059, %v454, -inf
      %v1166 = vrot.slane %v1165, 4
      %v1167 = vmax.f32 %v1165, %v1166
      %v1168 = vrot.slane %v1167, 2
      %v1169 = vmax.f32 %v1167, %v1168
      %v1170 = vrot.slane %v1169, 1
      %v1171 = vmax.f32 %v1169, %v1170
      %v1172 = vsel %vm1059, %v462, -inf
      %v1173 = vrot.slane %v1172, 4
      %v1174 = vmax.f32 %v1172, %v1173
      %v1175 = vrot.slane %v1174, 2
      %v1176 = vmax.f32 %v1174, %v1175
      %v1177 = vrot.slane %v1176, 1
      %v1178 = vmax.f32 %v1176, %v1177
      %v1179 = vsel %vm1059, %v470, -inf
      %v1180 = vrot.slane %v1179, 4
      %v1181 = vmax.f32 %v1179, %v1180
      %v1182 = vrot.slane %v1181, 2
      %v1183 = vmax.f32 %v1181, %v1182
      %v1184 = vrot.slane %v1183, 1
      %v1185 = vmax.f32 %v1183, %v1184
      %v1186 = vsel %vm1059, %v469, -inf
      %v1187 = vrot.slane %v1186, 4
      %v1188 = vmax.f32 %v1186, %v1187
      %v1189 = vrot.slane %v1188, 2
      %v1190 = vmax.f32 %v1188, %v1189
      %v1191 = vrot.slane %v1190, 1
      %v1192 = vmax.f32 %v1190, %v1191
      %v1193 = vsel %vm1059, %v471, -inf
      %v1194 = vrot.slane %v1193, 4
      %v1195 = vmax.f32 %v1193, %v1194
      %v1196 = vrot.slane %v1195, 2
      %v1197 = vmax.f32 %v1195, %v1196
      %v1198 = vrot.slane %v1197, 1
      %v1199 = vmax.f32 %v1197, %v1198
      %v1200 = vsel %vm1059, %v479, -inf
      %v1201 = vrot.slane %v1200, 4
      %v1202 = vmax.f32 %v1200, %v1201
      %v1203 = vrot.slane %v1202, 2
      %v1204 = vmax.f32 %v1202, %v1203
      %v1205 = vrot.slane %v1204, 1
      %v1206 = vmax.f32 %v1204, %v1205
      %v1207 = vsel %vm1059, %v487, -inf
      %v1208 = vrot.slane %v1207, 4
      %v1209 = vmax.f32 %v1207, %v1208
      %v1210 = vrot.slane %v1209, 2
      %v1211 = vmax.f32 %v1209, %v1210
      %v1212 = vrot.slane %v1211, 1
      %v1213 = vmax.f32 %v1211, %v1212
      %v1214 = vsel %vm1059, %v486, -inf
      %v1215 = vrot.slane %v1214, 4
      %v1216 = vmax.f32 %v1214, %v1215
      %v1217 = vrot.slane %v1216, 2
      %v1218 = vmax.f32 %v1216, %v1217
      %v1219 = vrot.slane %v1218, 1
      %v1220 = vmax.f32 %v1218, %v1219
      %v1221 = vsel %vm1059, %v488, -inf
      %v1222 = vrot.slane %v1221, 4
      %v1223 = vmax.f32 %v1221, %v1222
      %v1224 = vrot.slane %v1223, 2
      %v1225 = vmax.f32 %v1223, %v1224
      %v1226 = vrot.slane %v1225, 1
      %v1227 = vmax.f32 %v1225, %v1226
      %v1228 = vsel %vm1059, %v496, -inf
      %v1229 = vrot.slane %v1228, 4
      %v1230 = vmax.f32 %v1228, %v1229
      %v1231 = vrot.slane %v1230, 2
      %v1232 = vmax.f32 %v1230, %v1231
      %v1233 = vrot.slane %v1232, 1
      %v1234 = vmax.f32 %v1232, %v1233
      %v1235 = vsel %vm1059, %v504, -inf
      %v1236 = vrot.slane %v1235, 4
      %v1237 = vmax.f32 %v1235, %v1236
      %v1238 = vrot.slane %v1237, 2
      %v1239 = vmax.f32 %v1237, %v1238
      %v1240 = vrot.slane %v1239, 1
      %v1241 = vmax.f32 %v1239, %v1240
      %v1242 = vsel %vm1059, %v503, -inf
      %v1243 = vrot.slane %v1242, 4
      %v1244 = vmax.f32 %v1242, %v1243
      %v1245 = vrot.slane %v1244, 2
      %v1246 = vmax.f32 %v1244, %v1245
      %v1247 = vrot.slane %v1246, 1
      %v1248 = vmax.f32 %v1246, %v1247
      %v1249 = vsel %vm1059, %v505, -inf
      %v1250 = vrot.slane %v1249, 4
      %v1251 = vmax.f32 %v1249, %v1250
      %v1252 = vrot.slane %v1251, 2
      %v1253 = vmax.f32 %v1251, %v1252
      %v1254 = vrot.slane %v1253, 1
      %v1255 = vmax.f32 %v1253, %v1254
      %v1256 = vsel %vm1059, %v513, -inf
      %v1257 = vrot.slane %v1256, 4
      %v1258 = vmax.f32 %v1256, %v1257
      %v1259 = vrot.slane %v1258, 2
      %v1260 = vmax.f32 %v1258, %v1259
      %v1261 = vrot.slane %v1260, 1
      %v1262 = vmax.f32 %v1260, %v1261
      %v1263 = vsel %vm1059, %v521, -inf
      %v1264 = vrot.slane %v1263, 4
      %v1265 = vmax.f32 %v1263, %v1264
      %v1266 = vrot.slane %v1265, 2
      %v1267 = vmax.f32 %v1265, %v1266
      %v1268 = vrot.slane %v1267, 1
      %v1269 = vmax.f32 %v1267, %v1268
      %v1270 = vsel %vm1059, %v520, -inf
      %v1271 = vrot.slane %v1270, 4
      %v1272 = vmax.f32 %v1270, %v1271
      %v1273 = vrot.slane %v1272, 2
      %v1274 = vmax.f32 %v1272, %v1273
      %v1275 = vrot.slane %v1274, 1
      %v1276 = vmax.f32 %v1274, %v1275
      %v1277 = vsel %vm1059, %v522, -inf
      %v1278 = vrot.slane %v1277, 4
      %v1279 = vmax.f32 %v1277, %v1278
      %v1280 = vrot.slane %v1279, 2
      %v1281 = vmax.f32 %v1279, %v1280
      %v1282 = vrot.slane %v1281, 1
      %v1283 = vmax.f32 %v1281, %v1282
      %v1284 = vsel %vm1059, %v530, -inf
      %v1285 = vrot.slane %v1284, 4
      %v1286 = vmax.f32 %v1284, %v1285
      %v1287 = vrot.slane %v1286, 2
      %v1288 = vmax.f32 %v1286, %v1287
      %v1289 = vrot.slane %v1288, 1
      %v1290 = vmax.f32 %v1288, %v1289
      %v1291 = vsel %vm1059, %v538, -inf
      %v1292 = vrot.slane %v1291, 4
      %v1293 = vmax.f32 %v1291, %v1292
      %v1294 = vrot.slane %v1293, 2
      %v1295 = vmax.f32 %v1293, %v1294
      %v1296 = vrot.slane %v1295, 1
      %v1297 = vmax.f32 %v1295, %v1296
      %v1298 = vsel %vm1059, %v537, -inf
      %v1299 = vrot.slane %v1298, 4
      %v1300 = vmax.f32 %v1298, %v1299
      %v1301 = vrot.slane %v1300, 2
      %v1302 = vmax.f32 %v1300, %v1301
      %v1303 = vrot.slane %v1302, 1
      %v1304 = vmax.f32 %v1302, %v1303
      %v1305 = vsel %vm1059, %v539, -inf
      %v1306 = vrot.slane %v1305, 4
      %v1307 = vmax.f32 %v1305, %v1306
      %v1308 = vrot.slane %v1307, 2
      %v1309 = vmax.f32 %v1307, %v1308
      %v1310 = vrot.slane %v1309, 1
      %v1311 = vmax.f32 %v1309, %v1310
      %v1312 = vsel %vm1059, %v547, -inf
      %v1313 = vrot.slane %v1312, 4
      %v1314 = vmax.f32 %v1312, %v1313
      %v1315 = vrot.slane %v1314, 2
      %v1316 = vmax.f32 %v1314, %v1315
      %v1317 = vrot.slane %v1316, 1
      %v1318 = vmax.f32 %v1316, %v1317
      %v1319 = vsel %vm1059, %v555, -inf
      %v1320 = vrot.slane %v1319, 4
      %v1321 = vmax.f32 %v1319, %v1320
      %v1322 = vrot.slane %v1321, 2
      %v1323 = vmax.f32 %v1321, %v1322
      %v1324 = vrot.slane %v1323, 1
      %v1325 = vmax.f32 %v1323, %v1324
      %v1326 = vsel %vm1059, %v554, -inf
      %v1327 = vrot.slane %v1326, 4
      %v1328 = vmax.f32 %v1326, %v1327
      %v1329 = vrot.slane %v1328, 2
      %v1330 = vmax.f32 %v1328, %v1329
      %v1331 = vrot.slane %v1330, 1
      %v1332 = vmax.f32 %v1330, %v1331
      %v1333 = vsel %vm1059, %v556, -inf
      %v1334 = vrot.slane %v1333, 4
      %v1335 = vmax.f32 %v1333, %v1334
      %v1336 = vrot.slane %v1335, 2
      %v1337 = vmax.f32 %v1335, %v1336
      %v1338 = vrot.slane %v1337, 1
      %v1339 = vmax.f32 %v1337, %v1338
      %v1340 = vsel %vm1059, %v564, -inf
      %v1341 = vrot.slane %v1340, 4
      %v1342 = vmax.f32 %v1340, %v1341
      %v1343 = vrot.slane %v1342, 2
      %v1344 = vmax.f32 %v1342, %v1343
      %v1345 = vrot.slane %v1344, 1
      %v1346 = vmax.f32 %v1344, %v1345
      %v1347 = vsel %vm1059, %v572, -inf
      %v1348 = vrot.slane %v1347, 4
      %v1349 = vmax.f32 %v1347, %v1348
      %v1350 = vrot.slane %v1349, 2
      %v1351 = vmax.f32 %v1349, %v1350
      %v1352 = vrot.slane %v1351, 1
      %v1353 = vmax.f32 %v1351, %v1352
      %v1354 = vsel %vm1059, %v571, -inf
      %v1355 = vrot.slane %v1354, 4
      %v1356 = vmax.f32 %v1354, %v1355
      %v1357 = vrot.slane %v1356, 2
      %v1358 = vmax.f32 %v1356, %v1357
      %v1359 = vrot.slane %v1358, 1
      %v1360 = vmax.f32 %v1358, %v1359
      %v1361 = vsel %vm1059, %v573, -inf
      %v1362 = vrot.slane %v1361, 4
      %v1363 = vmax.f32 %v1361, %v1362
      %v1364 = vrot.slane %v1363, 2
      %v1365 = vmax.f32 %v1363, %v1364
      %v1366 = vrot.slane %v1365, 1
      %v1367 = vmax.f32 %v1365, %v1366
      %v1368 = vsel %vm1059, %v581, -inf
      %v1369 = vrot.slane %v1368, 4
      %v1370 = vmax.f32 %v1368, %v1369
      %v1371 = vrot.slane %v1370, 2
      %v1372 = vmax.f32 %v1370, %v1371
      %v1373 = vrot.slane %v1372, 1
      %v1374 = vmax.f32 %v1372, %v1373
      %v1375 = vsel %vm1059, %v589, -inf
      %v1376 = vrot.slane %v1375, 4
      %v1377 = vmax.f32 %v1375, %v1376
      %v1378 = vrot.slane %v1377, 2
      %v1379 = vmax.f32 %v1377, %v1378
      %v1380 = vrot.slane %v1379, 1
      %v1381 = vmax.f32 %v1379, %v1380
      %v1382 = vsel %vm1059, %v588, -inf
      %v1383 = vrot.slane %v1382, 4
      %v1384 = vmax.f32 %v1382, %v1383
      %v1385 = vrot.slane %v1384, 2
      %v1386 = vmax.f32 %v1384, %v1385
      %v1387 = vrot.slane %v1386, 1
      %v1388 = vmax.f32 %v1386, %v1387
      %v1389 = vsel %vm1059, %v590, -inf
      %v1390 = vrot.slane %v1389, 4
      %v1391 = vmax.f32 %v1389, %v1390
      %v1392 = vrot.slane %v1391, 2
      %v1393 = vmax.f32 %v1391, %v1392
      %v1394 = vrot.slane %v1393, 1
      %v1395 = vmax.f32 %v1393, %v1394
      %v1396 = vsel %vm1059, %v598, -inf
      %v1397 = vrot.slane %v1396, 4
      %v1398 = vmax.f32 %v1396, %v1397
      %v1399 = vrot.slane %v1398, 2
      %v1400 = vmax.f32 %v1398, %v1399
      %v1401 = vrot.slane %v1400, 1
      %v1402 = vmax.f32 %v1400, %v1401
      %v1403 = vsel %vm1059, %v606, -inf
      %v1404 = vrot.slane %v1403, 4
      %v1405 = vmax.f32 %v1403, %v1404
      %v1406 = vrot.slane %v1405, 2
      %v1407 = vmax.f32 %v1405, %v1406
      %v1408 = vrot.slane %v1407, 1
      %v1409 = vmax.f32 %v1407, %v1408
      %v1410 = vsel %vm1059, %v605, -inf
      %v1411 = vrot.slane %v1410, 4
      %v1412 = vmax.f32 %v1410, %v1411
      %v1413 = vrot.slane %v1412, 2
      %v1414 = vmax.f32 %v1412, %v1413
      %v1415 = vrot.slane %v1414, 1
      %v1416 = vmax.f32 %v1414, %v1415
      %v1417 = vsel %vm1059, %v607, -inf
      %v1418 = vrot.slane %v1417, 4
      %v1419 = vmax.f32 %v1417, %v1418
      %v1420 = vrot.slane %v1419, 2
      %v1421 = vmax.f32 %v1419, %v1420
      %v1422 = vrot.slane %v1421, 1
      %v1423 = vmax.f32 %v1421, %v1422
      %v1424 = vsel %vm1059, %v615, -inf
      %v1425 = vrot.slane %v1424, 4
      %v1426 = vmax.f32 %v1424, %v1425
      %v1427 = vrot.slane %v1426, 2
      %v1428 = vmax.f32 %v1426, %v1427
      %v1429 = vrot.slane %v1428, 1
      %v1430 = vmax.f32 %v1428, %v1429
      %v1431 = vsel %vm1059, %v623, -inf
      %v1432 = vrot.slane %v1431, 4
      %v1433 = vmax.f32 %v1431, %v1432
      %v1434 = vrot.slane %v1433, 2
      %v1435 = vmax.f32 %v1433, %v1434
      %v1436 = vrot.slane %v1435, 1
      %v1437 = vmax.f32 %v1435, %v1436
      %v1438 = vsel %vm1059, %v622, -inf
      %v1439 = vrot.slane %v1438, 4
      %v1440 = vmax.f32 %v1438, %v1439
      %v1441 = vrot.slane %v1440, 2
      %v1442 = vmax.f32 %v1440, %v1441
      %v1443 = vrot.slane %v1442, 1
      %v1444 = vmax.f32 %v1442, %v1443
      %v1445 = vsel %vm1059, %v624, -inf
      %v1446 = vrot.slane %v1445, 4
      %v1447 = vmax.f32 %v1445, %v1446
      %v1448 = vrot.slane %v1447, 2
      %v1449 = vmax.f32 %v1447, %v1448
      %v1450 = vrot.slane %v1449, 1
      %v1451 = vmax.f32 %v1449, %v1450
      %v1452 = vsel %vm1059, %v632, -inf
      %v1453 = vrot.slane %v1452, 4
      %v1454 = vmax.f32 %v1452, %v1453
      %v1455 = vrot.slane %v1454, 2
      %v1456 = vmax.f32 %v1454, %v1455
      %v1457 = vrot.slane %v1456, 1
      %v1458 = vmax.f32 %v1456, %v1457
      %v1459 = vsel %vm1059, %v640, -inf
      %v1460 = vrot.slane %v1459, 4
      %v1461 = vmax.f32 %v1459, %v1460
      %v1462 = vrot.slane %v1461, 2
      %v1463 = vmax.f32 %v1461, %v1462
      %v1464 = vrot.slane %v1463, 1
      %v1465 = vmax.f32 %v1463, %v1464
      %v1466 = vsel %vm1059, %v639, -inf
      %v1467 = vrot.slane %v1466, 4
      %v1468 = vmax.f32 %v1466, %v1467
      %v1469 = vrot.slane %v1468, 2
      %v1470 = vmax.f32 %v1468, %v1469
      %v1471 = vrot.slane %v1470, 1
      %v1472 = vmax.f32 %v1470, %v1471
      %v1473 = vsel %vm1059, %v641, -inf
      %v1474 = vrot.slane %v1473, 4
      %v1475 = vmax.f32 %v1473, %v1474
      %v1476 = vrot.slane %v1475, 2
      %v1477 = vmax.f32 %v1475, %v1476
      %v1478 = vrot.slane %v1477, 1
      %v1479 = vmax.f32 %v1477, %v1478
      %v1480 = vsel %vm1059, %v649, -inf
      %v1481 = vrot.slane %v1480, 4
      %v1482 = vmax.f32 %v1480, %v1481
      %v1483 = vrot.slane %v1482, 2
      %v1484 = vmax.f32 %v1482, %v1483
      %v1485 = vrot.slane %v1484, 1
      %v1486 = vmax.f32 %v1484, %v1485
      %v1487 = vsel %vm1059, %v657, -inf
      %v1488 = vrot.slane %v1487, 4
      %v1489 = vmax.f32 %v1487, %v1488
      %v1490 = vrot.slane %v1489, 2
      %v1491 = vmax.f32 %v1489, %v1490
      %v1492 = vrot.slane %v1491, 1
      %v1493 = vmax.f32 %v1491, %v1492
      %v1494 = vsel %vm1059, %v656, -inf
      %v1495 = vrot.slane %v1494, 4
      %v1496 = vmax.f32 %v1494, %v1495
      %v1497 = vrot.slane %v1496, 2
      %v1498 = vmax.f32 %v1496, %v1497
      %v1499 = vrot.slane %v1498, 1
      %v1500 = vmax.f32 %v1498, %v1499
      %v1501 = vsel %vm1059, %v658, -inf
      %v1502 = vrot.slane %v1501, 4
      %v1503 = vmax.f32 %v1501, %v1502
      %v1504 = vrot.slane %v1503, 2
      %v1505 = vmax.f32 %v1503, %v1504
      %v1506 = vrot.slane %v1505, 1
      %v1507 = vmax.f32 %v1505, %v1506
      %v1508 = vsel %vm1059, %v666, -inf
      %v1509 = vrot.slane %v1508, 4
      %v1510 = vmax.f32 %v1508, %v1509
      %v1511 = vrot.slane %v1510, 2
      %v1512 = vmax.f32 %v1510, %v1511
      %v1513 = vrot.slane %v1512, 1
      %v1514 = vmax.f32 %v1512, %v1513
      %v1515 = vsel %vm1059, %v674, -inf
      %v1516 = vrot.slane %v1515, 4
      %v1517 = vmax.f32 %v1515, %v1516
      %v1518 = vrot.slane %v1517, 2
      %v1519 = vmax.f32 %v1517, %v1518
      %v1520 = vrot.slane %v1519, 1
      %v1521 = vmax.f32 %v1519, %v1520
      %v1522 = vsel %vm1059, %v673, -inf
      %v1523 = vrot.slane %v1522, 4
      %v1524 = vmax.f32 %v1522, %v1523
      %v1525 = vrot.slane %v1524, 2
      %v1526 = vmax.f32 %v1524, %v1525
      %v1527 = vrot.slane %v1526, 1
      %v1528 = vmax.f32 %v1526, %v1527
      %v1529 = vsel %vm1059, %v675, -inf
      %v1530 = vrot.slane %v1529, 4
      %v1531 = vmax.f32 %v1529, %v1530
      %v1532 = vrot.slane %v1531, 2
      %v1533 = vmax.f32 %v1531, %v1532
      %v1534 = vrot.slane %v1533, 1
      %v1535 = vmax.f32 %v1533, %v1534
      %v1536 = vsel %vm1059, %v683, -inf
      %v1537 = vrot.slane %v1536, 4
      %v1538 = vmax.f32 %v1536, %v1537
      %v1539 = vrot.slane %v1538, 2
      %v1540 = vmax.f32 %v1538, %v1539
      %v1541 = vrot.slane %v1540, 1
      %v1542 = vmax.f32 %v1540, %v1541
      %v1543 = vsel %vm1059, %v691, -inf
      %v1544 = vrot.slane %v1543, 4
      %v1545 = vmax.f32 %v1543, %v1544
      %v1546 = vrot.slane %v1545, 2
      %v1547 = vmax.f32 %v1545, %v1546
      %v1548 = vrot.slane %v1547, 1
      %v1549 = vmax.f32 %v1547, %v1548
      %v1550 = vsel %vm1059, %v690, -inf
      %v1551 = vrot.slane %v1550, 4
      %v1552 = vmax.f32 %v1550, %v1551
      %v1553 = vrot.slane %v1552, 2
      %v1554 = vmax.f32 %v1552, %v1553
      %v1555 = vrot.slane %v1554, 1
      %v1556 = vmax.f32 %v1554, %v1555
      %v1557 = vsel %vm1059, %v692, -inf
      %v1558 = vrot.slane %v1557, 4
      %v1559 = vmax.f32 %v1557, %v1558
      %v1560 = vrot.slane %v1559, 2
      %v1561 = vmax.f32 %v1559, %v1560
      %v1562 = vrot.slane %v1561, 1
      %v1563 = vmax.f32 %v1561, %v1562
      %v1564 = vsel %vm1059, %v700, -inf
      %v1565 = vrot.slane %v1564, 4
      %v1566 = vmax.f32 %v1564, %v1565
      %v1567 = vrot.slane %v1566, 2
      %v1568 = vmax.f32 %v1566, %v1567
      %v1569 = vrot.slane %v1568, 1
      %v1570 = vmax.f32 %v1568, %v1569
      %v1571 = vsel %vm1059, %v708, -inf
      %v1572 = vrot.slane %v1571, 4
      %v1573 = vmax.f32 %v1571, %v1572
      %v1574 = vrot.slane %v1573, 2
      %v1575 = vmax.f32 %v1573, %v1574
      %v1576 = vrot.slane %v1575, 1
      %v1577 = vmax.f32 %v1575, %v1576
      %v1578 = vsel %vm1059, %v707, -inf
      %v1579 = vrot.slane %v1578, 4
      %v1580 = vmax.f32 %v1578, %v1579
      %v1581 = vrot.slane %v1580, 2
      %v1582 = vmax.f32 %v1580, %v1581
      %v1583 = vrot.slane %v1582, 1
      %v1584 = vmax.f32 %v1582, %v1583
      %v1585 = vsel %vm1059, %v709, -inf
      %v1586 = vrot.slane %v1585, 4
      %v1587 = vmax.f32 %v1585, %v1586
      %v1588 = vrot.slane %v1587, 2
      %v1589 = vmax.f32 %v1587, %v1588
      %v1590 = vrot.slane %v1589, 1
      %v1591 = vmax.f32 %v1589, %v1590
      %v1592 = vsel %vm1059, %v717, -inf
      %v1593 = vrot.slane %v1592, 4
      %v1594 = vmax.f32 %v1592, %v1593
      %v1595 = vrot.slane %v1594, 2
      %v1596 = vmax.f32 %v1594, %v1595
      %v1597 = vrot.slane %v1596, 1
      %v1598 = vmax.f32 %v1596, %v1597
      %v1599 = vsel %vm1059, %v725, -inf
      %v1600 = vrot.slane %v1599, 4
      %v1601 = vmax.f32 %v1599, %v1600
      %v1602 = vrot.slane %v1601, 2
      %v1603 = vmax.f32 %v1601, %v1602
      %v1604 = vrot.slane %v1603, 1
      %v1605 = vmax.f32 %v1603, %v1604
      %v1606 = vsel %vm1059, %v724, -inf
      %v1607 = vrot.slane %v1606, 4
      %v1608 = vmax.f32 %v1606, %v1607
      %v1609 = vrot.slane %v1608, 2
      %v1610 = vmax.f32 %v1608, %v1609
      %v1611 = vrot.slane %v1610, 1
      %v1612 = vmax.f32 %v1610, %v1611
      %v1613 = vsel %vm1059, %v726, -inf
      %v1614 = vrot.slane %v1613, 4
      %v1615 = vmax.f32 %v1613, %v1614
      %v1616 = vrot.slane %v1615, 2
      %v1617 = vmax.f32 %v1615, %v1616
      %v1618 = vrot.slane %v1617, 1
      %v1619 = vmax.f32 %v1617, %v1618
      %v1620 = vsel %vm1059, %v734, -inf
      %v1621 = vrot.slane %v1620, 4
      %v1622 = vmax.f32 %v1620, %v1621
      %v1623 = vrot.slane %v1622, 2
      %v1624 = vmax.f32 %v1622, %v1623
      %v1625 = vrot.slane %v1624, 1
      %v1626 = vmax.f32 %v1624, %v1625
      %v1627 = vsel %vm1059, %v742, -inf
      %v1628 = vrot.slane %v1627, 4
      %v1629 = vmax.f32 %v1627, %v1628
      %v1630 = vrot.slane %v1629, 2
      %v1631 = vmax.f32 %v1629, %v1630
      %v1632 = vrot.slane %v1631, 1
      %v1633 = vmax.f32 %v1631, %v1632
      %v1634 = vsel %vm1059, %v741, -inf
      %v1635 = vrot.slane %v1634, 4
      %v1636 = vmax.f32 %v1634, %v1635
      %v1637 = vrot.slane %v1636, 2
      %v1638 = vmax.f32 %v1636, %v1637
      %v1639 = vrot.slane %v1638, 1
      %v1640 = vmax.f32 %v1638, %v1639
      %v1641 = vsel %vm1059, %v743, -inf
      %v1642 = vrot.slane %v1641, 4
      %v1643 = vmax.f32 %v1641, %v1642
      %v1644 = vrot.slane %v1643, 2
      %v1645 = vmax.f32 %v1643, %v1644
      %v1646 = vrot.slane %v1645, 1
      %v1647 = vmax.f32 %v1645, %v1646
      %v1648 = vsel %vm1059, %v751, -inf
      %v1649 = vrot.slane %v1648, 4
      %v1650 = vmax.f32 %v1648, %v1649
      %v1651 = vrot.slane %v1650, 2
      %v1652 = vmax.f32 %v1650, %v1651
      %v1653 = vrot.slane %v1652, 1
      %v1654 = vmax.f32 %v1652, %v1653
      %v1655 = vsel %vm1059, %v759, -inf
      %v1656 = vrot.slane %v1655, 4
      %v1657 = vmax.f32 %v1655, %v1656
      %v1658 = vrot.slane %v1657, 2
      %v1659 = vmax.f32 %v1657, %v1658
      %v1660 = vrot.slane %v1659, 1
      %v1661 = vmax.f32 %v1659, %v1660
      %v1662 = vsel %vm1059, %v758, -inf
      %v1663 = vrot.slane %v1662, 4
      %v1664 = vmax.f32 %v1662, %v1663
      %v1665 = vrot.slane %v1664, 2
      %v1666 = vmax.f32 %v1664, %v1665
      %v1667 = vrot.slane %v1666, 1
      %v1668 = vmax.f32 %v1666, %v1667
      %v1669 = vsel %vm1059, %v760, -inf
      %v1670 = vrot.slane %v1669, 4
      %v1671 = vmax.f32 %v1669, %v1670
      %v1672 = vrot.slane %v1671, 2
      %v1673 = vmax.f32 %v1671, %v1672
      %v1674 = vrot.slane %v1673, 1
      %v1675 = vmax.f32 %v1673, %v1674
      %v1676 = vsel %vm1059, %v768, -inf
      %v1677 = vrot.slane %v1676, 4
      %v1678 = vmax.f32 %v1676, %v1677
      %v1679 = vrot.slane %v1678, 2
      %v1680 = vmax.f32 %v1678, %v1679
      %v1681 = vrot.slane %v1680, 1
      %v1682 = vmax.f32 %v1680, %v1681
      %v1683 = vsel %vm1059, %v776, -inf
      %v1684 = vrot.slane %v1683, 4
      %v1685 = vmax.f32 %v1683, %v1684
      %v1686 = vrot.slane %v1685, 2
      %v1687 = vmax.f32 %v1685, %v1686
      %v1688 = vrot.slane %v1687, 1
      %v1689 = vmax.f32 %v1687, %v1688
      %v1690 = vsel %vm1059, %v775, -inf
      %v1691 = vrot.slane %v1690, 4
      %v1692 = vmax.f32 %v1690, %v1691
      %v1693 = vrot.slane %v1692, 2
      %v1694 = vmax.f32 %v1692, %v1693
      %v1695 = vrot.slane %v1694, 1
      %v1696 = vmax.f32 %v1694, %v1695
      %v1697 = vsel %vm1059, %v777, -inf
      %v1698 = vrot.slane %v1697, 4
      %v1699 = vmax.f32 %v1697, %v1698
      %v1700 = vrot.slane %v1699, 2
      %v1701 = vmax.f32 %v1699, %v1700
      %v1702 = vrot.slane %v1701, 1
      %v1703 = vmax.f32 %v1701, %v1702
      %v1704 = vsel %vm1059, %v785, -inf
      %v1705 = vrot.slane %v1704, 4
      %v1706 = vmax.f32 %v1704, %v1705
      %v1707 = vrot.slane %v1706, 2
      %v1708 = vmax.f32 %v1706, %v1707
      %v1709 = vrot.slane %v1708, 1
      %v1710 = vmax.f32 %v1708, %v1709
      %v1711 = vsel %vm1059, %v793, -inf
      %v1712 = vrot.slane %v1711, 4
      %v1713 = vmax.f32 %v1711, %v1712
      %v1714 = vrot.slane %v1713, 2
      %v1715 = vmax.f32 %v1713, %v1714
      %v1716 = vrot.slane %v1715, 1
      %v1717 = vmax.f32 %v1715, %v1716
      %v1718 = vsel %vm1059, %v792, -inf
      %v1719 = vrot.slane %v1718, 4
      %v1720 = vmax.f32 %v1718, %v1719
      %v1721 = vrot.slane %v1720, 2
      %v1722 = vmax.f32 %v1720, %v1721
      %v1723 = vrot.slane %v1722, 1
      %v1724 = vmax.f32 %v1722, %v1723
      %v1725 = vsel %vm1059, %v794, -inf
      %v1726 = vrot.slane %v1725, 4
      %v1727 = vmax.f32 %v1725, %v1726
      %v1728 = vrot.slane %v1727, 2
      %v1729 = vmax.f32 %v1727, %v1728
      %v1730 = vrot.slane %v1729, 1
      %v1731 = vmax.f32 %v1729, %v1730
      %v1732 = vsel %vm1059, %v802, -inf
      %v1733 = vrot.slane %v1732, 4
      %v1734 = vmax.f32 %v1732, %v1733
      %v1735 = vrot.slane %v1734, 2
      %v1736 = vmax.f32 %v1734, %v1735
      %v1737 = vrot.slane %v1736, 1
      %v1738 = vmax.f32 %v1736, %v1737
      %v1739 = vsel %vm1059, %v810, -inf
      %v1740 = vrot.slane %v1739, 4
      %v1741 = vmax.f32 %v1739, %v1740
      %v1742 = vrot.slane %v1741, 2
      %v1743 = vmax.f32 %v1741, %v1742
      %v1744 = vrot.slane %v1743, 1
      %v1745 = vmax.f32 %v1743, %v1744
      %v1746 = vsel %vm1059, %v809, -inf
      %v1747 = vrot.slane %v1746, 4
      %v1748 = vmax.f32 %v1746, %v1747
      %v1749 = vrot.slane %v1748, 2
      %v1750 = vmax.f32 %v1748, %v1749
      %v1751 = vrot.slane %v1750, 1
      %v1752 = vmax.f32 %v1750, %v1751
      %v1753 = vsel %vm1059, %v811, -inf
      %v1754 = vrot.slane %v1753, 4
      %v1755 = vmax.f32 %v1753, %v1754
      %v1756 = vrot.slane %v1755, 2
      %v1757 = vmax.f32 %v1755, %v1756
      %v1758 = vrot.slane %v1757, 1
      %v1759 = vmax.f32 %v1757, %v1758
      %v1760 = vsel %vm1059, %v819, -inf
      %v1761 = vrot.slane %v1760, 4
      %v1762 = vmax.f32 %v1760, %v1761
      %v1763 = vrot.slane %v1762, 2
      %v1764 = vmax.f32 %v1762, %v1763
      %v1765 = vrot.slane %v1764, 1
      %v1766 = vmax.f32 %v1764, %v1765
      %v1767 = vsel %vm1059, %v827, -inf
      %v1768 = vrot.slane %v1767, 4
      %v1769 = vmax.f32 %v1767, %v1768
      %v1770 = vrot.slane %v1769, 2
      %v1771 = vmax.f32 %v1769, %v1770
      %v1772 = vrot.slane %v1771, 1
      %v1773 = vmax.f32 %v1771, %v1772
      %v1774 = vsel %vm1059, %v826, -inf
      %v1775 = vrot.slane %v1774, 4
      %v1776 = vmax.f32 %v1774, %v1775
      %v1777 = vrot.slane %v1776, 2
      %v1778 = vmax.f32 %v1776, %v1777
      %v1779 = vrot.slane %v1778, 1
      %v1780 = vmax.f32 %v1778, %v1779
      %v1781 = vsel %vm1059, %v828, -inf
      %v1782 = vrot.slane %v1781, 4
      %v1783 = vmax.f32 %v1781, %v1782
      %v1784 = vrot.slane %v1783, 2
      %v1785 = vmax.f32 %v1783, %v1784
      %v1786 = vrot.slane %v1785, 1
      %v1787 = vmax.f32 %v1785, %v1786
      %v1788 = vsel %vm1059, %v836, -inf
      %v1789 = vrot.slane %v1788, 4
      %v1790 = vmax.f32 %v1788, %v1789
      %v1791 = vrot.slane %v1790, 2
      %v1792 = vmax.f32 %v1790, %v1791
      %v1793 = vrot.slane %v1792, 1
      %v1794 = vmax.f32 %v1792, %v1793
      %v1795 = vsel %vm1059, %v844, -inf
      %v1796 = vrot.slane %v1795, 4
      %v1797 = vmax.f32 %v1795, %v1796
      %v1798 = vrot.slane %v1797, 2
      %v1799 = vmax.f32 %v1797, %v1798
      %v1800 = vrot.slane %v1799, 1
      %v1801 = vmax.f32 %v1799, %v1800
      %v1802 = vsel %vm1059, %v843, -inf
      %v1803 = vrot.slane %v1802, 4
      %v1804 = vmax.f32 %v1802, %v1803
      %v1805 = vrot.slane %v1804, 2
      %v1806 = vmax.f32 %v1804, %v1805
      %v1807 = vrot.slane %v1806, 1
      %v1808 = vmax.f32 %v1806, %v1807
      %v1809 = vsel %vm1059, %v845, -inf
      %v1810 = vrot.slane %v1809, 4
      %v1811 = vmax.f32 %v1809, %v1810
      %v1812 = vrot.slane %v1811, 2
      %v1813 = vmax.f32 %v1811, %v1812
      %v1814 = vrot.slane %v1813, 1
      %v1815 = vmax.f32 %v1813, %v1814
      %v1816 = vsel %vm1059, %v853, -inf
      %v1817 = vrot.slane %v1816, 4
      %v1818 = vmax.f32 %v1816, %v1817
      %v1819 = vrot.slane %v1818, 2
      %v1820 = vmax.f32 %v1818, %v1819
      %v1821 = vrot.slane %v1820, 1
      %v1822 = vmax.f32 %v1820, %v1821
      %v1823 = vsel %vm1059, %v861, -inf
      %v1824 = vrot.slane %v1823, 4
      %v1825 = vmax.f32 %v1823, %v1824
      %v1826 = vrot.slane %v1825, 2
      %v1827 = vmax.f32 %v1825, %v1826
      %v1828 = vrot.slane %v1827, 1
      %v1829 = vmax.f32 %v1827, %v1828
      %v1830 = vsel %vm1059, %v860, -inf
      %v1831 = vrot.slane %v1830, 4
      %v1832 = vmax.f32 %v1830, %v1831
      %v1833 = vrot.slane %v1832, 2
      %v1834 = vmax.f32 %v1832, %v1833
      %v1835 = vrot.slane %v1834, 1
      %v1836 = vmax.f32 %v1834, %v1835
      %v1837 = vsel %vm1059, %v862, -inf
      %v1838 = vrot.slane %v1837, 4
      %v1839 = vmax.f32 %v1837, %v1838
      %v1840 = vrot.slane %v1839, 2
      %v1841 = vmax.f32 %v1839, %v1840
      %v1842 = vrot.slane %v1841, 1
      %v1843 = vmax.f32 %v1841, %v1842
      %v1844 = vsel %vm1059, %v870, -inf
      %v1845 = vrot.slane %v1844, 4
      %v1846 = vmax.f32 %v1844, %v1845
      %v1847 = vrot.slane %v1846, 2
      %v1848 = vmax.f32 %v1846, %v1847
      %v1849 = vrot.slane %v1848, 1
      %v1850 = vmax.f32 %v1848, %v1849
      %v1851 = vsel %vm1059, %v878, -inf
      %v1852 = vrot.slane %v1851, 4
      %v1853 = vmax.f32 %v1851, %v1852
      %v1854 = vrot.slane %v1853, 2
      %v1855 = vmax.f32 %v1853, %v1854
      %v1856 = vrot.slane %v1855, 1
      %v1857 = vmax.f32 %v1855, %v1856
      %v1858 = vsel %vm1059, %v877, -inf
      %v1859 = vrot.slane %v1858, 4
      %v1860 = vmax.f32 %v1858, %v1859
      %v1861 = vrot.slane %v1860, 2
      %v1862 = vmax.f32 %v1860, %v1861
      %v1863 = vrot.slane %v1862, 1
      %v1864 = vmax.f32 %v1862, %v1863
      %v1865 = vsel %vm1059, %v879, -inf
      %v1866 = vrot.slane %v1865, 4
      %v1867 = vmax.f32 %v1865, %v1866
      %v1868 = vrot.slane %v1867, 2
      %v1869 = vmax.f32 %v1867, %v1868
      %v1870 = vrot.slane %v1869, 1
      %v1871 = vmax.f32 %v1869, %v1870
      %v1872 = vsel %vm1059, %v887, -inf
      %v1873 = vrot.slane %v1872, 4
      %v1874 = vmax.f32 %v1872, %v1873
      %v1875 = vrot.slane %v1874, 2
      %v1876 = vmax.f32 %v1874, %v1875
      %v1877 = vrot.slane %v1876, 1
      %v1878 = vmax.f32 %v1876, %v1877
      %v1879 = vsel %vm1059, %v895, -inf
      %v1880 = vrot.slane %v1879, 4
      %v1881 = vmax.f32 %v1879, %v1880
      %v1882 = vrot.slane %v1881, 2
      %v1883 = vmax.f32 %v1881, %v1882
      %v1884 = vrot.slane %v1883, 1
      %v1885 = vmax.f32 %v1883, %v1884
      %v1886 = vsel %vm1059, %v894, -inf
      %v1887 = vrot.slane %v1886, 4
      %v1888 = vmax.f32 %v1886, %v1887
      %v1889 = vrot.slane %v1888, 2
      %v1890 = vmax.f32 %v1888, %v1889
      %v1891 = vrot.slane %v1890, 1
      %v1892 = vmax.f32 %v1890, %v1891
      %v1893 = vsel %vm1059, %v896, -inf
      %v1894 = vrot.slane %v1893, 4
      %v1895 = vmax.f32 %v1893, %v1894
      %v1896 = vrot.slane %v1895, 2
      %v1897 = vmax.f32 %v1895, %v1896
      %v1898 = vrot.slane %v1897, 1
      %v1899 = vmax.f32 %v1897, %v1898
      %v1900 = vsel %vm1059, %v904, -inf
      %v1901 = vrot.slane %v1900, 4
      %v1902 = vmax.f32 %v1900, %v1901
      %v1903 = vrot.slane %v1902, 2
      %v1904 = vmax.f32 %v1902, %v1903
      %v1905 = vrot.slane %v1904, 1
      %v1906 = vmax.f32 %v1904, %v1905
      %v1907 = vsel %vm1059, %v912, -inf
      %v1908 = vrot.slane %v1907, 4
      %v1909 = vmax.f32 %v1907, %v1908
      %v1910 = vrot.slane %v1909, 2
      %v1911 = vmax.f32 %v1909, %v1910
      %v1912 = vrot.slane %v1911, 1
      %v1913 = vmax.f32 %v1911, %v1912
      %v1914 = vsel %vm1059, %v911, -inf
      %v1915 = vrot.slane %v1914, 4
      %v1916 = vmax.f32 %v1914, %v1915
      %v1917 = vrot.slane %v1916, 2
      %v1918 = vmax.f32 %v1916, %v1917
      %v1919 = vrot.slane %v1918, 1
      %v1920 = vmax.f32 %v1918, %v1919
      %v1921 = vsel %vm1059, %v913, -inf
      %v1922 = vrot.slane %v1921, 4
      %v1923 = vmax.f32 %v1921, %v1922
      %v1924 = vrot.slane %v1923, 2
      %v1925 = vmax.f32 %v1923, %v1924
      %v1926 = vrot.slane %v1925, 1
      %v1927 = vmax.f32 %v1925, %v1926
      %v1928 = vsel %vm1059, %v921, -inf
      %v1929 = vrot.slane %v1928, 4
      %v1930 = vmax.f32 %v1928, %v1929
      %v1931 = vrot.slane %v1930, 2
      %v1932 = vmax.f32 %v1930, %v1931
      %v1933 = vrot.slane %v1932, 1
      %v1934 = vmax.f32 %v1932, %v1933
      %v1935 = vsel %vm1059, %v929, -inf
      %v1936 = vrot.slane %v1935, 4
      %v1937 = vmax.f32 %v1935, %v1936
      %v1938 = vrot.slane %v1937, 2
      %v1939 = vmax.f32 %v1937, %v1938
      %v1940 = vrot.slane %v1939, 1
      %v1941 = vmax.f32 %v1939, %v1940
      %v1942 = vsel %vm1059, %v928, -inf
      %v1943 = vrot.slane %v1942, 4
      %v1944 = vmax.f32 %v1942, %v1943
      %v1945 = vrot.slane %v1944, 2
      %v1946 = vmax.f32 %v1944, %v1945
      %v1947 = vrot.slane %v1946, 1
      %v1948 = vmax.f32 %v1946, %v1947
      %v1949 = vsel %vm1059, %v930, -inf
      %v1950 = vrot.slane %v1949, 4
      %v1951 = vmax.f32 %v1949, %v1950
      %v1952 = vrot.slane %v1951, 2
      %v1953 = vmax.f32 %v1951, %v1952
      %v1954 = vrot.slane %v1953, 1
      %v1955 = vmax.f32 %v1953, %v1954
      %vm1956 = vcmask 64512
      %v1957 = vsel %vm1956, %v1066, -inf
      %v1958 = vsel %vm1956, %v1122, -inf
      %v1959 = vmax.f32 %v1957, %v1958
      %v1960 = vsel %vm1956, %v1073, -inf
      %v1961 = vsel %vm1956, %v1129, -inf
      %v1962 = vmax.f32 %v1960, %v1961
      %v1963 = vsel %vm1956, %v1080, -inf
      %v1964 = vsel %vm1956, %v1136, -inf
      %v1965 = vmax.f32 %v1963, %v1964
      %v1966 = vsel %vm1956, %v1087, -inf
      %v1967 = vsel %vm1956, %v1143, -inf
      %v1968 = vmax.f32 %v1966, %v1967
      %v1969 = vsel %vm1956, %v1094, -inf
      %v1970 = vsel %vm1956, %v1150, -inf
      %v1971 = vmax.f32 %v1969, %v1970
      %v1972 = vsel %vm1956, %v1101, -inf
      %v1973 = vsel %vm1956, %v1157, -inf
      %v1974 = vmax.f32 %v1972, %v1973
      %v1975 = vsel %vm1956, %v1108, -inf
      %v1976 = vsel %vm1956, %v1164, -inf
      %v1977 = vmax.f32 %v1975, %v1976
      %v1978 = vsel %vm1956, %v1115, -inf
      %v1979 = vsel %vm1956, %v1171, -inf
      %v1980 = vmax.f32 %v1978, %v1979
      %v1981 = vsel %vm1956, %v1178, -inf
      %v1982 = vsel %vm1956, %v1234, -inf
      %v1983 = vmax.f32 %v1981, %v1982
      %v1984 = vsel %vm1956, %v1185, -inf
      %v1985 = vsel %vm1956, %v1241, -inf
      %v1986 = vmax.f32 %v1984, %v1985
      %v1987 = vsel %vm1956, %v1192, -inf
      %v1988 = vsel %vm1956, %v1248, -inf
      %v1989 = vmax.f32 %v1987, %v1988
      %v1990 = vsel %vm1956, %v1199, -inf
      %v1991 = vsel %vm1956, %v1255, -inf
      %v1992 = vmax.f32 %v1990, %v1991
      %v1993 = vsel %vm1956, %v1206, -inf
      %v1994 = vsel %vm1956, %v1262, -inf
      %v1995 = vmax.f32 %v1993, %v1994
      %v1996 = vsel %vm1956, %v1213, -inf
      %v1997 = vsel %vm1956, %v1269, -inf
      %v1998 = vmax.f32 %v1996, %v1997
      %v1999 = vsel %vm1956, %v1220, -inf
      %v2000 = vsel %vm1956, %v1276, -inf
      %v2001 = vmax.f32 %v1999, %v2000
      %v2002 = vsel %vm1956, %v1227, -inf
      %v2003 = vsel %vm1956, %v1283, -inf
      %v2004 = vmax.f32 %v2002, %v2003
      %v2005 = vsel %vm1956, %v1290, -inf
      %v2006 = vsel %vm1956, %v1346, -inf
      %v2007 = vmax.f32 %v2005, %v2006
      %v2008 = vsel %vm1956, %v1297, -inf
      %v2009 = vsel %vm1956, %v1353, -inf
      %v2010 = vmax.f32 %v2008, %v2009
      %v2011 = vsel %vm1956, %v1304, -inf
      %v2012 = vsel %vm1956, %v1360, -inf
      %v2013 = vmax.f32 %v2011, %v2012
      %v2014 = vsel %vm1956, %v1311, -inf
      %v2015 = vsel %vm1956, %v1367, -inf
      %v2016 = vmax.f32 %v2014, %v2015
      %v2017 = vsel %vm1956, %v1318, -inf
      %v2018 = vsel %vm1956, %v1374, -inf
      %v2019 = vmax.f32 %v2017, %v2018
      %v2020 = vsel %vm1956, %v1325, -inf
      %v2021 = vsel %vm1956, %v1381, -inf
      %v2022 = vmax.f32 %v2020, %v2021
      %v2023 = vsel %vm1956, %v1332, -inf
      %v2024 = vsel %vm1956, %v1388, -inf
      %v2025 = vmax.f32 %v2023, %v2024
      %v2026 = vsel %vm1956, %v1339, -inf
      %v2027 = vsel %vm1956, %v1395, -inf
      %v2028 = vmax.f32 %v2026, %v2027
      %v2029 = vsel %vm1956, %v1402, -inf
      %v2030 = vsel %vm1956, %v1458, -inf
      %v2031 = vmax.f32 %v2029, %v2030
      %v2032 = vsel %vm1956, %v1409, -inf
      %v2033 = vsel %vm1956, %v1465, -inf
      %v2034 = vmax.f32 %v2032, %v2033
      %v2035 = vsel %vm1956, %v1416, -inf
      %v2036 = vsel %vm1956, %v1472, -inf
      %v2037 = vmax.f32 %v2035, %v2036
      %v2038 = vsel %vm1956, %v1423, -inf
      %v2039 = vsel %vm1956, %v1479, -inf
      %v2040 = vmax.f32 %v2038, %v2039
      %v2041 = vsel %vm1956, %v1430, -inf
      %v2042 = vsel %vm1956, %v1486, -inf
      %v2043 = vmax.f32 %v2041, %v2042
      %v2044 = vsel %vm1956, %v1437, -inf
      %v2045 = vsel %vm1956, %v1493, -inf
      %v2046 = vmax.f32 %v2044, %v2045
      %v2047 = vsel %vm1956, %v1444, -inf
      %v2048 = vsel %vm1956, %v1500, -inf
      %v2049 = vmax.f32 %v2047, %v2048
      %v2050 = vsel %vm1956, %v1451, -inf
      %v2051 = vsel %vm1956, %v1507, -inf
      %v2052 = vmax.f32 %v2050, %v2051
      %v2053 = vsel %vm1956, %v1514, -inf
      %v2054 = vsel %vm1956, %v1570, -inf
      %v2055 = vmax.f32 %v2053, %v2054
      %v2056 = vsel %vm1956, %v1521, -inf
      %v2057 = vsel %vm1956, %v1577, -inf
      %v2058 = vmax.f32 %v2056, %v2057
      %v2059 = vsel %vm1956, %v1528, -inf
      %v2060 = vsel %vm1956, %v1584, -inf
      %v2061 = vmax.f32 %v2059, %v2060
      %v2062 = vsel %vm1956, %v1535, -inf
      %v2063 = vsel %vm1956, %v1591, -inf
      %v2064 = vmax.f32 %v2062, %v2063
      %v2065 = vsel %vm1956, %v1542, -inf
      %v2066 = vsel %vm1956, %v1598, -inf
      %v2067 = vmax.f32 %v2065, %v2066
      %v2068 = vsel %vm1956, %v1549, -inf
      %v2069 = vsel %vm1956, %v1605, -inf
      %v2070 = vmax.f32 %v2068, %v2069
      %v2071 = vsel %vm1956, %v1556, -inf
      %v2072 = vsel %vm1956, %v1612, -inf
      %v2073 = vmax.f32 %v2071, %v2072
      %v2074 = vsel %vm1956, %v1563, -inf
      %v2075 = vsel %vm1956, %v1619, -inf
      %v2076 = vmax.f32 %v2074, %v2075
      %v2077 = vsel %vm1956, %v1626, -inf
      %v2078 = vsel %vm1956, %v1682, -inf
      %v2079 = vmax.f32 %v2077, %v2078
      %v2080 = vsel %vm1956, %v1633, -inf
      %v2081 = vsel %vm1956, %v1689, -inf
      %v2082 = vmax.f32 %v2080, %v2081
      %v2083 = vsel %vm1956, %v1640, -inf
      %v2084 = vsel %vm1956, %v1696, -inf
      %v2085 = vmax.f32 %v2083, %v2084
      %v2086 = vsel %vm1956, %v1647, -inf
      %v2087 = vsel %vm1956, %v1703, -inf
      %v2088 = vmax.f32 %v2086, %v2087
      %v2089 = vsel %vm1956, %v1654, -inf
      %v2090 = vsel %vm1956, %v1710, -inf
      %v2091 = vmax.f32 %v2089, %v2090
      %v2092 = vsel %vm1956, %v1661, -inf
      %v2093 = vsel %vm1956, %v1717, -inf
      %v2094 = vmax.f32 %v2092, %v2093
      %v2095 = vsel %vm1956, %v1668, -inf
      %v2096 = vsel %vm1956, %v1724, -inf
      %v2097 = vmax.f32 %v2095, %v2096
      %v2098 = vsel %vm1956, %v1675, -inf
      %v2099 = vsel %vm1956, %v1731, -inf
      %v2100 = vmax.f32 %v2098, %v2099
      %v2101 = vsel %vm1956, %v1738, -inf
      %v2102 = vsel %vm1956, %v1794, -inf
      %v2103 = vmax.f32 %v2101, %v2102
      %v2104 = vsel %vm1956, %v1745, -inf
      %v2105 = vsel %vm1956, %v1801, -inf
      %v2106 = vmax.f32 %v2104, %v2105
      %v2107 = vsel %vm1956, %v1752, -inf
      %v2108 = vsel %vm1956, %v1808, -inf
      %v2109 = vmax.f32 %v2107, %v2108
      %v2110 = vsel %vm1956, %v1759, -inf
      %v2111 = vsel %vm1956, %v1815, -inf
      %v2112 = vmax.f32 %v2110, %v2111
      %v2113 = vsel %vm1956, %v1766, -inf
      %v2114 = vsel %vm1956, %v1822, -inf
      %v2115 = vmax.f32 %v2113, %v2114
      %v2116 = vsel %vm1956, %v1773, -inf
      %v2117 = vsel %vm1956, %v1829, -inf
      %v2118 = vmax.f32 %v2116, %v2117
      %v2119 = vsel %vm1956, %v1780, -inf
      %v2120 = vsel %vm1956, %v1836, -inf
      %v2121 = vmax.f32 %v2119, %v2120
      %v2122 = vsel %vm1956, %v1787, -inf
      %v2123 = vsel %vm1956, %v1843, -inf
      %v2124 = vmax.f32 %v2122, %v2123
      %v2125 = vsel %vm1956, %v1850, -inf
      %v2126 = vsel %vm1956, %v1906, -inf
      %v2127 = vmax.f32 %v2125, %v2126
      %v2128 = vsel %vm1956, %v1857, -inf
      %v2129 = vsel %vm1956, %v1913, -inf
      %v2130 = vmax.f32 %v2128, %v2129
      %v2131 = vsel %vm1956, %v1864, -inf
      %v2132 = vsel %vm1956, %v1920, -inf
      %v2133 = vmax.f32 %v2131, %v2132
      %v2134 = vsel %vm1956, %v1871, -inf
      %v2135 = vsel %vm1956, %v1927, -inf
      %v2136 = vmax.f32 %v2134, %v2135
      %v2137 = vsel %vm1956, %v1878, -inf
      %v2138 = vsel %vm1956, %v1934, -inf
      %v2139 = vmax.f32 %v2137, %v2138
      %v2140 = vsel %vm1956, %v1885, -inf
      %v2141 = vsel %vm1956, %v1941, -inf
      %v2142 = vmax.f32 %v2140, %v2141
      %v2143 = vsel %vm1956, %v1892, -inf
      %v2144 = vsel %vm1956, %v1948, -inf
      %v2145 = vmax.f32 %v2143, %v2144
      %v2146 = vsel %vm1956, %v1899, -inf
      %v2147 = vsel %vm1956, %v1955, -inf
      %v2148 = vmax.f32 %v2146, %v2147
      %vm2213 = vcmask 1041409
      %v2214 = vsel %vm2213, %v1962, %v1959
      %vm2215 = vcmask 1042434
      %v2216 = vsel %vm2215, %v1965, %v2214
      %vm2217 = vcmask 1043459
      %v2218 = vsel %vm2217, %v1968, %v2216
      %vm2219 = vcmask 1044484
      %v2220 = vsel %vm2219, %v1971, %v2218
      %vm2221 = vcmask 1045509
      %v2222 = vsel %vm2221, %v1974, %v2220
      %vm2223 = vcmask 1046534
      %v2224 = vsel %vm2223, %v1977, %v2222
      %vm2225 = vcmask 1047559
      %v2226 = vsel %vm2225, %v1980, %v2224
      %v2227 = vsel %vm2213, %v1986, %v1983
      %v2228 = vsel %vm2215, %v1989, %v2227
      %v2229 = vsel %vm2217, %v1992, %v2228
      %v2230 = vsel %vm2219, %v1995, %v2229
      %v2231 = vsel %vm2221, %v1998, %v2230
      %v2232 = vsel %vm2223, %v2001, %v2231
      %v2233 = vsel %vm2225, %v2004, %v2232
      %v2234 = vsel %vm2213, %v2010, %v2007
      %v2235 = vsel %vm2215, %v2013, %v2234
      %v2236 = vsel %vm2217, %v2016, %v2235
      %v2237 = vsel %vm2219, %v2019, %v2236
      %v2238 = vsel %vm2221, %v2022, %v2237
      %v2239 = vsel %vm2223, %v2025, %v2238
      %v2240 = vsel %vm2225, %v2028, %v2239
      %v2241 = vsel %vm2213, %v2034, %v2031
      %v2242 = vsel %vm2215, %v2037, %v2241
      %v2243 = vsel %vm2217, %v2040, %v2242
      %v2244 = vsel %vm2219, %v2043, %v2243
      %v2245 = vsel %vm2221, %v2046, %v2244
      %v2246 = vsel %vm2223, %v2049, %v2245
      %v2247 = vsel %vm2225, %v2052, %v2246
      %v2248 = vsel %vm2213, %v2058, %v2055
      %v2249 = vsel %vm2215, %v2061, %v2248
      %v2250 = vsel %vm2217, %v2064, %v2249
      %v2251 = vsel %vm2219, %v2067, %v2250
      %v2252 = vsel %vm2221, %v2070, %v2251
      %v2253 = vsel %vm2223, %v2073, %v2252
      %v2254 = vsel %vm2225, %v2076, %v2253
      %v2255 = vsel %vm2213, %v2082, %v2079
      %v2256 = vsel %vm2215, %v2085, %v2255
      %v2257 = vsel %vm2217, %v2088, %v2256
      %v2258 = vsel %vm2219, %v2091, %v2257
      %v2259 = vsel %vm2221, %v2094, %v2258
      %v2260 = vsel %vm2223, %v2097, %v2259
      %v2261 = vsel %vm2225, %v2100, %v2260
      %v2262 = vsel %vm2213, %v2106, %v2103
      %v2263 = vsel %vm2215, %v2109, %v2262
      %v2264 = vsel %vm2217, %v2112, %v2263
      %v2265 = vsel %vm2219, %v2115, %v2264
      %v2266 = vsel %vm2221, %v2118, %v2265
      %v2267 = vsel %vm2223, %v2121, %v2266
      %v2268 = vsel %vm2225, %v2124, %v2267
      %v2269 = vsel %vm2213, %v2130, %v2127
      %v2270 = vsel %vm2215, %v2133, %v2269
      %v2271 = vsel %vm2217, %v2136, %v2270
      %v2272 = vsel %vm2219, %v2139, %v2271
      %v2273 = vsel %vm2221, %v2142, %v2272
      %v2274 = vsel %vm2223, %v2145, %v2273
      %v2275 = vsel %vm2225, %v2148, %v2274
      %2284 = vst.msk [vmem:[%s211] sm:$0xff] %vm1956, %v2226
      %2285 = vst.msk [vmem:[%s211 + $0x8] sm:$0xff] %vm1956, %v2233
      %2286 = vst.msk [vmem:[%s211 + $0x10] sm:$0xff] %vm1956, %v2240
      %2287 = vst.msk [vmem:[%s211 + $0x18] sm:$0xff] %vm1956, %v2247
      %2288 = vst.msk [vmem:[%s211 + $0x20] sm:$0xff] %vm1956, %v2254
      %2289 = vst.msk [vmem:[%s211 + $0x28] sm:$0xff] %vm1956, %v2261
      %2290 = vst.msk [vmem:[%s211 + $0x30] sm:$0xff] %vm1956, %v2268
      %2291 = vst.msk [vmem:[%s211 + $0x38] sm:$0xff] %vm1956, %v2275
      %s2292 = smul.u32 8, %s19
      %p2293 = scmp.lt.s32.totalorder %s18, 1
      %s2294 = scalar_select %p2293, %s18, 1
      %p2295 = scmp.lt.s32.totalorder %s2292, 7
      %s2296 = scalar_select %p2295, %s2292, 7
      %s2297 = smul.addr %s2294, 8
      %s2298 = sadd.s32 %s2296, %s2297
      %s2299 = smul.addr %s2298, 8
      %s2300 = scalar_lea.vmem %s3, %s2299
      // Predicated region
      $region33: #{conv_unit_forward.3} parent=31 // pred_check
        %p2301 = pneg %p116
      $region34: #{conv_unit_forward.3} parent=31 // pred_check_branch
        %2303 = sbr.rel (%p2301) target = $region36
      $region35: #{conv_unit_forward.3} parent=31 // pred_region
        %s2304 = smul.u32 8, %s19
      $region36: #{conv_unit_forward.3} parent=31 // pred_fallthru
        _
    $region32: #{conv_unit_forward.3} parent=5 // pred_fallthru
      _
    %p2305 = scmp.le.s32.totalorder 2, %s9
    // Predicated region
    $region37: #{conv_unit_forward.3} parent=5 // pred_check
      %p2306 = pneg %p2305
    $region38: #{conv_unit_forward.3} parent=5 // pred_check_branch
      %2308 = sbr.rel (%p2306) target = $region40
    $region39: #{conv_unit_forward.3} parent=5 // pred_region
      %s2309 = ssub.s32 %s9, 2
      // Predicated region
      $region41: #{conv_unit_forward.3} parent=39 // pred_check
        %p2310 = pneg %p122
      $region42: #{conv_unit_forward.3} parent=39 // pred_check_branch
        %2312 = sbr.rel (%p2310) target = $region44
      $region43: #{conv_unit_forward.3} parent=39 // pred_region
        %s2313 = smul.u32 8, %s21
        %p2314 = scmp.lt.s32.totalorder %s20, 1
        %s2315 = scalar_select %p2314, %s20, 1
        %p2316 = scmp.lt.s32.totalorder %s2313, 7
        %s2317 = scalar_select %p2316, %s2313, 7
        %s2318 = smul.addr %s2315, 8
        %s2319 = sadd.s32 %s2317, %s2318
        %s2320 = smul.addr %s2319, 8
        %s2321 = scalar_lea.vmem %s3, %s2320
      $region44: #{conv_unit_forward.3} parent=39 // pred_fallthru
        _
    $region40: #{conv_unit_forward.3} parent=5 // pred_fallthru
      _
  $region6: #{conv_unit_forward.3} parent=0 // loop_footer
    %s13 = sadd.s32 1, %s9
  $region7: #{conv_unit_forward.3} parent=0 // loop_footer_branch
    %8 = sbr.rel target = $region3
  $region8: #{conv_unit_forward.3} parent=0 // loop_exit
    _

// kernel: conv_unit_forward.2
$region0: #{conv_unit_forward.2}
  #allocation0 [shape = 'u32[]', space=smem, size = 0x4, offset = 0x4, fixed_abs, tag = 'smem constant byte address 0x4 - core index']
  #allocation1 [shape = 'u32[144,128]{1,0:T(1,128)}', space=vmem, size = 0x12000, scoped, tag = 'internal scratch']
  %s0 = inlined_call_operand.vmem [shape: f32[512,36], index: 0, kind: input, shape index: {}]
  %s1 = inlined_call_operand.vmem [shape: f32[36,8], index: 1, kind: input, shape index: {}]
  %s2 = inlined_call_operand.vmem [shape: f32[512,8], index: 2, kind: output, shape index: {0}]
  %s3 = inlined_call_operand.vmem [shape: f32[8,16], index: 3, kind: output, shape index: {1}]
  %4 = xla_tuple %s2, %s3
  %s5 = sld [smem:[#allocation0]]
  $region26: #{conv_unit_forward.2} parent=0
    _
  %s7 = ssub.s32 1, %s5
  %s8 = scalar_select 0, %s7, %s5
  // Predicated region
  $region2: #{conv_unit_forward.2} parent=0 // pred_check
    _
  $region3: #{conv_unit_forward.2} parent=0 // pred_check_branch
    %10 = sbr.rel (0) target = $region5
  $region4: #{conv_unit_forward.2} parent=0 // pred_region
    _
  $region5: #{conv_unit_forward.2} parent=0 // pred_fallthru
    _
  // Predicated region
  $region6: #{conv_unit_forward.2} parent=0 // pred_check
    _
  $region7: #{conv_unit_forward.2} parent=0 // pred_check_branch
    %12 = sbr.rel (0) target = $region9
  $region8: #{conv_unit_forward.2} parent=0 // pred_region
    _
  $region9: #{conv_unit_forward.2} parent=0 // pred_fallthru
    _
  %v13 = vld [vmem:[%s0] sm:$0xff]
  %v14 = vld [vmem:[%s0 + $0x8] sm:$0xff]
  %v15 = vld [vmem:[%s0 + $0x10] sm:$0xff]
  %v16 = vld [vmem:[%s0 + $0x18] sm:$0xff]
  %v17 = vld [vmem:[%s0 + $0x20] sm:$0xff]
  %v18 = vld [vmem:[%s0 + $0x28] sm:$0xff]
  %v19 = vld [vmem:[%s0 + $0x30] sm:$0xff]
  %v20 = vld [vmem:[%s0 + $0x38] sm:$0xff]
  %v21 = vld [vmem:[%s0 + $0x40] sm:$0xff]
  %v22 = vld [vmem:[%s0 + $0x48] sm:$0xff]
  %v23 = vld [vmem:[%s0 + $0x50] sm:$0xff]
  %v24 = vld [vmem:[%s0 + $0x58] sm:$0xff]
  %v25 = vld [vmem:[%s0 + $0x60] sm:$0xff]
  %v26 = vld [vmem:[%s0 + $0x68] sm:$0xff]
  %v27 = vld [vmem:[%s0 + $0x70] sm:$0xff]
  %v28 = vld [vmem:[%s0 + $0x78] sm:$0xff]
  %v29 = vld [vmem:[%s0 + $0x80] sm:$0xff]
  %v30 = vld [vmem:[%s0 + $0x88] sm:$0xff]
  %v31 = vld [vmem:[%s0 + $0x90] sm:$0xff]
  %v32 = vld [vmem:[%s0 + $0x98] sm:$0xff]
  %v33 = vld [vmem:[%s0 + $0xa0] sm:$0xff]
  %v34 = vld [vmem:[%s0 + $0xa8] sm:$0xff]
  %v35 = vld [vmem:[%s0 + $0xb0] sm:$0xff]
  %v36 = vld [vmem:[%s0 + $0xb8] sm:$0xff]
  %v37 = vld [vmem:[%s0 + $0xc0] sm:$0xff]
  %v38 = vld [vmem:[%s0 + $0xc8] sm:$0xff]
  %v39 = vld [vmem:[%s0 + $0xd0] sm:$0xff]
  %v40 = vld [vmem:[%s0 + $0xd8] sm:$0xff]
  %v41 = vld [vmem:[%s0 + $0xe0] sm:$0xff]
  %v42 = vld [vmem:[%s0 + $0xe8] sm:$0xff]
  %v43 = vld [vmem:[%s0 + $0xf0] sm:$0xff]
  %v44 = vld [vmem:[%s0 + $0xf8] sm:$0xff]
  %v45 = vld [vmem:[%s0 + $0x100] sm:$0xff]
  %v46 = vld [vmem:[%s0 + $0x108] sm:$0xff]
  %v47 = vld [vmem:[%s0 + $0x110] sm:$0xff]
  %v48 = vld [vmem:[%s0 + $0x118] sm:$0xff]
  %v49 = vld [vmem:[%s0 + $0x120] sm:$0xff]
  %v50 = vld [vmem:[%s0 + $0x128] sm:$0xff]
  %v51 = vld [vmem:[%s0 + $0x130] sm:$0xff]
  %v52 = vld [vmem:[%s0 + $0x138] sm:$0xff]
  %v53 = vld [vmem:[%s0 + $0x140] sm:$0xff]
  %v54 = vld [vmem:[%s0 + $0x148] sm:$0xff]
  %v55 = vld [vmem:[%s0 + $0x150] sm:$0xff]
  %v56 = vld [vmem:[%s0 + $0x158] sm:$0xff]
  %v57 = vld [vmem:[%s0 + $0x160] sm:$0xff]
  %v58 = vld [vmem:[%s0 + $0x168] sm:$0xff]
  %v59 = vld [vmem:[%s0 + $0x170] sm:$0xff]
  %v60 = vld [vmem:[%s0 + $0x178] sm:$0xff]
  %v61 = vld [vmem:[%s0 + $0x180] sm:$0xff]
  %v62 = vld [vmem:[%s0 + $0x188] sm:$0xff]
  %v63 = vld [vmem:[%s0 + $0x190] sm:$0xff]
  %v64 = vld [vmem:[%s0 + $0x198] sm:$0xff]
  %v65 = vld [vmem:[%s0 + $0x1a0] sm:$0xff]
  %v66 = vld [vmem:[%s0 + $0x1a8] sm:$0xff]
  %v67 = vld [vmem:[%s0 + $0x1b0] sm:$0xff]
  %v68 = vld [vmem:[%s0 + $0x1b8] sm:$0xff]
  %v69 = vld [vmem:[%s0 + $0x1c0] sm:$0xff]
  %v70 = vld [vmem:[%s0 + $0x1c8] sm:$0xff]
  %v71 = vld [vmem:[%s0 + $0x1d0] sm:$0xff]
  %v72 = vld [vmem:[%s0 + $0x1d8] sm:$0xff]
  %v73 = vld [vmem:[%s0 + $0x1e0] sm:$0xff]
  %v74 = vld [vmem:[%s0 + $0x1e8] sm:$0xff]
  %v75 = vld [vmem:[%s0 + $0x1f0] sm:$0xff]
  %v76 = vld [vmem:[%s0 + $0x1f8] sm:$0xff]
  %v77 = vld [vmem:[%s1] sm:$0xff]
  %v78 = vld [vmem:[%s1 + $0x8] sm:$0xff]
  %v79 = vld [vmem:[%s1 + $0x10] sm:$0xff]
  %v80 = vld [vmem:[%s1 + $0x18] sm:$0xff]
  %v81 = vld [vmem:[%s1 + $0x20] sm:$0xf]
  %vm82 = vcmask 293888
  %v84 = vsel %vm82, %v13, 0
  %v87 = vsel %vm82, %v14, 0
  %v90 = vsel %vm82, %v15, 0
  %v93 = vsel %vm82, %v16, 0
  %v96 = vsel %vm82, %v17, 0
  %v99 = vsel %vm82, %v18, 0
  %v102 = vsel %vm82, %v19, 0
  %v105 = vsel %vm82, %v20, 0
  %v108 = vsel %vm82, %v21, 0
  %v111 = vsel %vm82, %v22, 0
  %v114 = vsel %vm82, %v23, 0
  %v117 = vsel %vm82, %v24, 0
  %v120 = vsel %vm82, %v25, 0
  %v123 = vsel %vm82, %v26, 0
  %v126 = vsel %vm82, %v27, 0
  %v129 = vsel %vm82, %v28, 0
  %v132 = vsel %vm82, %v29, 0
  %v135 = vsel %vm82, %v30, 0
  %v138 = vsel %vm82, %v31, 0
  %v141 = vsel %vm82, %v32, 0
  %v144 = vsel %vm82, %v33, 0
  %v147 = vsel %vm82, %v34, 0
  %v150 = vsel %vm82, %v35, 0
  %v153 = vsel %vm82, %v36, 0
  %v156 = vsel %vm82, %v37, 0
  %v159 = vsel %vm82, %v38, 0
  %v162 = vsel %vm82, %v39, 0
  %v165 = vsel %vm82, %v40, 0
  %v168 = vsel %vm82, %v41, 0
  %v171 = vsel %vm82, %v42, 0
  %v174 = vsel %vm82, %v43, 0
  %v177 = vsel %vm82, %v44, 0
  %v180 = vsel %vm82, %v45, 0
  %v183 = vsel %vm82, %v46, 0
  %v186 = vsel %vm82, %v47, 0
  %v189 = vsel %vm82, %v48, 0
  %v192 = vsel %vm82, %v49, 0
  %v195 = vsel %vm82, %v50, 0
  %v198 = vsel %vm82, %v51, 0
  %v201 = vsel %vm82, %v52, 0
  %v204 = vsel %vm82, %v53, 0
  %v207 = vsel %vm82, %v54, 0
  %v210 = vsel %vm82, %v55, 0
  %v213 = vsel %vm82, %v56, 0
  %v216 = vsel %vm82, %v57, 0
  %v219 = vsel %vm82, %v58, 0
  %v222 = vsel %vm82, %v59, 0
  %v225 = vsel %vm82, %v60, 0
  %v228 = vsel %vm82, %v61, 0
  %v231 = vsel %vm82, %v62, 0
  %v234 = vsel %vm82, %v63, 0
  %v237 = vsel %vm82, %v64, 0
  %v240 = vsel %vm82, %v65, 0
  %v243 = vsel %vm82, %v66, 0
  %v246 = vsel %vm82, %v67, 0
  %v249 = vsel %vm82, %v68, 0
  %v252 = vsel %vm82, %v69, 0
  %v255 = vsel %vm82, %v70, 0
  %v258 = vsel %vm82, %v71, 0
  %v261 = vsel %vm82, %v72, 0
  %v264 = vsel %vm82, %v73, 0
  %v267 = vsel %vm82, %v74, 0
  %v270 = vsel %vm82, %v75, 0
  %v273 = vsel %vm82, %v76, 0
  %vm275 = vcmask 1043456
  %v277 = vsel %vm275, %v81, 0
  %279 = vmatprep.subr.mxu0 0.0
  %v280 = vand.u32 %v77, 4294901760
  %281 = vmatpush1.msra.mxu0 %v280
  %282 = vmatprep.subr.mxu0 0.0
  %v283 = vand.u32 %v78, 4294901760
  %284 = vmatpush1.msra.mxu0 %v283
  %285 = vmatprep.subr.mxu0 0.0
  %v286 = vand.u32 %v79, 4294901760
  %287 = vmatpush1.msra.mxu0 %v286
  %288 = vmatprep.subr.mxu0 0.0
  %v289 = vand.u32 %v80, 4294901760
  %290 = vmatpush1.msra.mxu0 %v289
  %291 = vmatprep.subr.mxu0 0.0
  %v292 = vand.u32 %v277, 4294901760
  %293 = vmatpush1.msra.mxu0 %v292
  %294 = vmatprep.subr.mxu0 0.0
  %295 = vmatpush1.msra.mxu0 0.0
  %296 = vmatprep.subr.mxu0 0.0
  %297 = vmatpush1.msra.mxu0 0.0
  %298 = vmatprep.subr.mxu0 0.0
  %299 = vmatpush1.msra.mxu0 0.0
  %300 = vmatprep.subr.mxu0 0.0
  %301 = vmatpush1.msra.mxu0 0.0
  %302 = vmatprep.subr.mxu0 0.0
  %303 = vmatpush1.msra.mxu0 0.0
  %304 = vmatprep.subr.mxu0 0.0
  %305 = vmatpush1.msra.mxu0 0.0
  %306 = vmatprep.subr.mxu0 0.0
  %307 = vmatpush1.msra.mxu0 0.0
  %308 = vmatprep.subr.mxu0 0.0
  %309 = vmatpush1.msra.mxu0 0.0
  %310 = vmatprep.subr.mxu0 0.0
  %311 = vmatpush1.msra.mxu0 0.0
  %312 = vmatprep.subr.mxu0 0.0
  %313 = vmatpush1.msra.mxu0 0.0
  %314 = vmatprep.subr.mxu0 0.0
  %315 = vmatpush1.msra.mxu0 0.0
  %316 = vmatprep.subr.mxu0 0.0
  %317 = vmatpush1.msra.mxu0 0.0
  %318 = vmatprep.subr.mxu0 0.0
  %319 = vmatpush1.msra.mxu0 0.0
  %320 = vmatprep.subr.mxu0 0.0
  %321 = vmatpush1.msra.mxu0 0.0
  %322 = vmatprep.subr.mxu0 0.0
  %323 = vmatpush1.msra.mxu0 0.0
  %324 = vmatprep.subr.mxu0 0.0
  %325 = vmatpush1.msra.mxu0 0.0
  %326 = vmatprep.subr.mxu0 0.0
  %327 = vmatpush1.msra.mxu0 0.0
  %328 = vmatprep.subr.mxu0 0.0
  %329 = vmatpush1.msra.mxu0 0.0
  %330 = vmatprep.subr.mxu0 0.0
  %331 = vmatpush1.msra.mxu0 0.0
  %332 = vmatprep.subr.mxu0 0.0
  %333 = vmatpush1.msra.mxu0 0.0
  %334 = vmatprep.subr.mxu0 0.0
  %335 = vmatpush1.msra.mxu0 0.0
  %336 = vmatprep.subr.mxu0 0.0
  %337 = vmatpush1.msra.mxu0 0.0
  %338 = vmatprep.subr.mxu0 0.0
  %339 = vmatpush1.msra.mxu0 0.0
  %340 = vmatprep.subr.mxu0 0.0
  %341 = vmatpush1.msra.mxu0 0.0
  %342 = vmatprep.subr.mxu0 0.0
  %343 = vmatpush1.msra.mxu0 0.0
  %344 = vmatprep.subr.mxu0 0.0
  %345 = vmatpush1.msra.mxu0 0.0
  %346 = vmatprep.subr.mxu0 0.0
  %347 = vmatpush1.msra.mxu0 0.0
  %348 = vmatprep.mubr.f32.mxu0 0.0
  %v349 = vand.u32 %v84, 4294901760
  %v350 = vsub.f32 %v84, %v349
  %v351 = vand.u32 %v350, 4294901760
  %v352 = vsub.f32 %v350, %v351
  %v353 = vand.u32 %v352, 4294901760
  %354 = vmatmul.mubr.f32.gmra.mrb[0].mxu0 %v353
  %v355 = vpop.f32.mrb[0].mxu0
  %v356 = vadd.f32 0.0, %v355
  %v357 = vpop.f32.mrb[0].mxu0
  %358 = vmatprep.mubr.f32.mxu0 0.0
  %v359 = vand.u32 %v87, 4294901760
  %v360 = vsub.f32 %v87, %v359
  %v361 = vand.u32 %v360, 4294901760
  %v362 = vsub.f32 %v360, %v361
  %v363 = vand.u32 %v362, 4294901760
  %364 = vmatmul.mubr.f32.gmra.mrb[0].mxu0 %v363
  %v365 = vpop.f32.mrb[0].mxu0
  %v366 = vadd.f32 0.0, %v365
  %v367 = vpop.f32.mrb[0].mxu0
  %368 = vmatprep.mubr.f32.mxu0 0.0
  %v369 = vand.u32 %v90, 4294901760
  %v370 = vsub.f32 %v90, %v369
  %v371 = vand.u32 %v370, 4294901760
  %v372 = vsub.f32 %v370, %v371
  %v373 = vand.u32 %v372, 4294901760
  %374 = vmatmul.mubr.f32.gmra.mrb[0].mxu0 %v373
  %v375 = vpop.f32.mrb[0].mxu0
  %v376 = vadd.f32 0.0, %v375
  %v377 = vpop.f32.mrb[0].mxu0
  %378 = vmatprep.mubr.f32.mxu0 0.0
  %v379 = vand.u32 %v93, 4294901760
  %v380 = vsub.f32 %v93, %v379
  %v381 = vand.u32 %v380, 4294901760
  %v382 = vsub.f32 %v380, %v381
  %v383 = vand.u32 %v382, 4294901760
  %384 = vmatmul.mubr.f32.gmra.mrb[0].mxu0 %v383
  %v385 = vpop.f32.mrb[0].mxu0
  %v386 = vadd.f32 0.0, %v385
  %v387 = vpop.f32.mrb[0].mxu0
  %388 = vmatprep.mubr.f32.mxu0 0.0
  %v389 = vand.u32 %v96, 4294901760
  %v390 = vsub.f32 %v96, %v389
  %v391 = vand.u32 %v390, 4294901760
  %v392 = vsub.f32 %v390, %v391
  %v393 = vand.u32 %v392, 4294901760
  %394 = vmatmul.mubr.f32.gmra.mrb[0].mxu0 %v393
  %v395 = vpop.f32.mrb[0].mxu0
  %v396 = vadd.f32 0.0, %v395
  %v397 = vpop.f32.mrb[0].mxu0
  %398 = vmatprep.mubr.f32.mxu0 0.0
  %v399 = vand.u32 %v99, 4294901760
  %v400 = vsub.f32 %v99, %v399
  %v401 = vand.u32 %v400, 4294901760
  %v402 = vsub.f32 %v400, %v401
  %v403 = vand.u32 %v402, 4294901760
  %404 = vmatmul.mubr.f32.gmra.mrb[0].mxu0 %v403
  %v405 = vpop.f32.mrb[0].mxu0
  %v406 = vadd.f32 0.0, %v405
  %v407 = vpop.f32.mrb[0].mxu0
  %408 = vmatprep.mubr.f32.mxu0 0.0
  %v409 = vand.u32 %v102, 4294901760
  %v410 = vsub.f32 %v102, %v409
  %v411 = vand.u32 %v410, 4294901760
  %v412 = vsub.f32 %v410, %v411
  %v413 = vand.u32 %v412, 4294901760
  %414 = vmatmul.mubr.f32.gmra.mrb[0].mxu0 %v413
  %v415 = vpop.f32.mrb[0].mxu0
  %v416 = vadd.f32 0.0, %v415
  %v417 = vpop.f32.mrb[0].mxu0
  %418 = vmatprep.mubr.f32.mxu0 0.0
  %v419 = vand.u32 %v105, 4294901760
  %v420 = vsub.f32 %v105, %v419
  %v421 = vand.u32 %v420, 4294901760
  %v422 = vsub.f32 %v420, %v421
  %v423 = vand.u32 %v422, 4294901760
  %424 = vmatmul.mubr.f32.gmra.mrb[0].mxu0 %v423
  %v425 = vpop.f32.mrb[0].mxu0
  %v426 = vadd.f32 0.0, %v425
  %v427 = vpop.f32.mrb[0].mxu0
  %428 = vmatprep.mubr.f32.mxu0 0.0
  %v429 = vand.u32 %v108, 4294901760
  %v430 = vsub.f32 %v108, %v429
  %v431 = vand.u32 %v430, 4294901760
  %v432 = vsub.f32 %v430, %v431
  %v433 = vand.u32 %v432, 4294901760
  %434 = vmatmul.mubr.f32.gmra.mrb[0].mxu0 %v433
  %v435 = vpop.f32.mrb[0].mxu0
  %v436 = vadd.f32 0.0, %v435
  %v437 = vpop.f32.mrb[0].mxu0
  %438 = vmatprep.mubr.f32.mxu0 0.0
  %v439 = vand.u32 %v111, 4294901760
  %v440 = vsub.f32 %v111, %v439
  %v441 = vand.u32 %v440, 4294901760
  %v442 = vsub.f32 %v440, %v441
  %v443 = vand.u32 %v442, 4294901760
  %444 = vmatmul.mubr.f32.gmra.mrb[0].mxu0 %v443
  %v445 = vpop.f32.mrb[0].mxu0
  %v446 = vadd.f32 0.0, %v445
  %v447 = vpop.f32.mrb[0].mxu0
  %448 = vmatprep.mubr.f32.mxu0 0.0
  %v449 = vand.u32 %v114, 4294901760
  %v450 = vsub.f32 %v114, %v449
  %v451 = vand.u32 %v450, 4294901760
  %v452 = vsub.f32 %v450, %v451
  %v453 = vand.u32 %v452, 4294901760
  %454 = vmatmul.mubr.f32.gmra.mrb[0].mxu0 %v453
  %v455 = vpop.f32.mrb[0].mxu0
  %v456 = vadd.f32 0.0, %v455
  %v457 = vpop.f32.mrb[0].mxu0
  %458 = vmatprep.mubr.f32.mxu0 0.0
  %v459 = vand.u32 %v117, 4294901760
  %v460 = vsub.f32 %v117, %v459
  %v461 = vand.u32 %v460, 4294901760
  %v462 = vsub.f32 %v460, %v461
  %v463 = vand.u32 %v462, 4294901760
  %464 = vmatmul.mubr.f32.gmra.mrb[0].mxu0 %v463
  %v465 = vpop.f32.mrb[0].mxu0
  %v466 = vadd.f32 0.0, %v465
  %v467 = vpop.f32.mrb[0].mxu0
  %468 = vmatprep.mubr.f32.mxu0 0.0
  %v469 = vand.u32 %v120, 4294901760
  %v470 = vsub.f32 %v120, %v469
  %v471 = vand.u32 %v470, 4294901760
  %v472 = vsub.f32 %v470, %v471
  %v473 = vand.u32 %v472, 4294901760
  %474 = vmatmul.mubr.f32.gmra.mrb[0].mxu0 %v473
  %v475 = vpop.f32.mrb[0].mxu0
  %v476 = vadd.f32 0.0, %v475
  %v477 = vpop.f32.mrb[0].mxu0
  %478 = vmatprep.mubr.f32.mxu0 0.0
  %v479 = vand.u32 %v123, 4294901760
  %v480 = vsub.f32 %v123, %v479
  %v481 = vand.u32 %v480, 4294901760
  %v482 = vsub.f32 %v480, %v481
  %v483 = vand.u32 %v482, 4294901760
  %484 = vmatmul.mubr.f32.gmra.mrb[0].mxu0 %v483
  %v485 = vpop.f32.mrb[0].mxu0
  %v486 = vadd.f32 0.0, %v485
  %v487 = vpop.f32.mrb[0].mxu0
  %488 = vmatprep.mubr.f32.mxu0 0.0
  %v489 = vand.u32 %v126, 4294901760
  %v490 = vsub.f32 %v126, %v489
  %v491 = vand.u32 %v490, 4294901760
  %v492 = vsub.f32 %v490, %v491
  %v493 = vand.u32 %v492, 4294901760
  %494 = vmatmul.mubr.f32.gmra.mrb[0].mxu0 %v493
  %v495 = vpop.f32.mrb[0].mxu0
  %v496 = vadd.f32 0.0, %v495
  %v497 = vpop.f32.mrb[0].mxu0
  %498 = vmatprep.mubr.f32.mxu0 0.0
  %v499 = vand.u32 %v129, 4294901760
  %v500 = vsub.f32 %v129, %v499
  %v501 = vand.u32 %v500, 4294901760
  %v502 = vsub.f32 %v500, %v501
  %v503 = vand.u32 %v502, 4294901760
  %504 = vmatmul.mubr.f32.gmra.mrb[0].mxu0 %v503
  %v505 = vpop.f32.mrb[0].mxu0
  %v506 = vadd.f32 0.0, %v505
  %v507 = vpop.f32.mrb[0].mxu0
  %508 = vmatprep.mubr.f32.mxu0 0.0
  %v509 = vand.u32 %v132, 4294901760
  %v510 = vsub.f32 %v132, %v509
  %v511 = vand.u32 %v510, 4294901760
  %v512 = vsub.f32 %v510, %v511
  %v513 = vand.u32 %v512, 4294901760
  %514 = vmatmul.mubr.f32.gmra.mrb[0].mxu0 %v513
  %v515 = vpop.f32.mrb[0].mxu0
  %v516 = vadd.f32 0.0, %v515
  %v517 = vpop.f32.mrb[0].mxu0
  %518 = vmatprep.mubr.f32.mxu0 0.0
  %v519 = vand.u32 %v135, 4294901760
  %v520 = vsub.f32 %v135, %v519
  %v521 = vand.u32 %v520, 4294901760
  %v522 = vsub.f32 %v520, %v521
  %v523 = vand.u32 %v522, 4294901760
  %524 = vmatmul.mubr.f32.gmra.mrb[0].mxu0 %v523
  %v525 = vpop.f32.mrb[0].mxu0
  %v526 = vadd.f32 0.0, %v525
  %v527 = vpop.f32.mrb[0].mxu0
  %528 = vmatprep.mubr.f32.mxu0 0.0
  %v529 = vand.u32 %v138, 4294901760
  %v530 = vsub.f32 %v138, %v529
  %v531 = vand.u32 %v530, 4294901760
  %v532 = vsub.f32 %v530, %v531
  %v533 = vand.u32 %v532, 4294901760
  %534 = vmatmul.mubr.f32.gmra.mrb[0].mxu0 %v533
  %v535 = vpop.f32.mrb[0].mxu0
  %v536 = vadd.f32 0.0, %v535
  %v537 = vpop.f32.mrb[0].mxu0
  %538 = vmatprep.mubr.f32.mxu0 0.0
  %v539 = vand.u32 %v141, 4294901760
  %v540 = vsub.f32 %v141, %v539
  %v541 = vand.u32 %v540, 4294901760
  %v542 = vsub.f32 %v540, %v541
  %v543 = vand.u32 %v542, 4294901760
  %544 = vmatmul.mubr.f32.gmra.mrb[0].mxu0 %v543
  %v545 = vpop.f32.mrb[0].mxu0
  %v546 = vadd.f32 0.0, %v545
  %v547 = vpop.f32.mrb[0].mxu0
  %548 = vmatprep.mubr.f32.mxu0 0.0
  %v549 = vand.u32 %v144, 4294901760
  %v550 = vsub.f32 %v144, %v549
  %v551 = vand.u32 %v550, 4294901760
  %v552 = vsub.f32 %v550, %v551
  %v553 = vand.u32 %v552, 4294901760
  %554 = vmatmul.mubr.f32.gmra.mrb[0].mxu0 %v553
  %v555 = vpop.f32.mrb[0].mxu0
  %v556 = vadd.f32 0.0, %v555
  %v557 = vpop.f32.mrb[0].mxu0
  %558 = vmatprep.mubr.f32.mxu0 0.0
  %v559 = vand.u32 %v147, 4294901760
  %v560 = vsub.f32 %v147, %v559
  %v561 = vand.u32 %v560, 4294901760
  %v562 = vsub.f32 %v560, %v561
  %v563 = vand.u32 %v562, 4294901760
  %564 = vmatmul.mubr.f32.gmra.mrb[0].mxu0 %v563
  %v565 = vpop.f32.mrb[0].mxu0
  %v566 = vadd.f32 0.0, %v565
  %v567 = vpop.f32.mrb[0].mxu0
  %568 = vmatprep.mubr.f32.mxu0 0.0
  %v569 = vand.u32 %v150, 4294901760
  %v570 = vsub.f32 %v150, %v569
  %v571 = vand.u32 %v570, 4294901760
  %v572 = vsub.f32 %v570, %v571
  %v573 = vand.u32 %v572, 4294901760
  %574 = vmatmul.mubr.f32.gmra.mrb[0].mxu0 %v573
  %v575 = vpop.f32.mrb[0].mxu0
  %v576 = vadd.f32 0.0, %v575
  %v577 = vpop.f32.mrb[0].mxu0
  %578 = vmatprep.mubr.f32.mxu0 0.0
  %v579 = vand.u32 %v153, 4294901760
  %v580 = vsub.f32 %v153, %v579
  %v581 = vand.u32 %v580, 4294901760
  %v582 = vsub.f32 %v580, %v581
  %v583 = vand.u32 %v582, 4294901760
  %584 = vmatmul.mubr.f32.gmra.mrb[0].mxu0 %v583
  %v585 = vpop.f32.mrb[0].mxu0
  %v586 = vadd.f32 0.0, %v585
  %v587 = vpop.f32.mrb[0].mxu0
  %588 = vmatprep.mubr.f32.mxu0 0.0
  %v589 = vand.u32 %v156, 4294901760
  %v590 = vsub.f32 %v156, %v589
  %v591 = vand.u32 %v590, 4294901760
  %v592 = vsub.f32 %v590, %v591
  %v593 = vand.u32 %v592, 4294901760
  %594 = vmatmul.mubr.f32.gmra.mrb[0].mxu0 %v593
  %v595 = vpop.f32.mrb[0].mxu0
  %v596 = vadd.f32 0.0, %v595
  %v597 = vpop.f32.mrb[0].mxu0
  %598 = vmatprep.mubr.f32.mxu0 0.0
  %v599 = vand.u32 %v159, 4294901760
  %v600 = vsub.f32 %v159, %v599
  %v601 = vand.u32 %v600, 4294901760
  %v602 = vsub.f32 %v600, %v601
  %v603 = vand.u32 %v602, 4294901760
  %604 = vmatmul.mubr.f32.gmra.mrb[0].mxu0 %v603
  %v605 = vpop.f32.mrb[0].mxu0
  %v606 = vadd.f32 0.0, %v605
  %v607 = vpop.f32.mrb[0].mxu0
  %608 = vmatprep.mubr.f32.mxu0 0.0
  %v609 = vand.u32 %v162, 4294901760
  %v610 = vsub.f32 %v162, %v609
  %v611 = vand.u32 %v610, 4294901760
  %v612 = vsub.f32 %v610, %v611
  %v613 = vand.u32 %v612, 4294901760
  %614 = vmatmul.mubr.f32.gmra.mrb[0].mxu0 %v613
  %v615 = vpop.f32.mrb[0].mxu0
  %v616 = vadd.f32 0.0, %v615
  %v617 = vpop.f32.mrb[0].mxu0
  %618 = vmatprep.mubr.f32.mxu0 0.0
  %v619 = vand.u32 %v165, 4294901760
  %v620 = vsub.f32 %v165, %v619
  %v621 = vand.u32 %v620, 4294901760
  %v622 = vsub.f32 %v620, %v621
  %v623 = vand.u32 %v622, 4294901760
  %624 = vmatmul.mubr.f32.gmra.mrb[0].mxu0 %v623
  %v625 = vpop.f32.mrb[0].mxu0
  %v626 = vadd.f32 0.0, %v625
  %v627 = vpop.f32.mrb[0].mxu0
  %628 = vmatprep.mubr.f32.mxu0 0.0
  %v629 = vand.u32 %v168, 4294901760
  %v630 = vsub.f32 %v168, %v629
  %v631 = vand.u32 %v630, 4294901760
  %v632 = vsub.f32 %v630, %v631
  %v633 = vand.u32 %v632, 4294901760
  %634 = vmatmul.mubr.f32.gmra.mrb[0].mxu0 %v633
  %v635 = vpop.f32.mrb[0].mxu0
  %v636 = vadd.f32 0.0, %v635
  %v637 = vpop.f32.mrb[0].mxu0
  %638 = vmatprep.mubr.f32.mxu0 0.0
  %v639 = vand.u32 %v171, 4294901760
  %v640 = vsub.f32 %v171, %v639
  %v641 = vand.u32 %v640, 4294901760
  %v642 = vsub.f32 %v640, %v641
  %v643 = vand.u32 %v642, 4294901760
  %644 = vmatmul.mubr.f32.gmra.mrb[0].mxu0 %v643
  %v645 = vpop.f32.mrb[0].mxu0
  %v646 = vadd.f32 0.0, %v645
  %v647 = vpop.f32.mrb[0].mxu0
  %648 = vmatprep.mubr.f32.mxu0 0.0
  %v649 = vand.u32 %v174, 4294901760
  %v650 = vsub.f32 %v174, %v649
  %v651 = vand.u32 %v650, 4294901760
  %v652 = vsub.f32 %v650, %v651
  %v653 = vand.u32 %v652, 4294901760
  %654 = vmatmul.mubr.f32.gmra.mrb[0].mxu0 %v653
  %v655 = vpop.f32.mrb[0].mxu0
  %v656 = vadd.f32 0.0, %v655
  %v657 = vpop.f32.mrb[0].mxu0
  %658 = vmatprep.mubr.f32.mxu0 0.0
  %v659 = vand.u32 %v177, 4294901760
  %v660 = vsub.f32 %v177, %v659
  %v661 = vand.u32 %v660, 4294901760
  %v662 = vsub.f32 %v660, %v661
  %v663 = vand.u32 %v662, 4294901760
  %664 = vmatmul.mubr.f32.gmra.mrb[0].mxu0 %v663
  %v665 = vpop.f32.mrb[0].mxu0
  %v666 = vadd.f32 0.0, %v665
  %v667 = vpop.f32.mrb[0].mxu0
  %668 = vmatprep.mubr.f32.mxu0 0.0
  %v669 = vand.u32 %v180, 4294901760
  %v670 = vsub.f32 %v180, %v669
  %v671 = vand.u32 %v670, 4294901760
  %v672 = vsub.f32 %v670, %v671
  %v673 = vand.u32 %v672, 4294901760
  %674 = vmatmul.mubr.f32.gmra.mrb[0].mxu0 %v673
  %v675 = vpop.f32.mrb[0].mxu0
  %v676 = vadd.f32 0.0, %v675
  %v677 = vpop.f32.mrb[0].mxu0
  %678 = vmatprep.mubr.f32.mxu0 0.0
  %v679 = vand.u32 %v183, 4294901760
  %v680 = vsub.f32 %v183, %v679
  %v681 = vand.u32 %v680, 4294901760
  %v682 = vsub.f32 %v680, %v681
  %v683 = vand.u32 %v682, 4294901760
  %684 = vmatmul.mubr.f32.gmra.mrb[0].mxu0 %v683
  %v685 = vpop.f32.mrb[0].mxu0
  %v686 = vadd.f32 0.0, %v685
  %v687 = vpop.f32.mrb[0].mxu0
  %688 = vmatprep.mubr.f32.mxu0 0.0
  %v689 = vand.u32 %v186, 4294901760
  %v690 = vsub.f32 %v186, %v689
  %v691 = vand.u32 %v690, 4294901760
  %v692 = vsub.f32 %v690, %v691
  %v693 = vand.u32 %v692, 4294901760
  %694 = vmatmul.mubr.f32.gmra.mrb[0].mxu0 %v693
  %v695 = vpop.f32.mrb[0].mxu0
  %v696 = vadd.f32 0.0, %v695
  %v697 = vpop.f32.mrb[0].mxu0
  %698 = vmatprep.mubr.f32.mxu0 0.0
  %v699 = vand.u32 %v189, 4294901760
  %v700 = vsub.f32 %v189, %v699
  %v701 = vand.u32 %v700, 4294901760
  %v702 = vsub.f32 %v700, %v701
  %v703 = vand.u32 %v702, 4294901760
  %704 = vmatmul.mubr.f32.gmra.mrb[0].mxu0 %v703
  %v705 = vpop.f32.mrb[0].mxu0
  %v706 = vadd.f32 0.0, %v705
  %v707 = vpop.f32.mrb[0].mxu0
  %708 = vmatprep.mubr.f32.mxu0 0.0
  %v709 = vand.u32 %v192, 4294901760
  %v710 = vsub.f32 %v192, %v709
  %v711 = vand.u32 %v710, 4294901760
  %v712 = vsub.f32 %v710, %v711
  %v713 = vand.u32 %v712, 4294901760
  %714 = vmatmul.mubr.f32.gmra.mrb[0].mxu0 %v713
  %v715 = vpop.f32.mrb[0].mxu0
  %v716 = vadd.f32 0.0, %v715
  %v717 = vpop.f32.mrb[0].mxu0
  %718 = vmatprep.mubr.f32.mxu0 0.0
  %v719 = vand.u32 %v195, 4294901760
  %v720 = vsub.f32 %v195, %v719
  %v721 = vand.u32 %v720, 4294901760
  %v722 = vsub.f32 %v720, %v721
  %v723 = vand.u32 %v722, 4294901760
  %724 = vmatmul.mubr.f32.gmra.mrb[0].mxu0 %v723
  %v725 = vpop.f32.mrb[0].mxu0
  %v726 = vadd.f32 0.0, %v725
  %v727 = vpop.f32.mrb[0].mxu0
  %728 = vmatprep.mubr.f32.mxu0 0.0
  %v729 = vand.u32 %v198, 4294901760
  %v730 = vsub.f32 %v198, %v729
  %v731 = vand.u32 %v730, 4294901760
  %v732 = vsub.f32 %v730, %v731
  %v733 = vand.u32 %v732, 4294901760
  %734 = vmatmul.mubr.f32.gmra.mrb[0].mxu0 %v733
  %v735 = vpop.f32.mrb[0].mxu0
  %v736 = vadd.f32 0.0, %v735
  %v737 = vpop.f32.mrb[0].mxu0
  %738 = vmatprep.mubr.f32.mxu0 0.0
  %v739 = vand.u32 %v201, 4294901760
  %v740 = vsub.f32 %v201, %v739
  %v741 = vand.u32 %v740, 4294901760
  %v742 = vsub.f32 %v740, %v741
  %v743 = vand.u32 %v742, 4294901760
  %744 = vmatmul.mubr.f32.gmra.mrb[0].mxu0 %v743
  %v745 = vpop.f32.mrb[0].mxu0
  %v746 = vadd.f32 0.0, %v745
  %v747 = vpop.f32.mrb[0].mxu0
  %748 = vmatprep.mubr.f32.mxu0 0.0
  %v749 = vand.u32 %v204, 4294901760
  %v750 = vsub.f32 %v204, %v749
  %v751 = vand.u32 %v750, 4294901760
  %v752 = vsub.f32 %v750, %v751
  %v753 = vand.u32 %v752, 4294901760
  %754 = vmatmul.mubr.f32.gmra.mrb[0].mxu0 %v753
  %v755 = vpop.f32.mrb[0].mxu0
  %v756 = vadd.f32 0.0, %v755
  %v757 = vpop.f32.mrb[0].mxu0
  %758 = vmatprep.mubr.f32.mxu0 0.0
  %v759 = vand.u32 %v207, 4294901760
  %v760 = vsub.f32 %v207, %v759
  %v761 = vand.u32 %v760, 4294901760
  %v762 = vsub.f32 %v760, %v761
  %v763 = vand.u32 %v762, 4294901760
  %764 = vmatmul.mubr.f32.gmra.mrb[0].mxu0 %v763
  %v765 = vpop.f32.mrb[0].mxu0
  %v766 = vadd.f32 0.0, %v765
  %v767 = vpop.f32.mrb[0].mxu0
  %768 = vmatprep.mubr.f32.mxu0 0.0
  %v769 = vand.u32 %v210, 4294901760
  %v770 = vsub.f32 %v210, %v769
  %v771 = vand.u32 %v770, 4294901760
  %v772 = vsub.f32 %v770, %v771
  %v773 = vand.u32 %v772, 4294901760
  %774 = vmatmul.mubr.f32.gmra.mrb[0].mxu0 %v773
  %v775 = vpop.f32.mrb[0].mxu0
  %v776 = vadd.f32 0.0, %v775
  %v777 = vpop.f32.mrb[0].mxu0
  %778 = vmatprep.mubr.f32.mxu0 0.0
  %v779 = vand.u32 %v213, 4294901760
  %v780 = vsub.f32 %v213, %v779
  %v781 = vand.u32 %v780, 4294901760
  %v782 = vsub.f32 %v780, %v781
  %v783 = vand.u32 %v782, 4294901760
  %784 = vmatmul.mubr.f32.gmra.mrb[0].mxu0 %v783
  %v785 = vpop.f32.mrb[0].mxu0
  %v786 = vadd.f32 0.0, %v785
  %v787 = vpop.f32.mrb[0].mxu0
  %788 = vmatprep.mubr.f32.mxu0 0.0
  %v789 = vand.u32 %v216, 4294901760
  %v790 = vsub.f32 %v216, %v789
  %v791 = vand.u32 %v790, 4294901760
  %v792 = vsub.f32 %v790, %v791
  %v793 = vand.u32 %v792, 4294901760
  %794 = vmatmul.mubr.f32.gmra.mrb[0].mxu0 %v793
  %v795 = vpop.f32.mrb[0].mxu0
  %v796 = vadd.f32 0.0, %v795
  %v797 = vpop.f32.mrb[0].mxu0
  %798 = vmatprep.mubr.f32.mxu0 0.0
  %v799 = vand.u32 %v219, 4294901760
  %v800 = vsub.f32 %v219, %v799
  %v801 = vand.u32 %v800, 4294901760
  %v802 = vsub.f32 %v800, %v801
  %v803 = vand.u32 %v802, 4294901760
  %804 = vmatmul.mubr.f32.gmra.mrb[0].mxu0 %v803
  %v805 = vpop.f32.mrb[0].mxu0
  %v806 = vadd.f32 0.0, %v805
  %v807 = vpop.f32.mrb[0].mxu0
  %808 = vmatprep.mubr.f32.mxu0 0.0
  %v809 = vand.u32 %v222, 4294901760
  %v810 = vsub.f32 %v222, %v809
  %v811 = vand.u32 %v810, 4294901760
  %v812 = vsub.f32 %v810, %v811
  %v813 = vand.u32 %v812, 4294901760
  %814 = vmatmul.mubr.f32.gmra.mrb[0].mxu0 %v813
  %v815 = vpop.f32.mrb[0].mxu0
  %v816 = vadd.f32 0.0, %v815
  %v817 = vpop.f32.mrb[0].mxu0
  %818 = vmatprep.mubr.f32.mxu0 0.0
  %v819 = vand.u32 %v225, 4294901760
  %v820 = vsub.f32 %v225, %v819
  %v821 = vand.u32 %v820, 4294901760
  %v822 = vsub.f32 %v820, %v821
  %v823 = vand.u32 %v822, 4294901760
  %824 = vmatmul.mubr.f32.gmra.mrb[0].mxu0 %v823
  %v825 = vpop.f32.mrb[0].mxu0
  %v826 = vadd.f32 0.0, %v825
  %v827 = vpop.f32.mrb[0].mxu0
  %828 = vmatprep.mubr.f32.mxu0 0.0
  %v829 = vand.u32 %v228, 4294901760
  %v830 = vsub.f32 %v228, %v829
  %v831 = vand.u32 %v830, 4294901760
  %v832 = vsub.f32 %v830, %v831
  %v833 = vand.u32 %v832, 4294901760
  %834 = vmatmul.mubr.f32.gmra.mrb[0].mxu0 %v833
  %v835 = vpop.f32.mrb[0].mxu0
  %v836 = vadd.f32 0.0, %v835
  %v837 = vpop.f32.mrb[0].mxu0
  %838 = vmatprep.mubr.f32.mxu0 0.0
  %v839 = vand.u32 %v231, 4294901760
  %v840 = vsub.f32 %v231, %v839
  %v841 = vand.u32 %v840, 4294901760
  %v842 = vsub.f32 %v840, %v841
  %v843 = vand.u32 %v842, 4294901760
  %844 = vmatmul.mubr.f32.gmra.mrb[0].mxu0 %v843
  %v845 = vpop.f32.mrb[0].mxu0
  %v846 = vadd.f32 0.0, %v845
  %v847 = vpop.f32.mrb[0].mxu0
  %848 = vmatprep.mubr.f32.mxu0 0.0
  %v849 = vand.u32 %v234, 4294901760
  %v850 = vsub.f32 %v234, %v849
  %v851 = vand.u32 %v850, 4294901760
  %v852 = vsub.f32 %v850, %v851
  %v853 = vand.u32 %v852, 4294901760
  %854 = vmatmul.mubr.f32.gmra.mrb[0].mxu0 %v853
  %v855 = vpop.f32.mrb[0].mxu0
  %v856 = vadd.f32 0.0, %v855
  %v857 = vpop.f32.mrb[0].mxu0
  %858 = vmatprep.mubr.f32.mxu0 0.0
  %v859 = vand.u32 %v237, 4294901760
  %v860 = vsub.f32 %v237, %v859
  %v861 = vand.u32 %v860, 4294901760
  %v862 = vsub.f32 %v860, %v861
  %v863 = vand.u32 %v862, 4294901760
  %864 = vmatmul.mubr.f32.gmra.mrb[0].mxu0 %v863
  %v865 = vpop.f32.mrb[0].mxu0
  %v866 = vadd.f32 0.0, %v865
  %v867 = vpop.f32.mrb[0].mxu0
  %868 = vmatprep.mubr.f32.mxu0 0.0
  %v869 = vand.u32 %v240, 4294901760
  %v870 = vsub.f32 %v240, %v869
  %v871 = vand.u32 %v870, 4294901760
  %v872 = vsub.f32 %v870, %v871
  %v873 = vand.u32 %v872, 4294901760
  %874 = vmatmul.mubr.f32.gmra.mrb[0].mxu0 %v873
  %v875 = vpop.f32.mrb[0].mxu0
  %v876 = vadd.f32 0.0, %v875
  %v877 = vpop.f32.mrb[0].mxu0
  %878 = vmatprep.mubr.f32.mxu0 0.0
  %v879 = vand.u32 %v243, 4294901760
  %v880 = vsub.f32 %v243, %v879
  %v881 = vand.u32 %v880, 4294901760
  %v882 = vsub.f32 %v880, %v881
  %v883 = vand.u32 %v882, 4294901760
  %884 = vmatmul.mubr.f32.gmra.mrb[0].mxu0 %v883
  %v885 = vpop.f32.mrb[0].mxu0
  %v886 = vadd.f32 0.0, %v885
  %v887 = vpop.f32.mrb[0].mxu0
  %888 = vmatprep.mubr.f32.mxu0 0.0
  %v889 = vand.u32 %v246, 4294901760
  %v890 = vsub.f32 %v246, %v889
  %v891 = vand.u32 %v890, 4294901760
  %v892 = vsub.f32 %v890, %v891
  %v893 = vand.u32 %v892, 4294901760
  %894 = vmatmul.mubr.f32.gmra.mrb[0].mxu0 %v893
  %v895 = vpop.f32.mrb[0].mxu0
  %v896 = vadd.f32 0.0, %v895
  %v897 = vpop.f32.mrb[0].mxu0
  %898 = vmatprep.mubr.f32.mxu0 0.0
  %v899 = vand.u32 %v249, 4294901760
  %v900 = vsub.f32 %v249, %v899
  %v901 = vand.u32 %v900, 4294901760
  %v902 = vsub.f32 %v900, %v901
  %v903 = vand.u32 %v902, 4294901760
  %904 = vmatmul.mubr.f32.gmra.mrb[0].mxu0 %v903
  %v905 = vpop.f32.mrb[0].mxu0
  %v906 = vadd.f32 0.0, %v905
  %v907 = vpop.f32.mrb[0].mxu0
  %908 = vmatprep.mubr.f32.mxu0 0.0
  %v909 = vand.u32 %v252, 4294901760
  %v910 = vsub.f32 %v252, %v909
  %v911 = vand.u32 %v910, 4294901760
  %v912 = vsub.f32 %v910, %v911
  %v913 = vand.u32 %v912, 4294901760
  %914 = vmatmul.mubr.f32.gmra.mrb[0].mxu0 %v913
  %v915 = vpop.f32.mrb[0].mxu0
  %v916 = vadd.f32 0.0, %v915
  %v917 = vpop.f32.mrb[0].mxu0
  %918 = vmatprep.mubr.f32.mxu0 0.0
  %v919 = vand.u32 %v255, 4294901760
  %v920 = vsub.f32 %v255, %v919
  %v921 = vand.u32 %v920, 4294901760
  %v922 = vsub.f32 %v920, %v921
  %v923 = vand.u32 %v922, 4294901760
  %924 = vmatmul.mubr.f32.gmra.mrb[0].mxu0 %v923
  %v925 = vpop.f32.mrb[0].mxu0
  %v926 = vadd.f32 0.0, %v925
  %v927 = vpop.f32.mrb[0].mxu0
  %928 = vmatprep.mubr.f32.mxu0 0.0
  %v929 = vand.u32 %v258, 4294901760
  %v930 = vsub.f32 %v258, %v929
  %v931 = vand.u32 %v930, 4294901760
  %v932 = vsub.f32 %v930, %v931
  %v933 = vand.u32 %v932, 4294901760
  %934 = vmatmul.mubr.f32.gmra.mrb[0].mxu0 %v933
  %v935 = vpop.f32.mrb[0].mxu0
  %v936 = vadd.f32 0.0, %v935
  %v937 = vpop.f32.mrb[0].mxu0
  %938 = vmatprep.mubr.f32.mxu0 0.0
  %v939 = vand.u32 %v261, 4294901760
  %v940 = vsub.f32 %v261, %v939
  %v941 = vand.u32 %v940, 4294901760
  %v942 = vsub.f32 %v940, %v941
  %v943 = vand.u32 %v942, 4294901760
  %944 = vmatmul.mubr.f32.gmra.mrb[0].mxu0 %v943
  %v945 = vpop.f32.mrb[0].mxu0
  %v946 = vadd.f32 0.0, %v945
  %v947 = vpop.f32.mrb[0].mxu0
  %948 = vmatprep.mubr.f32.mxu0 0.0
  %v949 = vand.u32 %v264, 4294901760
  %v950 = vsub.f32 %v264, %v949
  %v951 = vand.u32 %v950, 4294901760
  %v952 = vsub.f32 %v950, %v951
  %v953 = vand.u32 %v952, 4294901760
  %954 = vmatmul.mubr.f32.gmra.mrb[0].mxu0 %v953
  %v955 = vpop.f32.mrb[0].mxu0
  %v956 = vadd.f32 0.0, %v955
  %v957 = vpop.f32.mrb[0].mxu0
  %958 = vmatprep.mubr.f32.mxu0 0.0
  %v959 = vand.u32 %v267, 4294901760
  %v960 = vsub.f32 %v267, %v959
  %v961 = vand.u32 %v960, 4294901760
  %v962 = vsub.f32 %v960, %v961
  %v963 = vand.u32 %v962, 4294901760
  %964 = vmatmul.mubr.f32.gmra.mrb[0].mxu0 %v963
  %v965 = vpop.f32.mrb[0].mxu0
  %v966 = vadd.f32 0.0, %v965
  %v967 = vpop.f32.mrb[0].mxu0
  %968 = vmatprep.mubr.f32.mxu0 0.0
  %v969 = vand.u32 %v270, 4294901760
  %v970 = vsub.f32 %v270, %v969
  %v971 = vand.u32 %v970, 4294901760
  %v972 = vsub.f32 %v970, %v971
  %v973 = vand.u32 %v972, 4294901760
  %974 = vmatmul.mubr.f32.gmra.mrb[0].mxu0 %v973
  %v975 = vpop.f32.mrb[0].mxu0
  %v976 = vadd.f32 0.0, %v975
  %v977 = vpop.f32.mrb[0].mxu0
  %978 = vmatprep.mubr.f32.mxu0 0.0
  %v979 = vand.u32 %v273, 4294901760
  %v980 = vsub.f32 %v273, %v979
  %v981 = vand.u32 %v980, 4294901760
  %v982 = vsub.f32 %v980, %v981
  %v983 = vand.u32 %v982, 4294901760
  %984 = vmatmul.mubr.f32.gmra.mrb[0].mxu0 %v983
  %v985 = vpop.f32.mrb[0].mxu0
  %v986 = vadd.f32 0.0, %v985
  %v987 = vpop.f32.mrb[0].mxu0
  %988 = vdwg.mxu0
  %989 = vmatprep.subr.mxu0 0.0
  %v990 = vand.u32 %v77, 4294901760
  %v991 = vsub.f32 %v77, %v990
  %v992 = vand.u32 %v991, 4294901760
  %v993 = vsub.f32 %v991, %v992
  %v994 = vand.u32 %v993, 4294901760
  %995 = vmatpush1.msra.mxu0 %v994
  %996 = vmatprep.subr.mxu0 0.0
  %v997 = vand.u32 %v78, 4294901760
  %v998 = vsub.f32 %v78, %v997
  %v999 = vand.u32 %v998, 4294901760
  %v1000 = vsub.f32 %v998, %v999
  %v1001 = vand.u32 %v1000, 4294901760
  %1002 = vmatpush1.msra.mxu0 %v1001
  %1003 = vmatprep.subr.mxu0 0.0
  %v1004 = vand.u32 %v79, 4294901760
  %v1005 = vsub.f32 %v79, %v1004
  %v1006 = vand.u32 %v1005, 4294901760
  %v1007 = vsub.f32 %v1005, %v1006
  %v1008 = vand.u32 %v1007, 4294901760
  %1009 = vmatpush1.msra.mxu0 %v1008
  %1010 = vmatprep.subr.mxu0 0.0
  %v1011 = vand.u32 %v80, 4294901760
  %v1012 = vsub.f32 %v80, %v1011
  %v1013 = vand.u32 %v1012, 4294901760
  %v1014 = vsub.f32 %v1012, %v1013
  %v1015 = vand.u32 %v1014, 4294901760
  %1016 = vmatpush1.msra.mxu0 %v1015
  %1017 = vmatprep.subr.mxu0 0.0
  %v1018 = vand.u32 %v277, 4294901760
  %v1019 = vsub.f32 %v277, %v1018
  %v1020 = vand.u32 %v1019, 4294901760
  %v1021 = vsub.f32 %v1019, %v1020
  %v1022 = vand.u32 %v1021, 4294901760
  %1023 = vmatpush1.msra.mxu0 %v1022
  %1024 = vmatprep.subr.mxu0 0.0
  %1025 = vmatpush1.msra.mxu0 0.0
  %1026 = vmatprep.subr.mxu0 0.0
  %1027 = vmatpush1.msra.mxu0 0.0
  %1028 = vmatprep.subr.mxu0 0.0
  %1029 = vmatpush1.msra.mxu0 0.0
  %1030 = vmatprep.subr.mxu0 0.0
  %1031 = vmatpush1.msra.mxu0 0.0
  %1032 = vmatprep.subr.mxu0 0.0
  %1033 = vmatpush1.msra.mxu0 0.0
  %1034 = vmatprep.subr.mxu0 0.0
  %1035 = vmatpush1.msra.mxu0 0.0
  %1036 = vmatprep.subr.mxu0 0.0
  %1037 = vmatpush1.msra.mxu0 0.0
  %1038 = vmatprep.subr.mxu0 0.0
  %1039 = vmatpush1.msra.mxu0 0.0
  %1040 = vmatprep.subr.mxu0 0.0
  %1041 = vmatpush1.msra.mxu0 0.0
  %1042 = vmatprep.subr.mxu0 0.0
  %1043 = vmatpush1.msra.mxu0 0.0
  %1044 = vmatprep.subr.mxu0 0.0
  %1045 = vmatpush1.msra.mxu0 0.0
  %1046 = vmatprep.subr.mxu0 0.0
  %1047 = vmatpush1.msra.mxu0 0.0
  %1048 = vmatprep.subr.mxu0 0.0
  %1049 = vmatpush1.msra.mxu0 0.0
  %1050 = vmatprep.subr.mxu0 0.0
  %1051 = vmatpush1.msra.mxu0 0.0
  %1052 = vmatprep.subr.mxu0 0.0
  %1053 = vmatpush1.msra.mxu0 0.0
  %1054 = vmatprep.subr.mxu0 0.0
  %1055 = vmatpush1.msra.mxu0 0.0
  %1056 = vmatprep.subr.mxu0 0.0
  %1057 = vmatpush1.msra.mxu0 0.0
  %1058 = vmatprep.subr.mxu0 0.0
  %1059 = vmatpush1.msra.mxu0 0.0
  %1060 = vmatprep.subr.mxu0 0.0
  %1061 = vmatpush1.msra.mxu0 0.0
  %1062 = vmatprep.subr.mxu0 0.0
  %1063 = vmatpush1.msra.mxu0 0.0
  %1064 = vmatprep.subr.mxu0 0.0
  %1065 = vmatpush1.msra.mxu0 0.0
  %1066 = vmatprep.subr.mxu0 0.0
  %1067 = vmatpush1.msra.mxu0 0.0
  %1068 = vmatprep.subr.mxu0 0.0
  %1069 = vmatpush1.msra.mxu0 0.0
  %1070 = vmatprep.subr.mxu0 0.0
  %1071 = vmatpush1.msra.mxu0 0.0
  %1072 = vmatprep.subr.mxu0 0.0
  %1073 = vmatpush1.msra.mxu0 0.0
  %1074 = vmatprep.subr.mxu0 0.0
  %1075 = vmatpush1.msra.mxu0 0.0
  %1076 = vmatprep.subr.mxu0 0.0
  %1077 = vmatpush1.msra.mxu0 0.0
  %1078 = vmatprep.mubr.f32.mxu0 0.0
  %v1079 = vand.u32 %v84, 4294901760
  %1080 = vmatmul.mubr.f32.gmra.mrb[0].mxu0 %v1079
  %v1081 = vpop.f32.mrb[0].mxu0
  %v1082 = vadd.f32 %v356, %v1081
  %v1083 = vpop.f32.mrb[0].mxu0
  %1084 = vmatprep.mubr.f32.mxu0 0.0
  %v1085 = vand.u32 %v87, 4294901760
  %1086 = vmatmul.mubr.f32.gmra.mrb[0].mxu0 %v1085
  %v1087 = vpop.f32.mrb[0].mxu0
  %v1088 = vadd.f32 %v366, %v1087
  %v1089 = vpop.f32.mrb[0].mxu0
  %1090 = vmatprep.mubr.f32.mxu0 0.0
  %v1091 = vand.u32 %v90, 4294901760
  %1092 = vmatmul.mubr.f32.gmra.mrb[0].mxu0 %v1091
  %v1093 = vpop.f32.mrb[0].mxu0
  %v1094 = vadd.f32 %v376, %v1093
  %v1095 = vpop.f32.mrb[0].mxu0
  %1096 = vmatprep.mubr.f32.mxu0 0.0
  %v1097 = vand.u32 %v93, 4294901760
  %1098 = vmatmul.mubr.f32.gmra.mrb[0].mxu0 %v1097
  %v1099 = vpop.f32.mrb[0].mxu0
  %v1100 = vadd.f32 %v386, %v1099
  %v1101 = vpop.f32.mrb[0].mxu0
  %1102 = vmatprep.mubr.f32.mxu0 0.0
  %v1103 = vand.u32 %v96, 4294901760
  %1104 = vmatmul.mubr.f32.gmra.mrb[0].mxu0 %v1103
  %v1105 = vpop.f32.mrb[0].mxu0
  %v1106 = vadd.f32 %v396, %v1105
  %v1107 = vpop.f32.mrb[0].mxu0
  %1108 = vmatprep.mubr.f32.mxu0 0.0
  %v1109 = vand.u32 %v99, 4294901760
  %1110 = vmatmul.mubr.f32.gmra.mrb[0].mxu0 %v1109
  %v1111 = vpop.f32.mrb[0].mxu0
  %v1112 = vadd.f32 %v406, %v1111
  %v1113 = vpop.f32.mrb[0].mxu0
  %1114 = vmatprep.mubr.f32.mxu0 0.0
  %v1115 = vand.u32 %v102, 4294901760
  %1116 = vmatmul.mubr.f32.gmra.mrb[0].mxu0 %v1115
  %v1117 = vpop.f32.mrb[0].mxu0
  %v1118 = vadd.f32 %v416, %v1117
  %v1119 = vpop.f32.mrb[0].mxu0
  %1120 = vmatprep.mubr.f32.mxu0 0.0
  %v1121 = vand.u32 %v105, 4294901760
  %1122 = vmatmul.mubr.f32.gmra.mrb[0].mxu0 %v1121
  %v1123 = vpop.f32.mrb[0].mxu0
  %v1124 = vadd.f32 %v426, %v1123
  %v1125 = vpop.f32.mrb[0].mxu0
  %1126 = vmatprep.mubr.f32.mxu0 0.0
  %v1127 = vand.u32 %v108, 4294901760
  %1128 = vmatmul.mubr.f32.gmra.mrb[0].mxu0 %v1127
  %v1129 = vpop.f32.mrb[0].mxu0
  %v1130 = vadd.f32 %v436, %v1129
  %v1131 = vpop.f32.mrb[0].mxu0
  %1132 = vmatprep.mubr.f32.mxu0 0.0
  %v1133 = vand.u32 %v111, 4294901760
  %1134 = vmatmul.mubr.f32.gmra.mrb[0].mxu0 %v1133
  %v1135 = vpop.f32.mrb[0].mxu0
  %v1136 = vadd.f32 %v446, %v1135
  %v1137 = vpop.f32.mrb[0].mxu0
  %1138 = vmatprep.mubr.f32.mxu0 0.0
  %v1139 = vand.u32 %v114, 4294901760
  %1140 = vmatmul.mubr.f32.gmra.mrb[0].mxu0 %v1139
  %v1141 = vpop.f32.mrb[0].mxu0
  %v1142 = vadd.f32 %v456, %v1141
  %v1143 = vpop.f32.mrb[0].mxu0
  %1144 = vmatprep.mubr.f32.mxu0 0.0
  %v1145 = vand.u32 %v117, 4294901760
  %1146 = vmatmul.mubr.f32.gmra.mrb[0].mxu0 %v1145
  %v1147 = vpop.f32.mrb[0].mxu0
  %v1148 = vadd.f32 %v466, %v1147
  %v1149 = vpop.f32.mrb[0].mxu0
  %1150 = vmatprep.mubr.f32.mxu0 0.0
  %v1151 = vand.u32 %v120, 4294901760
  %1152 = vmatmul.mubr.f32.gmra.mrb[0].mxu0 %v1151
  %v1153 = vpop.f32.mrb[0].mxu0
  %v1154 = vadd.f32 %v476, %v1153
  %v1155 = vpop.f32.mrb[0].mxu0
  %1156 = vmatprep.mubr.f32.mxu0 0.0
  %v1157 = vand.u32 %v123, 4294901760
  %1158 = vmatmul.mubr.f32.gmra.mrb[0].mxu0 %v1157
  %v1159 = vpop.f32.mrb[0].mxu0
  %v1160 = vadd.f32 %v486, %v1159
  %v1161 = vpop.f32.mrb[0].mxu0
  %1162 = vmatprep.mubr.f32.mxu0 0.0
  %v1163 = vand.u32 %v126, 4294901760
  %1164 = vmatmul.mubr.f32.gmra.mrb[0].mxu0 %v1163
  %v1165 = vpop.f32.mrb[0].mxu0
  %v1166 = vadd.f32 %v496, %v1165
  %v1167 = vpop.f32.mrb[0].mxu0
  %1168 = vmatprep.mubr.f32.mxu0 0.0
  %v1169 = vand.u32 %v129, 4294901760
  %1170 = vmatmul.mubr.f32.gmra.mrb[0].mxu0 %v1169
  %v1171 = vpop.f32.mrb[0].mxu0
  %v1172 = vadd.f32 %v506, %v1171
  %v1173 = vpop.f32.mrb[0].mxu0
  %1174 = vmatprep.mubr.f32.mxu0 0.0
  %v1175 = vand.u32 %v132, 4294901760
  %1176 = vmatmul.mubr.f32.gmra.mrb[0].mxu0 %v1175
  %v1177 = vpop.f32.mrb[0].mxu0
  %v1178 = vadd.f32 %v516, %v1177
  %v1179 = vpop.f32.mrb[0].mxu0
  %1180 = vmatprep.mubr.f32.mxu0 0.0
  %v1181 = vand.u32 %v135, 4294901760
  %1182 = vmatmul.mubr.f32.gmra.mrb[0].mxu0 %v1181
  %v1183 = vpop.f32.mrb[0].mxu0
  %v1184 = vadd.f32 %v526, %v1183
  %v1185 = vpop.f32.mrb[0].mxu0
  %1186 = vmatprep.mubr.f32.mxu0 0.0
  %v1187 = vand.u32 %v138, 4294901760
  %1188 = vmatmul.mubr.f32.gmra.mrb[0].mxu0 %v1187
  %v1189 = vpop.f32.mrb[0].mxu0
  %v1190 = vadd.f32 %v536, %v1189
  %v1191 = vpop.f32.mrb[0].mxu0
  %1192 = vmatprep.mubr.f32.mxu0 0.0
  %v1193 = vand.u32 %v141, 4294901760
  %1194 = vmatmul.mubr.f32.gmra.mrb[0].mxu0 %v1193
  %v1195 = vpop.f32.mrb[0].mxu0
  %v1196 = vadd.f32 %v546, %v1195
  %v1197 = vpop.f32.mrb[0].mxu0
  %1198 = vmatprep.mubr.f32.mxu0 0.0
  %v1199 = vand.u32 %v144, 4294901760
  %1200 = vmatmul.mubr.f32.gmra.mrb[0].mxu0 %v1199
  %v1201 = vpop.f32.mrb[0].mxu0
  %v1202 = vadd.f32 %v556, %v1201
  %v1203 = vpop.f32.mrb[0].mxu0
  %1204 = vmatprep.mubr.f32.mxu0 0.0
  %v1205 = vand.u32 %v147, 4294901760
  %1206 = vmatmul.mubr.f32.gmra.mrb[0].mxu0 %v1205
  %v1207 = vpop.f32.mrb[0].mxu0
  %v1208 = vadd.f32 %v566, %v1207
  %v1209 = vpop.f32.mrb[0].mxu0
  %1210 = vmatprep.mubr.f32.mxu0 0.0
  %v1211 = vand.u32 %v150, 4294901760
  %1212 = vmatmul.mubr.f32.gmra.mrb[0].mxu0 %v1211
  %v1213 = vpop.f32.mrb[0].mxu0
  %v1214 = vadd.f32 %v576, %v1213
  %v1215 = vpop.f32.mrb[0].mxu0
  %1216 = vmatprep.mubr.f32.mxu0 0.0
  %v1217 = vand.u32 %v153, 4294901760
  %1218 = vmatmul.mubr.f32.gmra.mrb[0].mxu0 %v1217
  %v1219 = vpop.f32.mrb[0].mxu0
  %v1220 = vadd.f32 %v586, %v1219
  %v1221 = vpop.f32.mrb[0].mxu0
  %1222 = vmatprep.mubr.f32.mxu0 0.0
  %v1223 = vand.u32 %v156, 4294901760
  %1224 = vmatmul.mubr.f32.gmra.mrb[0].mxu0 %v1223
  %v1225 = vpop.f32.mrb[0].mxu0
  %v1226 = vadd.f32 %v596, %v1225
  %v1227 = vpop.f32.mrb[0].mxu0
  %1228 = vmatprep.mubr.f32.mxu0 0.0
  %v1229 = vand.u32 %v159, 4294901760
  %1230 = vmatmul.mubr.f32.gmra.mrb[0].mxu0 %v1229
  %v1231 = vpop.f32.mrb[0].mxu0
  %v1232 = vadd.f32 %v606, %v1231
  %v1233 = vpop.f32.mrb[0].mxu0
  %1234 = vmatprep.mubr.f32.mxu0 0.0
  %v1235 = vand.u32 %v162, 4294901760
  %1236 = vmatmul.mubr.f32.gmra.mrb[0].mxu0 %v1235
  %v1237 = vpop.f32.mrb[0].mxu0
  %v1238 = vadd.f32 %v616, %v1237
  %v1239 = vpop.f32.mrb[0].mxu0
  %1240 = vmatprep.mubr.f32.mxu0 0.0
  %v1241 = vand.u32 %v165, 4294901760
  %1242 = vmatmul.mubr.f32.gmra.mrb[0].mxu0 %v1241
  %v1243 = vpop.f32.mrb[0].mxu0
  %v1244 = vadd.f32 %v626, %v1243
  %v1245 = vpop.f32.mrb[0].mxu0
  %1246 = vmatprep.mubr.f32.mxu0 0.0
  %v1247 = vand.u32 %v168, 4294901760
  %1248 = vmatmul.mubr.f32.gmra.mrb[0].mxu0 %v1247
  %v1249 = vpop.f32.mrb[0].mxu0
  %v1250 = vadd.f32 %v636, %v1249
  %v1251 = vpop.f32.mrb[0].mxu0
  %1252 = vmatprep.mubr.f32.mxu0 0.0
  %v1253 = vand.u32 %v171, 4294901760
  %1254 = vmatmul.mubr.f32.gmra.mrb[0].mxu0 %v1253
  %v1255 = vpop.f32.mrb[0].mxu0
  %v1256 = vadd.f32 %v646, %v1255
  %v1257 = vpop.f32.mrb[0].mxu0
  %1258 = vmatprep.mubr.f32.mxu0 0.0
  %v1259 = vand.u32 %v174, 4294901760
  %1260 = vmatmul.mubr.f32.gmra.mrb[0].mxu0 %v1259
  %v1261 = vpop.f32.mrb[0].mxu0
  %v1262 = vadd.f32 %v656, %v1261
  %v1263 = vpop.f32.mrb[0].mxu0
  %1264 = vmatprep.mubr.f32.mxu0 0.0
  %v1265 = vand.u32 %v177, 4294901760
  %1266 = vmatmul.mubr.f32.gmra.mrb[0].mxu0 %v1265
  %v1267 = vpop.f32.mrb[0].mxu0
  %v1268 = vadd.f32 %v666, %v1267
  %v1269 = vpop.f32.mrb[0].mxu0
  %1270 = vmatprep.mubr.f32.mxu0 0.0
  %v1271 = vand.u32 %v180, 4294901760
  %1272 = vmatmul.mubr.f32.gmra.mrb[0].mxu0 %v1271
  %v1273 = vpop.f32.mrb[0].mxu0
  %v1274 = vadd.f32 %v676, %v1273
  %v1275 = vpop.f32.mrb[0].mxu0
  %1276 = vmatprep.mubr.f32.mxu0 0.0
  %v1277 = vand.u32 %v183, 4294901760
  %1278 = vmatmul.mubr.f32.gmra.mrb[0].mxu0 %v1277
  %v1279 = vpop.f32.mrb[0].mxu0
  %v1280 = vadd.f32 %v686, %v1279
  %v1281 = vpop.f32.mrb[0].mxu0
  %1282 = vmatprep.mubr.f32.mxu0 0.0
  %v1283 = vand.u32 %v186, 4294901760
  %1284 = vmatmul.mubr.f32.gmra.mrb[0].mxu0 %v1283
  %v1285 = vpop.f32.mrb[0].mxu0
  %v1286 = vadd.f32 %v696, %v1285
  %v1287 = vpop.f32.mrb[0].mxu0
  %1288 = vmatprep.mubr.f32.mxu0 0.0
  %v1289 = vand.u32 %v189, 4294901760
  %1290 = vmatmul.mubr.f32.gmra.mrb[0].mxu0 %v1289
  %v1291 = vpop.f32.mrb[0].mxu0
  %v1292 = vadd.f32 %v706, %v1291
  %v1293 = vpop.f32.mrb[0].mxu0
  %1294 = vmatprep.mubr.f32.mxu0 0.0
  %v1295 = vand.u32 %v192, 4294901760
  %1296 = vmatmul.mubr.f32.gmra.mrb[0].mxu0 %v1295
  %v1297 = vpop.f32.mrb[0].mxu0
  %v1298 = vadd.f32 %v716, %v1297
  %v1299 = vpop.f32.mrb[0].mxu0
  %1300 = vmatprep.mubr.f32.mxu0 0.0
  %v1301 = vand.u32 %v195, 4294901760
  %1302 = vmatmul.mubr.f32.gmra.mrb[0].mxu0 %v1301
  %v1303 = vpop.f32.mrb[0].mxu0
  %v1304 = vadd.f32 %v726, %v1303
  %v1305 = vpop.f32.mrb[0].mxu0
  %1306 = vmatprep.mubr.f32.mxu0 0.0
  %v1307 = vand.u32 %v198, 4294901760
  %1308 = vmatmul.mubr.f32.gmra.mrb[0].mxu0 %v1307
  %v1309 = vpop.f32.mrb[0].mxu0
  %v1310 = vadd.f32 %v736, %v1309
  %v1311 = vpop.f32.mrb[0].mxu0
  %1312 = vmatprep.mubr.f32.mxu0 0.0
  %v1313 = vand.u32 %v201, 4294901760
  %1314 = vmatmul.mubr.f32.gmra.mrb[0].mxu0 %v1313
  %v1315 = vpop.f32.mrb[0].mxu0
  %v1316 = vadd.f32 %v746, %v1315
  %v1317 = vpop.f32.mrb[0].mxu0
  %1318 = vmatprep.mubr.f32.mxu0 0.0
  %v1319 = vand.u32 %v204, 4294901760
  %1320 = vmatmul.mubr.f32.gmra.mrb[0].mxu0 %v1319
  %v1321 = vpop.f32.mrb[0].mxu0
  %v1322 = vadd.f32 %v756, %v1321
  %v1323 = vpop.f32.mrb[0].mxu0
  %1324 = vmatprep.mubr.f32.mxu0 0.0
  %v1325 = vand.u32 %v207, 4294901760
  %1326 = vmatmul.mubr.f32.gmra.mrb[0].mxu0 %v1325
  %v1327 = vpop.f32.mrb[0].mxu0
  %v1328 = vadd.f32 %v766, %v1327
  %v1329 = vpop.f32.mrb[0].mxu0
  %1330 = vmatprep.mubr.f32.mxu0 0.0
  %v1331 = vand.u32 %v210, 4294901760
  %1332 = vmatmul.mubr.f32.gmra.mrb[0].mxu0 %v1331
  %v1333 = vpop.f32.mrb[0].mxu0
  %v1334 = vadd.f32 %v776, %v1333
  %v1335 = vpop.f32.mrb[0].mxu0
  %1336 = vmatprep.mubr.f32.mxu0 0.0
  %v1337 = vand.u32 %v213, 4294901760
  %1338 = vmatmul.mubr.f32.gmra.mrb[0].mxu0 %v1337
  %v1339 = vpop.f32.mrb[0].mxu0
  %v1340 = vadd.f32 %v786, %v1339
  %v1341 = vpop.f32.mrb[0].mxu0
  %1342 = vmatprep.mubr.f32.mxu0 0.0
  %v1343 = vand.u32 %v216, 4294901760
  %1344 = vmatmul.mubr.f32.gmra.mrb[0].mxu0 %v1343
  %v1345 = vpop.f32.mrb[0].mxu0
  %v1346 = vadd.f32 %v796, %v1345
  %v1347 = vpop.f32.mrb[0].mxu0
  %1348 = vmatprep.mubr.f32.mxu0 0.0
  %v1349 = vand.u32 %v219, 4294901760
  %1350 = vmatmul.mubr.f32.gmra.mrb[0].mxu0 %v1349
  %v1351 = vpop.f32.mrb[0].mxu0
  %v1352 = vadd.f32 %v806, %v1351
  %v1353 = vpop.f32.mrb[0].mxu0
  %1354 = vmatprep.mubr.f32.mxu0 0.0
  %v1355 = vand.u32 %v222, 4294901760
  %1356 = vmatmul.mubr.f32.gmra.mrb[0].mxu0 %v1355
  %v1357 = vpop.f32.mrb[0].mxu0
  %v1358 = vadd.f32 %v816, %v1357
  %v1359 = vpop.f32.mrb[0].mxu0
  %1360 = vmatprep.mubr.f32.mxu0 0.0
  %v1361 = vand.u32 %v225, 4294901760
  %1362 = vmatmul.mubr.f32.gmra.mrb[0].mxu0 %v1361
  %v1363 = vpop.f32.mrb[0].mxu0
  %v1364 = vadd.f32 %v826, %v1363
  %v1365 = vpop.f32.mrb[0].mxu0
  %1366 = vmatprep.mubr.f32.mxu0 0.0
  %v1367 = vand.u32 %v228, 4294901760
  %1368 = vmatmul.mubr.f32.gmra.mrb[0].mxu0 %v1367
  %v1369 = vpop.f32.mrb[0].mxu0
  %v1370 = vadd.f32 %v836, %v1369
  %v1371 = vpop.f32.mrb[0].mxu0
  %1372 = vmatprep.mubr.f32.mxu0 0.0
  %v1373 = vand.u32 %v231, 4294901760
  %1374 = vmatmul.mubr.f32.gmra.mrb[0].mxu0 %v1373
  %v1375 = vpop.f32.mrb[0].mxu0
  %v1376 = vadd.f32 %v846, %v1375
  %v1377 = vpop.f32.mrb[0].mxu0
  %1378 = vmatprep.mubr.f32.mxu0 0.0
  %v1379 = vand.u32 %v234, 4294901760
  %1380 = vmatmul.mubr.f32.gmra.mrb[0].mxu0 %v1379
  %v1381 = vpop.f32.mrb[0].mxu0
  %v1382 = vadd.f32 %v856, %v1381
  %v1383 = vpop.f32.mrb[0].mxu0
  %1384 = vmatprep.mubr.f32.mxu0 0.0
  %v1385 = vand.u32 %v237, 4294901760
  %1386 = vmatmul.mubr.f32.gmra.mrb[0].mxu0 %v1385
  %v1387 = vpop.f32.mrb[0].mxu0
  %v1388 = vadd.f32 %v866, %v1387
  %v1389 = vpop.f32.mrb[0].mxu0
  %1390 = vmatprep.mubr.f32.mxu0 0.0
  %v1391 = vand.u32 %v240, 4294901760
  %1392 = vmatmul.mubr.f32.gmra.mrb[0].mxu0 %v1391
  %v1393 = vpop.f32.mrb[0].mxu0
  %v1394 = vadd.f32 %v876, %v1393
  %v1395 = vpop.f32.mrb[0].mxu0
  %1396 = vmatprep.mubr.f32.mxu0 0.0
  %v1397 = vand.u32 %v243, 4294901760
  %1398 = vmatmul.mubr.f32.gmra.mrb[0].mxu0 %v1397
  %v1399 = vpop.f32.mrb[0].mxu0
  %v1400 = vadd.f32 %v886, %v1399
  %v1401 = vpop.f32.mrb[0].mxu0
  %1402 = vmatprep.mubr.f32.mxu0 0.0
  %v1403 = vand.u32 %v246, 4294901760
  %1404 = vmatmul.mubr.f32.gmra.mrb[0].mxu0 %v1403
  %v1405 = vpop.f32.mrb[0].mxu0
  %v1406 = vadd.f32 %v896, %v1405
  %v1407 = vpop.f32.mrb[0].mxu0
  %1408 = vmatprep.mubr.f32.mxu0 0.0
  %v1409 = vand.u32 %v249, 4294901760
  %1410 = vmatmul.mubr.f32.gmra.mrb[0].mxu0 %v1409
  %v1411 = vpop.f32.mrb[0].mxu0
  %v1412 = vadd.f32 %v906, %v1411
  %v1413 = vpop.f32.mrb[0].mxu0
  %1414 = vmatprep.mubr.f32.mxu0 0.0
  %v1415 = vand.u32 %v252, 4294901760
  %1416 = vmatmul.mubr.f32.gmra.mrb[0].mxu0 %v1415
  %v1417 = vpop.f32.mrb[0].mxu0
  %v1418 = vadd.f32 %v916, %v1417
  %v1419 = vpop.f32.mrb[0].mxu0
  %1420 = vmatprep.mubr.f32.mxu0 0.0
  %v1421 = vand.u32 %v255, 4294901760
  %1422 = vmatmul.mubr.f32.gmra.mrb[0].mxu0 %v1421
  %v1423 = vpop.f32.mrb[0].mxu0
  %v1424 = vadd.f32 %v926, %v1423
  %v1425 = vpop.f32.mrb[0].mxu0
  %1426 = vmatprep.mubr.f32.mxu0 0.0
  %v1427 = vand.u32 %v258, 4294901760
  %1428 = vmatmul.mubr.f32.gmra.mrb[0].mxu0 %v1427
  %v1429 = vpop.f32.mrb[0].mxu0
  %v1430 = vadd.f32 %v936, %v1429
  %v1431 = vpop.f32.mrb[0].mxu0
  %1432 = vmatprep.mubr.f32.mxu0 0.0
  %v1433 = vand.u32 %v261, 4294901760
  %1434 = vmatmul.mubr.f32.gmra.mrb[0].mxu0 %v1433
  %v1435 = vpop.f32.mrb[0].mxu0
  %v1436 = vadd.f32 %v946, %v1435
  %v1437 = vpop.f32.mrb[0].mxu0
  %1438 = vmatprep.mubr.f32.mxu0 0.0
  %v1439 = vand.u32 %v264, 4294901760
  %1440 = vmatmul.mubr.f32.gmra.mrb[0].mxu0 %v1439
  %v1441 = vpop.f32.mrb[0].mxu0
  %v1442 = vadd.f32 %v956, %v1441
  %v1443 = vpop.f32.mrb[0].mxu0
  %1444 = vmatprep.mubr.f32.mxu0 0.0
  %v1445 = vand.u32 %v267, 4294901760
  %1446 = vmatmul.mubr.f32.gmra.mrb[0].mxu0 %v1445
  %v1447 = vpop.f32.mrb[0].mxu0
  %v1448 = vadd.f32 %v966, %v1447
  %v1449 = vpop.f32.mrb[0].mxu0
  %1450 = vmatprep.mubr.f32.mxu0 0.0
  %v1451 = vand.u32 %v270, 4294901760
  %1452 = vmatmul.mubr.f32.gmra.mrb[0].mxu0 %v1451
  %v1453 = vpop.f32.mrb[0].mxu0
  %v1454 = vadd.f32 %v976, %v1453
  %v1455 = vpop.f32.mrb[0].mxu0
  %1456 = vmatprep.mubr.f32.mxu0 0.0
  %v1457 = vand.u32 %v273, 4294901760
  %1458 = vmatmul.mubr.f32.gmra.mrb[0].mxu0 %v1457
  %v1459 = vpop.f32.mrb[0].mxu0
  %v1460 = vadd.f32 %v986, %v1459
  %v1461 = vpop.f32.mrb[0].mxu0
  %1462 = vdwg.mxu0
  %1463 = vmatprep.subr.mxu0 0.0
  %v1464 = vand.u32 %v77, 4294901760
  %v1465 = vsub.f32 %v77, %v1464
  %1466 = vmatpush1.msra.mxu0 %v1465
  %1467 = vmatprep.subr.mxu0 0.0
  %v1468 = vand.u32 %v78, 4294901760
  %v1469 = vsub.f32 %v78, %v1468
  %1470 = vmatpush1.msra.mxu0 %v1469
  %1471 = vmatprep.subr.mxu0 0.0
  %v1472 = vand.u32 %v79, 4294901760
  %v1473 = vsub.f32 %v79, %v1472
  %1474 = vmatpush1.msra.mxu0 %v1473
  %1475 = vmatprep.subr.mxu0 0.0
  %v1476 = vand.u32 %v80, 4294901760
  %v1477 = vsub.f32 %v80, %v1476
  %1478 = vmatpush1.msra.mxu0 %v1477
  %1479 = vmatprep.subr.mxu0 0.0
  %v1480 = vand.u32 %v277, 4294901760
  %v1481 = vsub.f32 %v277, %v1480
  %1482 = vmatpush1.msra.mxu0 %v1481
  %1483 = vmatprep.subr.mxu0 0.0
  %1484 = vmatpush1.msra.mxu0 0.0
  %1485 = vmatprep.subr.mxu0 0.0
  %1486 = vmatpush1.msra.mxu0 0.0
  %1487 = vmatprep.subr.mxu0 0.0
  %1488 = vmatpush1.msra.mxu0 0.0
  %1489 = vmatprep.subr.mxu0 0.0
  %1490 = vmatpush1.msra.mxu0 0.0
  %1491 = vmatprep.subr.mxu0 0.0
  %1492 = vmatpush1.msra.mxu0 0.0
  %1493 = vmatprep.subr.mxu0 0.0
  %1494 = vmatpush1.msra.mxu0 0.0
  %1495 = vmatprep.subr.mxu0 0.0
  %1496 = vmatpush1.msra.mxu0 0.0
  %1497 = vmatprep.subr.mxu0 0.0
  %1498 = vmatpush1.msra.mxu0 0.0
  %1499 = vmatprep.subr.mxu0 0.0
  %1500 = vmatpush1.msra.mxu0 0.0
  %1501 = vmatprep.subr.mxu0 0.0
  %1502 = vmatpush1.msra.mxu0 0.0
  %1503 = vmatprep.subr.mxu0 0.0
  %1504 = vmatpush1.msra.mxu0 0.0
  %1505 = vmatprep.subr.mxu0 0.0
  %1506 = vmatpush1.msra.mxu0 0.0
  %1507 = vmatprep.subr.mxu0 0.0
  %1508 = vmatpush1.msra.mxu0 0.0
  %1509 = vmatprep.subr.mxu0 0.0
  %1510 = vmatpush1.msra.mxu0 0.0
  %1511 = vmatprep.subr.mxu0 0.0
  %1512 = vmatpush1.msra.mxu0 0.0
  %1513 = vmatprep.subr.mxu0 0.0
  %1514 = vmatpush1.msra.mxu0 0.0
  %1515 = vmatprep.subr.mxu0 0.0
  %1516 = vmatpush1.msra.mxu0 0.0
  %1517 = vmatprep.subr.mxu0 0.0
  %1518 = vmatpush1.msra.mxu0 0.0
  %1519 = vmatprep.subr.mxu0 0.0
  %1520 = vmatpush1.msra.mxu0 0.0
  %1521 = vmatprep.subr.mxu0 0.0
  %1522 = vmatpush1.msra.mxu0 0.0
  %1523 = vmatprep.subr.mxu0 0.0
  %1524 = vmatpush1.msra.mxu0 0.0
  %1525 = vmatprep.subr.mxu0 0.0
  %1526 = vmatpush1.msra.mxu0 0.0
  %1527 = vmatprep.subr.mxu0 0.0
  %1528 = vmatpush1.msra.mxu0 0.0
  %1529 = vmatprep.subr.mxu0 0.0
  %1530 = vmatpush1.msra.mxu0 0.0
  %1531 = vmatprep.subr.mxu0 0.0
  %1532 = vmatpush1.msra.mxu0 0.0
  %1533 = vmatprep.subr.mxu0 0.0
  %1534 = vmatpush1.msra.mxu0 0.0
  %1535 = vmatprep.subr.mxu0 0.0
  %1536 = vmatpush1.msra.mxu0 0.0
  %1537 = vmatprep.mubr.f32.mxu0 0.0
  %v1538 = vand.u32 %v84, 4294901760
  %v1539 = vsub.f32 %v84, %v1538
  %1540 = vmatmul.mubr.f32.gmra.mrb[0].mxu0 %v1539
  %v1541 = vpop.f32.mrb[0].mxu0
  %v1542 = vadd.f32 %v1082, %v1541
  %v1543 = vpop.f32.mrb[0].mxu0
  %1544 = vmatprep.mubr.f32.mxu0 0.0
  %v1545 = vand.u32 %v87, 4294901760
  %v1546 = vsub.f32 %v87, %v1545
  %1547 = vmatmul.mubr.f32.gmra.mrb[0].mxu0 %v1546
  %v1548 = vpop.f32.mrb[0].mxu0
  %v1549 = vadd.f32 %v1088, %v1548
  %v1550 = vpop.f32.mrb[0].mxu0
  %1551 = vmatprep.mubr.f32.mxu0 0.0
  %v1552 = vand.u32 %v90, 4294901760
  %v1553 = vsub.f32 %v90, %v1552
  %1554 = vmatmul.mubr.f32.gmra.mrb[0].mxu0 %v1553
  %v1555 = vpop.f32.mrb[0].mxu0
  %v1556 = vadd.f32 %v1094, %v1555
  %v1557 = vpop.f32.mrb[0].mxu0
  %1558 = vmatprep.mubr.f32.mxu0 0.0
  %v1559 = vand.u32 %v93, 4294901760
  %v1560 = vsub.f32 %v93, %v1559
  %1561 = vmatmul.mubr.f32.gmra.mrb[0].mxu0 %v1560
  %v1562 = vpop.f32.mrb[0].mxu0
  %v1563 = vadd.f32 %v1100, %v1562
  %v1564 = vpop.f32.mrb[0].mxu0
  %1565 = vmatprep.mubr.f32.mxu0 0.0
  %v1566 = vand.u32 %v96, 4294901760
  %v1567 = vsub.f32 %v96, %v1566
  %1568 = vmatmul.mubr.f32.gmra.mrb[0].mxu0 %v1567
  %v1569 = vpop.f32.mrb[0].mxu0
  %v1570 = vadd.f32 %v1106, %v1569
  %v1571 = vpop.f32.mrb[0].mxu0
  %1572 = vmatprep.mubr.f32.mxu0 0.0
  %v1573 = vand.u32 %v99, 4294901760
  %v1574 = vsub.f32 %v99, %v1573
  %1575 = vmatmul.mubr.f32.gmra.mrb[0].mxu0 %v1574
  %v1576 = vpop.f32.mrb[0].mxu0
  %v1577 = vadd.f32 %v1112, %v1576
  %v1578 = vpop.f32.mrb[0].mxu0
  %1579 = vmatprep.mubr.f32.mxu0 0.0
  %v1580 = vand.u32 %v102, 4294901760
  %v1581 = vsub.f32 %v102, %v1580
  %1582 = vmatmul.mubr.f32.gmra.mrb[0].mxu0 %v1581
  %v1583 = vpop.f32.mrb[0].mxu0
  %v1584 = vadd.f32 %v1118, %v1583
  %v1585 = vpop.f32.mrb[0].mxu0
  %1586 = vmatprep.mubr.f32.mxu0 0.0
  %v1587 = vand.u32 %v105, 4294901760
  %v1588 = vsub.f32 %v105, %v1587
  %1589 = vmatmul.mubr.f32.gmra.mrb[0].mxu0 %v1588
  %v1590 = vpop.f32.mrb[0].mxu0
  %v1591 = vadd.f32 %v1124, %v1590
  %v1592 = vpop.f32.mrb[0].mxu0
  %1593 = vmatprep.mubr.f32.mxu0 0.0
  %v1594 = vand.u32 %v108, 4294901760
  %v1595 = vsub.f32 %v108, %v1594
  %1596 = vmatmul.mubr.f32.gmra.mrb[0].mxu0 %v1595
  %v1597 = vpop.f32.mrb[0].mxu0
  %v1598 = vadd.f32 %v1130, %v1597
  %v1599 = vpop.f32.mrb[0].mxu0
  %1600 = vmatprep.mubr.f32.mxu0 0.0
  %v1601 = vand.u32 %v111, 4294901760
  %v1602 = vsub.f32 %v111, %v1601
  %1603 = vmatmul.mubr.f32.gmra.mrb[0].mxu0 %v1602
  %v1604 = vpop.f32.mrb[0].mxu0
  %v1605 = vadd.f32 %v1136, %v1604
  %v1606 = vpop.f32.mrb[0].mxu0
  %1607 = vmatprep.mubr.f32.mxu0 0.0
  %v1608 = vand.u32 %v114, 4294901760
  %v1609 = vsub.f32 %v114, %v1608
  %1610 = vmatmul.mubr.f32.gmra.mrb[0].mxu0 %v1609
  %v1611 = vpop.f32.mrb[0].mxu0
  %v1612 = vadd.f32 %v1142, %v1611
  %v1613 = vpop.f32.mrb[0].mxu0
  %1614 = vmatprep.mubr.f32.mxu0 0.0
  %v1615 = vand.u32 %v117, 4294901760
  %v1616 = vsub.f32 %v117, %v1615
  %1617 = vmatmul.mubr.f32.gmra.mrb[0].mxu0 %v1616
  %v1618 = vpop.f32.mrb[0].mxu0
  %v1619 = vadd.f32 %v1148, %v1618
  %v1620 = vpop.f32.mrb[0].mxu0
  %1621 = vmatprep.mubr.f32.mxu0 0.0
  %v1622 = vand.u32 %v120, 4294901760
  %v1623 = vsub.f32 %v120, %v1622
  %1624 = vmatmul.mubr.f32.gmra.mrb[0].mxu0 %v1623
  %v1625 = vpop.f32.mrb[0].mxu0
  %v1626 = vadd.f32 %v1154, %v1625
  %v1627 = vpop.f32.mrb[0].mxu0
  %1628 = vmatprep.mubr.f32.mxu0 0.0
  %v1629 = vand.u32 %v123, 4294901760
  %v1630 = vsub.f32 %v123, %v1629
  %1631 = vmatmul.mubr.f32.gmra.mrb[0].mxu0 %v1630
  %v1632 = vpop.f32.mrb[0].mxu0
  %v1633 = vadd.f32 %v1160, %v1632
  %v1634 = vpop.f32.mrb[0].mxu0
  %1635 = vmatprep.mubr.f32.mxu0 0.0
  %v1636 = vand.u32 %v126, 4294901760
  %v1637 = vsub.f32 %v126, %v1636
  %1638 = vmatmul.mubr.f32.gmra.mrb[0].mxu0 %v1637
  %v1639 = vpop.f32.mrb[0].mxu0
  %v1640 = vadd.f32 %v1166, %v1639
  %v1641 = vpop.f32.mrb[0].mxu0
  %1642 = vmatprep.mubr.f32.mxu0 0.0
  %v1643 = vand.u32 %v129, 4294901760
  %v1644 = vsub.f32 %v129, %v1643
  %1645 = vmatmul.mubr.f32.gmra.mrb[0].mxu0 %v1644
  %v1646 = vpop.f32.mrb[0].mxu0
  %v1647 = vadd.f32 %v1172, %v1646
  %v1648 = vpop.f32.mrb[0].mxu0
  %1649 = vmatprep.mubr.f32.mxu0 0.0
  %v1650 = vand.u32 %v132, 4294901760
  %v1651 = vsub.f32 %v132, %v1650
  %1652 = vmatmul.mubr.f32.gmra.mrb[0].mxu0 %v1651
  %v1653 = vpop.f32.mrb[0].mxu0
  %v1654 = vadd.f32 %v1178, %v1653
  %v1655 = vpop.f32.mrb[0].mxu0
  %1656 = vmatprep.mubr.f32.mxu0 0.0
  %v1657 = vand.u32 %v135, 4294901760
  %v1658 = vsub.f32 %v135, %v1657
  %1659 = vmatmul.mubr.f32.gmra.mrb[0].mxu0 %v1658
  %v1660 = vpop.f32.mrb[0].mxu0
  %v1661 = vadd.f32 %v1184, %v1660
  %v1662 = vpop.f32.mrb[0].mxu0
  %1663 = vmatprep.mubr.f32.mxu0 0.0
  %v1664 = vand.u32 %v138, 4294901760
  %v1665 = vsub.f32 %v138, %v1664
  %1666 = vmatmul.mubr.f32.gmra.mrb[0].mxu0 %v1665
  %v1667 = vpop.f32.mrb[0].mxu0
  %v1668 = vadd.f32 %v1190, %v1667
  %v1669 = vpop.f32.mrb[0].mxu0
  %1670 = vmatprep.mubr.f32.mxu0 0.0
  %v1671 = vand.u32 %v141, 4294901760
  %v1672 = vsub.f32 %v141, %v1671
  %1673 = vmatmul.mubr.f32.gmra.mrb[0].mxu0 %v1672
  %v1674 = vpop.f32.mrb[0].mxu0
  %v1675 = vadd.f32 %v1196, %v1674
  %v1676 = vpop.f32.mrb[0].mxu0
  %1677 = vmatprep.mubr.f32.mxu0 0.0
  %v1678 = vand.u32 %v144, 4294901760
  %v1679 = vsub.f32 %v144, %v1678
  %1680 = vmatmul.mubr.f32.gmra.mrb[0].mxu0 %v1679
  %v1681 = vpop.f32.mrb[0].mxu0
  %v1682 = vadd.f32 %v1202, %v1681
  %v1683 = vpop.f32.mrb[0].mxu0
  %1684 = vmatprep.mubr.f32.mxu0 0.0
  %v1685 = vand.u32 %v147, 4294901760
  %v1686 = vsub.f32 %v147, %v1685
  %1687 = vmatmul.mubr.f32.gmra.mrb[0].mxu0 %v1686
  %v1688 = vpop.f32.mrb[0].mxu0
  %v1689 = vadd.f32 %v1208, %v1688
  %v1690 = vpop.f32.mrb[0].mxu0
  %1691 = vmatprep.mubr.f32.mxu0 0.0
  %v1692 = vand.u32 %v150, 4294901760
  %v1693 = vsub.f32 %v150, %v1692
  %1694 = vmatmul.mubr.f32.gmra.mrb[0].mxu0 %v1693
  %v1695 = vpop.f32.mrb[0].mxu0
  %v1696 = vadd.f32 %v1214, %v1695
  %v1697 = vpop.f32.mrb[0].mxu0
  %1698 = vmatprep.mubr.f32.mxu0 0.0
  %v1699 = vand.u32 %v153, 4294901760
  %v1700 = vsub.f32 %v153, %v1699
  %1701 = vmatmul.mubr.f32.gmra.mrb[0].mxu0 %v1700
  %v1702 = vpop.f32.mrb[0].mxu0
  %v1703 = vadd.f32 %v1220, %v1702
  %v1704 = vpop.f32.mrb[0].mxu0
  %1705 = vmatprep.mubr.f32.mxu0 0.0
  %v1706 = vand.u32 %v156, 4294901760
  %v1707 = vsub.f32 %v156, %v1706
  %1708 = vmatmul.mubr.f32.gmra.mrb[0].mxu0 %v1707
  %v1709 = vpop.f32.mrb[0].mxu0
  %v1710 = vadd.f32 %v1226, %v1709
  %v1711 = vpop.f32.mrb[0].mxu0
  %1712 = vmatprep.mubr.f32.mxu0 0.0
  %v1713 = vand.u32 %v159, 4294901760
  %v1714 = vsub.f32 %v159, %v1713
  %1715 = vmatmul.mubr.f32.gmra.mrb[0].mxu0 %v1714
  %v1716 = vpop.f32.mrb[0].mxu0
  %v1717 = vadd.f32 %v1232, %v1716
  %v1718 = vpop.f32.mrb[0].mxu0
  %1719 = vmatprep.mubr.f32.mxu0 0.0
  %v1720 = vand.u32 %v162, 4294901760
  %v1721 = vsub.f32 %v162, %v1720
  %1722 = vmatmul.mubr.f32.gmra.mrb[0].mxu0 %v1721
  %v1723 = vpop.f32.mrb[0].mxu0
  %v1724 = vadd.f32 %v1238, %v1723
  %v1725 = vpop.f32.mrb[0].mxu0
  %1726 = vmatprep.mubr.f32.mxu0 0.0
  %v1727 = vand.u32 %v165, 4294901760
  %v1728 = vsub.f32 %v165, %v1727
  %1729 = vmatmul.mubr.f32.gmra.mrb[0].mxu0 %v1728
  %v1730 = vpop.f32.mrb[0].mxu0
  %v1731 = vadd.f32 %v1244, %v1730
  %v1732 = vpop.f32.mrb[0].mxu0
  %1733 = vmatprep.mubr.f32.mxu0 0.0
  %v1734 = vand.u32 %v168, 4294901760
  %v1735 = vsub.f32 %v168, %v1734
  %1736 = vmatmul.mubr.f32.gmra.mrb[0].mxu0 %v1735
  %v1737 = vpop.f32.mrb[0].mxu0
  %v1738 = vadd.f32 %v1250, %v1737
  %v1739 = vpop.f32.mrb[0].mxu0
  %1740 = vmatprep.mubr.f32.mxu0 0.0
  %v1741 = vand.u32 %v171, 4294901760
  %v1742 = vsub.f32 %v171, %v1741
  %1743 = vmatmul.mubr.f32.gmra.mrb[0].mxu0 %v1742
  %v1744 = vpop.f32.mrb[0].mxu0
  %v1745 = vadd.f32 %v1256, %v1744
  %v1746 = vpop.f32.mrb[0].mxu0
  %1747 = vmatprep.mubr.f32.mxu0 0.0
  %v1748 = vand.u32 %v174, 4294901760
  %v1749 = vsub.f32 %v174, %v1748
  %1750 = vmatmul.mubr.f32.gmra.mrb[0].mxu0 %v1749
  %v1751 = vpop.f32.mrb[0].mxu0
  %v1752 = vadd.f32 %v1262, %v1751
  %v1753 = vpop.f32.mrb[0].mxu0
  %1754 = vmatprep.mubr.f32.mxu0 0.0
  %v1755 = vand.u32 %v177, 4294901760
  %v1756 = vsub.f32 %v177, %v1755
  %1757 = vmatmul.mubr.f32.gmra.mrb[0].mxu0 %v1756
  %v1758 = vpop.f32.mrb[0].mxu0
  %v1759 = vadd.f32 %v1268, %v1758
  %v1760 = vpop.f32.mrb[0].mxu0
  %1761 = vmatprep.mubr.f32.mxu0 0.0
  %v1762 = vand.u32 %v180, 4294901760
  %v1763 = vsub.f32 %v180, %v1762
  %1764 = vmatmul.mubr.f32.gmra.mrb[0].mxu0 %v1763
  %v1765 = vpop.f32.mrb[0].mxu0
  %v1766 = vadd.f32 %v1274, %v1765
  %v1767 = vpop.f32.mrb[0].mxu0
  %1768 = vmatprep.mubr.f32.mxu0 0.0
  %v1769 = vand.u32 %v183, 4294901760
  %v1770 = vsub.f32 %v183, %v1769
  %1771 = vmatmul.mubr.f32.gmra.mrb[0].mxu0 %v1770
  %v1772 = vpop.f32.mrb[0].mxu0
  %v1773 = vadd.f32 %v1280, %v1772
  %v1774 = vpop.f32.mrb[0].mxu0
  %1775 = vmatprep.mubr.f32.mxu0 0.0
  %v1776 = vand.u32 %v186, 4294901760
  %v1777 = vsub.f32 %v186, %v1776
  %1778 = vmatmul.mubr.f32.gmra.mrb[0].mxu0 %v1777
  %v1779 = vpop.f32.mrb[0].mxu0
  %v1780 = vadd.f32 %v1286, %v1779
  %v1781 = vpop.f32.mrb[0].mxu0
  %1782 = vmatprep.mubr.f32.mxu0 0.0
  %v1783 = vand.u32 %v189, 4294901760
  %v1784 = vsub.f32 %v189, %v1783
  %1785 = vmatmul.mubr.f32.gmra.mrb[0].mxu0 %v1784
  %v1786 = vpop.f32.mrb[0].mxu0
  %v1787 = vadd.f32 %v1292, %v1786
  %v1788 = vpop.f32.mrb[0].mxu0
  %1789 = vmatprep.mubr.f32.mxu0 0.0
  %v1790 = vand.u32 %v192, 4294901760
  %v1791 = vsub.f32 %v192, %v1790
  %1792 = vmatmul.mubr.f32.gmra.mrb[0].mxu0 %v1791
  %v1793 = vpop.f32.mrb[0].mxu0
  %v1794 = vadd.f32 %v1298, %v1793
  %v1795 = vpop.f32.mrb[0].mxu0
  %1796 = vmatprep.mubr.f32.mxu0 0.0
  %v1797 = vand.u32 %v195, 4294901760
  %v1798 = vsub.f32 %v195, %v1797
  %1799 = vmatmul.mubr.f32.gmra.mrb[0].mxu0 %v1798
  %v1800 = vpop.f32.mrb[0].mxu0
  %v1801 = vadd.f32 %v1304, %v1800
  %v1802 = vpop.f32.mrb[0].mxu0
  %1803 = vmatprep.mubr.f32.mxu0 0.0
  %v1804 = vand.u32 %v198, 4294901760
  %v1805 = vsub.f32 %v198, %v1804
  %1806 = vmatmul.mubr.f32.gmra.mrb[0].mxu0 %v1805
  %v1807 = vpop.f32.mrb[0].mxu0
  %v1808 = vadd.f32 %v1310, %v1807
  %v1809 = vpop.f32.mrb[0].mxu0
  %1810 = vmatprep.mubr.f32.mxu0 0.0
  %v1811 = vand.u32 %v201, 4294901760
  %v1812 = vsub.f32 %v201, %v1811
  %1813 = vmatmul.mubr.f32.gmra.mrb[0].mxu0 %v1812
  %v1814 = vpop.f32.mrb[0].mxu0
  %v1815 = vadd.f32 %v1316, %v1814
  %v1816 = vpop.f32.mrb[0].mxu0
  %1817 = vmatprep.mubr.f32.mxu0 0.0
  %v1818 = vand.u32 %v204, 4294901760
  %v1819 = vsub.f32 %v204, %v1818
  %1820 = vmatmul.mubr.f32.gmra.mrb[0].mxu0 %v1819
  %v1821 = vpop.f32.mrb[0].mxu0
  %v1822 = vadd.f32 %v1322, %v1821
  %v1823 = vpop.f32.mrb[0].mxu0
  %1824 = vmatprep.mubr.f32.mxu0 0.0
  %v1825 = vand.u32 %v207, 4294901760
  %v1826 = vsub.f32 %v207, %v1825
  %1827 = vmatmul.mubr.f32.gmra.mrb[0].mxu0 %v1826
  %v1828 = vpop.f32.mrb[0].mxu0
  %v1829 = vadd.f32 %v1328, %v1828
  %v1830 = vpop.f32.mrb[0].mxu0
  %1831 = vmatprep.mubr.f32.mxu0 0.0
  %v1832 = vand.u32 %v210, 4294901760
  %v1833 = vsub.f32 %v210, %v1832
  %1834 = vmatmul.mubr.f32.gmra.mrb[0].mxu0 %v1833
  %v1835 = vpop.f32.mrb[0].mxu0
  %v1836 = vadd.f32 %v1334, %v1835
  %v1837 = vpop.f32.mrb[0].mxu0
  %1838 = vmatprep.mubr.f32.mxu0 0.0
  %v1839 = vand.u32 %v213, 4294901760
  %v1840 = vsub.f32 %v213, %v1839
  %1841 = vmatmul.mubr.f32.gmra.mrb[0].mxu0 %v1840
  %v1842 = vpop.f32.mrb[0].mxu0
  %v1843 = vadd.f32 %v1340, %v1842
  %v1844 = vpop.f32.mrb[0].mxu0
  %1845 = vmatprep.mubr.f32.mxu0 0.0
  %v1846 = vand.u32 %v216, 4294901760
  %v1847 = vsub.f32 %v216, %v1846
  %1848 = vmatmul.mubr.f32.gmra.mrb[0].mxu0 %v1847
  %v1849 = vpop.f32.mrb[0].mxu0
  %v1850 = vadd.f32 %v1346, %v1849
  %v1851 = vpop.f32.mrb[0].mxu0
  %1852 = vmatprep.mubr.f32.mxu0 0.0
  %v1853 = vand.u32 %v219, 4294901760
  %v1854 = vsub.f32 %v219, %v1853
  %1855 = vmatmul.mubr.f32.gmra.mrb[0].mxu0 %v1854
  %v1856 = vpop.f32.mrb[0].mxu0
  %v1857 = vadd.f32 %v1352, %v1856
  %v1858 = vpop.f32.mrb[0].mxu0
  %1859 = vmatprep.mubr.f32.mxu0 0.0
  %v1860 = vand.u32 %v222, 4294901760
  %v1861 = vsub.f32 %v222, %v1860
  %1862 = vmatmul.mubr.f32.gmra.mrb[0].mxu0 %v1861
  %v1863 = vpop.f32.mrb[0].mxu0
  %v1864 = vadd.f32 %v1358, %v1863
  %v1865 = vpop.f32.mrb[0].mxu0
  %1866 = vmatprep.mubr.f32.mxu0 0.0
  %v1867 = vand.u32 %v225, 4294901760
  %v1868 = vsub.f32 %v225, %v1867
  %1869 = vmatmul.mubr.f32.gmra.mrb[0].mxu0 %v1868
  %v1870 = vpop.f32.mrb[0].mxu0
  %v1871 = vadd.f32 %v1364, %v1870
  %v1872 = vpop.f32.mrb[0].mxu0
  %1873 = vmatprep.mubr.f32.mxu0 0.0
  %v1874 = vand.u32 %v228, 4294901760
  %v1875 = vsub.f32 %v228, %v1874
  %1876 = vmatmul.mubr.f32.gmra.mrb[0].mxu0 %v1875
  %v1877 = vpop.f32.mrb[0].mxu0
  %v1878 = vadd.f32 %v1370, %v1877
  %v1879 = vpop.f32.mrb[0].mxu0
  %1880 = vmatprep.mubr.f32.mxu0 0.0
  %v1881 = vand.u32 %v231, 4294901760
  %v1882 = vsub.f32 %v231, %v1881
  %1883 = vmatmul.mubr.f32.gmra.mrb[0].mxu0 %v1882
  %v1884 = vpop.f32.mrb[0].mxu0
  %v1885 = vadd.f32 %v1376, %v1884
  %v1886 = vpop.f32.mrb[0].mxu0
  %1887 = vmatprep.mubr.f32.mxu0 0.0
  %v1888 = vand.u32 %v234, 4294901760
  %v1889 = vsub.f32 %v234, %v1888
  %1890 = vmatmul.mubr.f32.gmra.mrb[0].mxu0 %v1889
  %v1891 = vpop.f32.mrb[0].mxu0
  %v1892 = vadd.f32 %v1382, %v1891
  %v1893 = vpop.f32.mrb[0].mxu0
  %1894 = vmatprep.mubr.f32.mxu0 0.0
  %v1895 = vand.u32 %v237, 4294901760
  %v1896 = vsub.f32 %v237, %v1895
  %1897 = vmatmul.mubr.f32.gmra.mrb[0].mxu0 %v1896
  %v1898 = vpop.f32.mrb[0].mxu0
  %v1899 = vadd.f32 %v1388, %v1898
  %v1900 = vpop.f32.mrb[0].mxu0
  %1901 = vmatprep.mubr.f32.mxu0 0.0
  %v1902 = vand.u32 %v240, 4294901760
  %v1903 = vsub.f32 %v240, %v1902
  %1904 = vmatmul.mubr.f32.gmra.mrb[0].mxu0 %v1903
  %v1905 = vpop.f32.mrb[0].mxu0
  %v1906 = vadd.f32 %v1394, %v1905
  %v1907 = vpop.f32.mrb[0].mxu0
  %1908 = vmatprep.mubr.f32.mxu0 0.0
  %v1909 = vand.u32 %v243, 4294901760
  %v1910 = vsub.f32 %v243, %v1909
  %1911 = vmatmul.mubr.f32.gmra.mrb[0].mxu0 %v1910
  %v1912 = vpop.f32.mrb[0].mxu0
  %v1913 = vadd.f32 %v1400, %v1912
  %v1914 = vpop.f32.mrb[0].mxu0
  %1915 = vmatprep.mubr.f32.mxu0 0.0
  %v1916 = vand.u32 %v246, 4294901760
  %v1917 = vsub.f32 %v246, %v1916
  %1918 = vmatmul.mubr.f32.gmra.mrb[0].mxu0 %v1917
  %v1919 = vpop.f32.mrb[0].mxu0
  %v1920 = vadd.f32 %v1406, %v1919
  %v1921 = vpop.f32.mrb[0].mxu0
  %1922 = vmatprep.mubr.f32.mxu0 0.0
  %v1923 = vand.u32 %v249, 4294901760
  %v1924 = vsub.f32 %v249, %v1923
  %1925 = vmatmul.mubr.f32.gmra.mrb[0].mxu0 %v1924
  %v1926 = vpop.f32.mrb[0].mxu0
  %v1927 = vadd.f32 %v1412, %v1926
  %v1928 = vpop.f32.mrb[0].mxu0
  %1929 = vmatprep.mubr.f32.mxu0 0.0
  %v1930 = vand.u32 %v252, 4294901760
  %v1931 = vsub.f32 %v252, %v1930
  %1932 = vmatmul.mubr.f32.gmra.mrb[0].mxu0 %v1931
  %v1933 = vpop.f32.mrb[0].mxu0
  %v1934 = vadd.f32 %v1418, %v1933
  %v1935 = vpop.f32.mrb[0].mxu0
  %1936 = vmatprep.mubr.f32.mxu0 0.0
  %v1937 = vand.u32 %v255, 4294901760
  %v1938 = vsub.f32 %v255, %v1937
  %1939 = vmatmul.mubr.f32.gmra.mrb[0].mxu0 %v1938
  %v1940 = vpop.f32.mrb[0].mxu0
  %v1941 = vadd.f32 %v1424, %v1940
  %v1942 = vpop.f32.mrb[0].mxu0
  %1943 = vmatprep.mubr.f32.mxu0 0.0
  %v1944 = vand.u32 %v258, 4294901760
  %v1945 = vsub.f32 %v258, %v1944
  %1946 = vmatmul.mubr.f32.gmra.mrb[0].mxu0 %v1945
  %v1947 = vpop.f32.mrb[0].mxu0
  %v1948 = vadd.f32 %v1430, %v1947
  %v1949 = vpop.f32.mrb[0].mxu0
  %1950 = vmatprep.mubr.f32.mxu0 0.0
  %v1951 = vand.u32 %v261, 4294901760
  %v1952 = vsub.f32 %v261, %v1951
  %1953 = vmatmul.mubr.f32.gmra.mrb[0].mxu0 %v1952
  %v1954 = vpop.f32.mrb[0].mxu0
  %v1955 = vadd.f32 %v1436, %v1954
  %v1956 = vpop.f32.mrb[0].mxu0
  %1957 = vmatprep.mubr.f32.mxu0 0.0
  %v1958 = vand.u32 %v264, 4294901760
  %v1959 = vsub.f32 %v264, %v1958
  %1960 = vmatmul.mubr.f32.gmra.mrb[0].mxu0 %v1959
  %v1961 = vpop.f32.mrb[0].mxu0
  %v1962 = vadd.f32 %v1442, %v1961
  %v1963 = vpop.f32.mrb[0].mxu0
  %1964 = vmatprep.mubr.f32.mxu0 0.0
  %v1965 = vand.u32 %v267, 4294901760
  %v1966 = vsub.f32 %v267, %v1965
  %1967 = vmatmul.mubr.f32.gmra.mrb[0].mxu0 %v1966
  %v1968 = vpop.f32.mrb[0].mxu0
  %v1969 = vadd.f32 %v1448, %v1968
  %v1970 = vpop.f32.mrb[0].mxu0
  %1971 = vmatprep.mubr.f32.mxu0 0.0
  %v1972 = vand.u32 %v270, 4294901760
  %v1973 = vsub.f32 %v270, %v1972
  %1974 = vmatmul.mubr.f32.gmra.mrb[0].mxu0 %v1973
  %v1975 = vpop.f32.mrb[0].mxu0
  %v1976 = vadd.f32 %v1454, %v1975
  %v1977 = vpop.f32.mrb[0].mxu0
  %1978 = vmatprep.mubr.f32.mxu0 0.0
  %v1979 = vand.u32 %v273, 4294901760
  %v1980 = vsub.f32 %v273, %v1979
  %1981 = vmatmul.mubr.f32.gmra.mrb[0].mxu0 %v1980
  %v1982 = vpop.f32.mrb[0].mxu0
  %v1983 = vadd.f32 %v1460, %v1982
  %v1984 = vpop.f32.mrb[0].mxu0
  %1985 = vdwg.mxu0
  %1986 = vmatprep.subr.mxu0 0.0
  %v1987 = vand.u32 %v77, 4294901760
  %1988 = vmatpush1.msra.mxu0 %v1987
  %1989 = vmatprep.subr.mxu0 0.0
  %v1990 = vand.u32 %v78, 4294901760
  %1991 = vmatpush1.msra.mxu0 %v1990
  %1992 = vmatprep.subr.mxu0 0.0
  %v1993 = vand.u32 %v79, 4294901760
  %1994 = vmatpush1.msra.mxu0 %v1993
  %1995 = vmatprep.subr.mxu0 0.0
  %v1996 = vand.u32 %v80, 4294901760
  %1997 = vmatpush1.msra.mxu0 %v1996
  %1998 = vmatprep.subr.mxu0 0.0
  %v1999 = vand.u32 %v277, 4294901760
  %2000 = vmatpush1.msra.mxu0 %v1999
  %2001 = vmatprep.subr.mxu0 0.0
  %2002 = vmatpush1.msra.mxu0 0.0
  %2003 = vmatprep.subr.mxu0 0.0
  %2004 = vmatpush1.msra.mxu0 0.0
  %2005 = vmatprep.subr.mxu0 0.0
  %2006 = vmatpush1.msra.mxu0 0.0
  %2007 = vmatprep.subr.mxu0 0.0
  %2008 = vmatpush1.msra.mxu0 0.0
  %2009 = vmatprep.subr.mxu0 0.0
  %2010 = vmatpush1.msra.mxu0 0.0
  %2011 = vmatprep.subr.mxu0 0.0
  %2012 = vmatpush1.msra.mxu0 0.0
  %2013 = vmatprep.subr.mxu0 0.0
  %2014 = vmatpush1.msra.mxu0 0.0
  %2015 = vmatprep.subr.mxu0 0.0
  %2016 = vmatpush1.msra.mxu0 0.0
  %2017 = vmatprep.subr.mxu0 0.0
  %2018 = vmatpush1.msra.mxu0 0.0
  %2019 = vmatprep.subr.mxu0 0.0
  %2020 = vmatpush1.msra.mxu0 0.0
  %2021 = vmatprep.subr.mxu0 0.0
  %2022 = vmatpush1.msra.mxu0 0.0
  %2023 = vmatprep.subr.mxu0 0.0
  %2024 = vmatpush1.msra.mxu0 0.0
  %2025 = vmatprep.subr.mxu0 0.0
  %2026 = vmatpush1.msra.mxu0 0.0
  %2027 = vmatprep.subr.mxu0 0.0
  %2028 = vmatpush1.msra.mxu0 0.0
  %2029 = vmatprep.subr.mxu0 0.0
  %2030 = vmatpush1.msra.mxu0 0.0
  %2031 = vmatprep.subr.mxu0 0.0
  %2032 = vmatpush1.msra.mxu0 0.0
  %2033 = vmatprep.subr.mxu0 0.0
  %2034 = vmatpush1.msra.mxu0 0.0
  %2035 = vmatprep.subr.mxu0 0.0
  %2036 = vmatpush1.msra.mxu0 0.0
  %2037 = vmatprep.subr.mxu0 0.0
  %2038 = vmatpush1.msra.mxu0 0.0
  %2039 = vmatprep.subr.mxu0 0.0
  %2040 = vmatpush1.msra.mxu0 0.0
  %2041 = vmatprep.subr.mxu0 0.0
  %2042 = vmatpush1.msra.mxu0 0.0
  %2043 = vmatprep.subr.mxu0 0.0
  %2044 = vmatpush1.msra.mxu0 0.0
  %2045 = vmatprep.subr.mxu0 0.0
  %2046 = vmatpush1.msra.mxu0 0.0
  %2047 = vmatprep.subr.mxu0 0.0
  %2048 = vmatpush1.msra.mxu0 0.0
  %2049 = vmatprep.subr.mxu0 0.0
  %2050 = vmatpush1.msra.mxu0 0.0
  %2051 = vmatprep.subr.mxu0 0.0
  %2052 = vmatpush1.msra.mxu0 0.0
  %2053 = vmatprep.subr.mxu0 0.0
  %2054 = vmatpush1.msra.mxu0 0.0
  %2055 = vmatprep.mubr.f32.mxu0 0.0
  %v2056 = vand.u32 %v84, 4294901760
  %v2057 = vsub.f32 %v84, %v2056
  %v2058 = vand.u32 %v2057, 4294901760
  %2059 = vmatmul.mubr.f32.gmra.mrb[0].mxu0 %v2058
  %v2060 = vpop.f32.mrb[0].mxu0
  %v2061 = vadd.f32 %v1542, %v2060
  %v2062 = vpop.f32.mrb[0].mxu0
  %2063 = vmatprep.mubr.f32.mxu0 0.0
  %v2064 = vand.u32 %v87, 4294901760
  %v2065 = vsub.f32 %v87, %v2064
  %v2066 = vand.u32 %v2065, 4294901760
  %2067 = vmatmul.mubr.f32.gmra.mrb[0].mxu0 %v2066
  %v2068 = vpop.f32.mrb[0].mxu0
  %v2069 = vadd.f32 %v1549, %v2068
  %v2070 = vpop.f32.mrb[0].mxu0
  %2071 = vmatprep.mubr.f32.mxu0 0.0
  %v2072 = vand.u32 %v90, 4294901760
  %v2073 = vsub.f32 %v90, %v2072
  %v2074 = vand.u32 %v2073, 4294901760
  %2075 = vmatmul.mubr.f32.gmra.mrb[0].mxu0 %v2074
  %v2076 = vpop.f32.mrb[0].mxu0
  %v2077 = vadd.f32 %v1556, %v2076
  %v2078 = vpop.f32.mrb[0].mxu0
  %2079 = vmatprep.mubr.f32.mxu0 0.0
  %v2080 = vand.u32 %v93, 4294901760
  %v2081 = vsub.f32 %v93, %v2080
  %v2082 = vand.u32 %v2081, 4294901760
  %2083 = vmatmul.mubr.f32.gmra.mrb[0].mxu0 %v2082
  %v2084 = vpop.f32.mrb[0].mxu0
  %v2085 = vadd.f32 %v1563, %v2084
  %v2086 = vpop.f32.mrb[0].mxu0
  %2087 = vmatprep.mubr.f32.mxu0 0.0
  %v2088 = vand.u32 %v96, 4294901760
  %v2089 = vsub.f32 %v96, %v2088
  %v2090 = vand.u32 %v2089, 4294901760
  %2091 = vmatmul.mubr.f32.gmra.mrb[0].mxu0 %v2090
  %v2092 = vpop.f32.mrb[0].mxu0
  %v2093 = vadd.f32 %v1570, %v2092
  %v2094 = vpop.f32.mrb[0].mxu0
  %2095 = vmatprep.mubr.f32.mxu0 0.0
  %v2096 = vand.u32 %v99, 4294901760
  %v2097 = vsub.f32 %v99, %v2096
  %v2098 = vand.u32 %v2097, 4294901760
  %2099 = vmatmul.mubr.f32.gmra.mrb[0].mxu0 %v2098
  %v2100 = vpop.f32.mrb[0].mxu0
  %v2101 = vadd.f32 %v1577, %v2100
  %v2102 = vpop.f32.mrb[0].mxu0
  %2103 = vmatprep.mubr.f32.mxu0 0.0
  %v2104 = vand.u32 %v102, 4294901760
  %v2105 = vsub.f32 %v102, %v2104
  %v2106 = vand.u32 %v2105, 4294901760
  %2107 = vmatmul.mubr.f32.gmra.mrb[0].mxu0 %v2106
  %v2108 = vpop.f32.mrb[0].mxu0
  %v2109 = vadd.f32 %v1584, %v2108
  %v2110 = vpop.f32.mrb[0].mxu0
  %2111 = vmatprep.mubr.f32.mxu0 0.0
  %v2112 = vand.u32 %v105, 4294901760
  %v2113 = vsub.f32 %v105, %v2112
  %v2114 = vand.u32 %v2113, 4294901760
  %2115 = vmatmul.mubr.f32.gmra.mrb[0].mxu0 %v2114
  %v2116 = vpop.f32.mrb[0].mxu0
  %v2117 = vadd.f32 %v1591, %v2116
  %v2118 = vpop.f32.mrb[0].mxu0
  %2119 = vmatprep.mubr.f32.mxu0 0.0
  %v2120 = vand.u32 %v108, 4294901760
  %v2121 = vsub.f32 %v108, %v2120
  %v2122 = vand.u32 %v2121, 4294901760
  %2123 = vmatmul.mubr.f32.gmra.mrb[0].mxu0 %v2122
  %v2124 = vpop.f32.mrb[0].mxu0
  %v2125 = vadd.f32 %v1598, %v2124
  %v2126 = vpop.f32.mrb[0].mxu0
  %2127 = vmatprep.mubr.f32.mxu0 0.0
  %v2128 = vand.u32 %v111, 4294901760
  %v2129 = vsub.f32 %v111, %v2128
  %v2130 = vand.u32 %v2129, 4294901760
  %2131 = vmatmul.mubr.f32.gmra.mrb[0].mxu0 %v2130
  %v2132 = vpop.f32.mrb[0].mxu0
  %v2133 = vadd.f32 %v1605, %v2132
  %v2134 = vpop.f32.mrb[0].mxu0
  %2135 = vmatprep.mubr.f32.mxu0 0.0
  %v2136 = vand.u32 %v114, 4294901760
  %v2137 = vsub.f32 %v114, %v2136
  %v2138 = vand.u32 %v2137, 4294901760
  %2139 = vmatmul.mubr.f32.gmra.mrb[0].mxu0 %v2138
  %v2140 = vpop.f32.mrb[0].mxu0
  %v2141 = vadd.f32 %v1612, %v2140
  %v2142 = vpop.f32.mrb[0].mxu0
  %2143 = vmatprep.mubr.f32.mxu0 0.0
  %v2144 = vand.u32 %v117, 4294901760
  %v2145 = vsub.f32 %v117, %v2144
  %v2146 = vand.u32 %v2145, 4294901760
  %2147 = vmatmul.mubr.f32.gmra.mrb[0].mxu0 %v2146
  %v2148 = vpop.f32.mrb[0].mxu0
  %v2149 = vadd.f32 %v1619, %v2148
  %v2150 = vpop.f32.mrb[0].mxu0
  %2151 = vmatprep.mubr.f32.mxu0 0.0
  %v2152 = vand.u32 %v120, 4294901760
  %v2153 = vsub.f32 %v120, %v2152
  %v2154 = vand.u32 %v2153, 4294901760
  %2155 = vmatmul.mubr.f32.gmra.mrb[0].mxu0 %v2154
  %v2156 = vpop.f32.mrb[0].mxu0
  %v2157 = vadd.f32 %v1626, %v2156
  %v2158 = vpop.f32.mrb[0].mxu0
  %2159 = vmatprep.mubr.f32.mxu0 0.0
  %v2160 = vand.u32 %v123, 4294901760
  %v2161 = vsub.f32 %v123, %v2160
  %v2162 = vand.u32 %v2161, 4294901760
  %2163 = vmatmul.mubr.f32.gmra.mrb[0].mxu0 %v2162
  %v2164 = vpop.f32.mrb[0].mxu0
  %v2165 = vadd.f32 %v1633, %v2164
  %v2166 = vpop.f32.mrb[0].mxu0
  %2167 = vmatprep.mubr.f32.mxu0 0.0
  %v2168 = vand.u32 %v126, 4294901760
  %v2169 = vsub.f32 %v126, %v2168
  %v2170 = vand.u32 %v2169, 4294901760
  %2171 = vmatmul.mubr.f32.gmra.mrb[0].mxu0 %v2170
  %v2172 = vpop.f32.mrb[0].mxu0
  %v2173 = vadd.f32 %v1640, %v2172
  %v2174 = vpop.f32.mrb[0].mxu0
  %2175 = vmatprep.mubr.f32.mxu0 0.0
  %v2176 = vand.u32 %v129, 4294901760
  %v2177 = vsub.f32 %v129, %v2176
  %v2178 = vand.u32 %v2177, 4294901760
  %2179 = vmatmul.mubr.f32.gmra.mrb[0].mxu0 %v2178
  %v2180 = vpop.f32.mrb[0].mxu0
  %v2181 = vadd.f32 %v1647, %v2180
  %v2182 = vpop.f32.mrb[0].mxu0
  %2183 = vmatprep.mubr.f32.mxu0 0.0
  %v2184 = vand.u32 %v132, 4294901760
  %v2185 = vsub.f32 %v132, %v2184
  %v2186 = vand.u32 %v2185, 4294901760
  %2187 = vmatmul.mubr.f32.gmra.mrb[0].mxu0 %v2186
  %v2188 = vpop.f32.mrb[0].mxu0
  %v2189 = vadd.f32 %v1654, %v2188
  %v2190 = vpop.f32.mrb[0].mxu0
  %2191 = vmatprep.mubr.f32.mxu0 0.0
  %v2192 = vand.u32 %v135, 4294901760
  %v2193 = vsub.f32 %v135, %v2192
  %v2194 = vand.u32 %v2193, 4294901760
  %2195 = vmatmul.mubr.f32.gmra.mrb[0].mxu0 %v2194
  %v2196 = vpop.f32.mrb[0].mxu0
  %v2197 = vadd.f32 %v1661, %v2196
  %v2198 = vpop.f32.mrb[0].mxu0
  %2199 = vmatprep.mubr.f32.mxu0 0.0
  %v2200 = vand.u32 %v138, 4294901760
  %v2201 = vsub.f32 %v138, %v2200
  %v2202 = vand.u32 %v2201, 4294901760
  %2203 = vmatmul.mubr.f32.gmra.mrb[0].mxu0 %v2202
  %v2204 = vpop.f32.mrb[0].mxu0
  %v2205 = vadd.f32 %v1668, %v2204
  %v2206 = vpop.f32.mrb[0].mxu0
  %2207 = vmatprep.mubr.f32.mxu0 0.0
  %v2208 = vand.u32 %v141, 4294901760
  %v2209 = vsub.f32 %v141, %v2208
  %v2210 = vand.u32 %v2209, 4294901760
  %2211 = vmatmul.mubr.f32.gmra.mrb[0].mxu0 %v2210
  %v2212 = vpop.f32.mrb[0].mxu0
  %v2213 = vadd.f32 %v1675, %v2212
  %v2214 = vpop.f32.mrb[0].mxu0
  %2215 = vmatprep.mubr.f32.mxu0 0.0
  %v2216 = vand.u32 %v144, 4294901760
  %v2217 = vsub.f32 %v144, %v2216
  %v2218 = vand.u32 %v2217, 4294901760
  %2219 = vmatmul.mubr.f32.gmra.mrb[0].mxu0 %v2218
  %v2220 = vpop.f32.mrb[0].mxu0
  %v2221 = vadd.f32 %v1682, %v2220
  %v2222 = vpop.f32.mrb[0].mxu0
  %2223 = vmatprep.mubr.f32.mxu0 0.0
  %v2224 = vand.u32 %v147, 4294901760
  %v2225 = vsub.f32 %v147, %v2224
  %v2226 = vand.u32 %v2225, 4294901760
  %2227 = vmatmul.mubr.f32.gmra.mrb[0].mxu0 %v2226
  %v2228 = vpop.f32.mrb[0].mxu0
  %v2229 = vadd.f32 %v1689, %v2228
  %v2230 = vpop.f32.mrb[0].mxu0
  %2231 = vmatprep.mubr.f32.mxu0 0.0
  %v2232 = vand.u32 %v150, 4294901760
  %v2233 = vsub.f32 %v150, %v2232
  %v2234 = vand.u32 %v2233, 4294901760
  %2235 = vmatmul.mubr.f32.gmra.mrb[0].mxu0 %v2234
  %v2236 = vpop.f32.mrb[0].mxu0
  %v2237 = vadd.f32 %v1696, %v2236
  %v2238 = vpop.f32.mrb[0].mxu0
  %2239 = vmatprep.mubr.f32.mxu0 0.0
  %v2240 = vand.u32 %v153, 4294901760
  %v2241 = vsub.f32 %v153, %v2240
  %v2242 = vand.u32 %v2241, 4294901760
  %2243 = vmatmul.mubr.f32.gmra.mrb[0].mxu0 %v2242
  %v2244 = vpop.f32.mrb[0].mxu0
  %v2245 = vadd.f32 %v1703, %v2244
  %v2246 = vpop.f32.mrb[0].mxu0
  %2247 = vmatprep.mubr.f32.mxu0 0.0
  %v2248 = vand.u32 %v156, 4294901760
  %v2249 = vsub.f32 %v156, %v2248
  %v2250 = vand.u32 %v2249, 4294901760
  %2251 = vmatmul.mubr.f32.gmra.mrb[0].mxu0 %v2250
  %v2252 = vpop.f32.mrb[0].mxu0
  %v2253 = vadd.f32 %v1710, %v2252
  %v2254 = vpop.f32.mrb[0].mxu0
  %2255 = vmatprep.mubr.f32.mxu0 0.0
  %v2256 = vand.u32 %v159, 4294901760
  %v2257 = vsub.f32 %v159, %v2256
  %v2258 = vand.u32 %v2257, 4294901760
  %2259 = vmatmul.mubr.f32.gmra.mrb[0].mxu0 %v2258
  %v2260 = vpop.f32.mrb[0].mxu0
  %v2261 = vadd.f32 %v1717, %v2260
  %v2262 = vpop.f32.mrb[0].mxu0
  %2263 = vmatprep.mubr.f32.mxu0 0.0
  %v2264 = vand.u32 %v162, 4294901760
  %v2265 = vsub.f32 %v162, %v2264
  %v2266 = vand.u32 %v2265, 4294901760
  %2267 = vmatmul.mubr.f32.gmra.mrb[0].mxu0 %v2266
  %v2268 = vpop.f32.mrb[0].mxu0
  %v2269 = vadd.f32 %v1724, %v2268
  %v2270 = vpop.f32.mrb[0].mxu0
  %2271 = vmatprep.mubr.f32.mxu0 0.0
  %v2272 = vand.u32 %v165, 4294901760
  %v2273 = vsub.f32 %v165, %v2272
  %v2274 = vand.u32 %v2273, 4294901760
  %2275 = vmatmul.mubr.f32.gmra.mrb[0].mxu0 %v2274
  %v2276 = vpop.f32.mrb[0].mxu0
  %v2277 = vadd.f32 %v1731, %v2276
  %v2278 = vpop.f32.mrb[0].mxu0
  %2279 = vmatprep.mubr.f32.mxu0 0.0
  %v2280 = vand.u32 %v168, 4294901760
  %v2281 = vsub.f32 %v168, %v2280
  %v2282 = vand.u32 %v2281, 4294901760
  %2283 = vmatmul.mubr.f32.gmra.mrb[0].mxu0 %v2282
  %v2284 = vpop.f32.mrb[0].mxu0
  %v2285 = vadd.f32 %v1738, %v2284
  %v2286 = vpop.f32.mrb[0].mxu0
  %2287 = vmatprep.mubr.f32.mxu0 0.0
  %v2288 = vand.u32 %v171, 4294901760
  %v2289 = vsub.f32 %v171, %v2288
  %v2290 = vand.u32 %v2289, 4294901760
  %2291 = vmatmul.mubr.f32.gmra.mrb[0].mxu0 %v2290
  %v2292 = vpop.f32.mrb[0].mxu0
  %v2293 = vadd.f32 %v1745, %v2292
  %v2294 = vpop.f32.mrb[0].mxu0
  %2295 = vmatprep.mubr.f32.mxu0 0.0
  %v2296 = vand.u32 %v174, 4294901760
  %v2297 = vsub.f32 %v174, %v2296
  %v2298 = vand.u32 %v2297, 4294901760
  %2299 = vmatmul.mubr.f32.gmra.mrb[0].mxu0 %v2298
  %v2300 = vpop.f32.mrb[0].mxu0
  %v2301 = vadd.f32 %v1752, %v2300
  %v2302 = vpop.f32.mrb[0].mxu0
  %2303 = vmatprep.mubr.f32.mxu0 0.0
  %v2304 = vand.u32 %v177, 4294901760
  %v2305 = vsub.f32 %v177, %v2304
  %v2306 = vand.u32 %v2305, 4294901760
  %2307 = vmatmul.mubr.f32.gmra.mrb[0].mxu0 %v2306
  %v2308 = vpop.f32.mrb[0].mxu0
  %v2309 = vadd.f32 %v1759, %v2308
  %v2310 = vpop.f32.mrb[0].mxu0
  %2311 = vmatprep.mubr.f32.mxu0 0.0
  %v2312 = vand.u32 %v180, 4294901760
  %v2313 = vsub.f32 %v180, %v2312
  %v2314 = vand.u32 %v2313, 4294901760
  %2315 = vmatmul.mubr.f32.gmra.mrb[0].mxu0 %v2314
  %v2316 = vpop.f32.mrb[0].mxu0
  %v2317 = vadd.f32 %v1766, %v2316
  %v2318 = vpop.f32.mrb[0].mxu0
  %2319 = vmatprep.mubr.f32.mxu0 0.0
  %v2320 = vand.u32 %v183, 4294901760
  %v2321 = vsub.f32 %v183, %v2320
  %v2322 = vand.u32 %v2321, 4294901760
  %2323 = vmatmul.mubr.f32.gmra.mrb[0].mxu0 %v2322
  %v2324 = vpop.f32.mrb[0].mxu0
  %v2325 = vadd.f32 %v1773, %v2324
  %v2326 = vpop.f32.mrb[0].mxu0
  %2327 = vmatprep.mubr.f32.mxu0 0.0
  %v2328 = vand.u32 %v186, 4294901760
  %v2329 = vsub.f32 %v186, %v2328
  %v2330 = vand.u32 %v2329, 4294901760
  %2331 = vmatmul.mubr.f32.gmra.mrb[0].mxu0 %v2330
  %v2332 = vpop.f32.mrb[0].mxu0
  %v2333 = vadd.f32 %v1780, %v2332
  %v2334 = vpop.f32.mrb[0].mxu0
  %2335 = vmatprep.mubr.f32.mxu0 0.0
  %v2336 = vand.u32 %v189, 4294901760
  %v2337 = vsub.f32 %v189, %v2336
  %v2338 = vand.u32 %v2337, 4294901760
  %2339 = vmatmul.mubr.f32.gmra.mrb[0].mxu0 %v2338
  %v2340 = vpop.f32.mrb[0].mxu0
  %v2341 = vadd.f32 %v1787, %v2340
  %v2342 = vpop.f32.mrb[0].mxu0
  %2343 = vmatprep.mubr.f32.mxu0 0.0
  %v2344 = vand.u32 %v192, 4294901760
  %v2345 = vsub.f32 %v192, %v2344
  %v2346 = vand.u32 %v2345, 4294901760
  %2347 = vmatmul.mubr.f32.gmra.mrb[0].mxu0 %v2346
  %v2348 = vpop.f32.mrb[0].mxu0
  %v2349 = vadd.f32 %v1794, %v2348
  %v2350 = vpop.f32.mrb[0].mxu0
  %2351 = vmatprep.mubr.f32.mxu0 0.0
  %v2352 = vand.u32 %v195, 4294901760
  %v2353 = vsub.f32 %v195, %v2352
  %v2354 = vand.u32 %v2353, 4294901760
  %2355 = vmatmul.mubr.f32.gmra.mrb[0].mxu0 %v2354
  %v2356 = vpop.f32.mrb[0].mxu0
  %v2357 = vadd.f32 %v1801, %v2356
  %v2358 = vpop.f32.mrb[0].mxu0
  %2359 = vmatprep.mubr.f32.mxu0 0.0
  %v2360 = vand.u32 %v198, 4294901760
  %v2361 = vsub.f32 %v198, %v2360
  %v2362 = vand.u32 %v2361, 4294901760
  %2363 = vmatmul.mubr.f32.gmra.mrb[0].mxu0 %v2362
  %v2364 = vpop.f32.mrb[0].mxu0
  %v2365 = vadd.f32 %v1808, %v2364
  %v2366 = vpop.f32.mrb[0].mxu0
  %2367 = vmatprep.mubr.f32.mxu0 0.0
  %v2368 = vand.u32 %v201, 4294901760
  %v2369 = vsub.f32 %v201, %v2368
  %v2370 = vand.u32 %v2369, 4294901760
  %2371 = vmatmul.mubr.f32.gmra.mrb[0].mxu0 %v2370
  %v2372 = vpop.f32.mrb[0].mxu0
  %v2373 = vadd.f32 %v1815, %v2372
  %v2374 = vpop.f32.mrb[0].mxu0
  %2375 = vmatprep.mubr.f32.mxu0 0.0
  %v2376 = vand.u32 %v204, 4294901760
  %v2377 = vsub.f32 %v204, %v2376
  %v2378 = vand.u32 %v2377, 4294901760
  %2379 = vmatmul.mubr.f32.gmra.mrb[0].mxu0 %v2378
  %v2380 = vpop.f32.mrb[0].mxu0
  %v2381 = vadd.f32 %v1822, %v2380
  %v2382 = vpop.f32.mrb[0].mxu0
  %2383 = vmatprep.mubr.f32.mxu0 0.0
  %v2384 = vand.u32 %v207, 4294901760
  %v2385 = vsub.f32 %v207, %v2384
  %v2386 = vand.u32 %v2385, 4294901760
  %2387 = vmatmul.mubr.f32.gmra.mrb[0].mxu0 %v2386
  %v2388 = vpop.f32.mrb[0].mxu0
  %v2389 = vadd.f32 %v1829, %v2388
  %v2390 = vpop.f32.mrb[0].mxu0
  %2391 = vmatprep.mubr.f32.mxu0 0.0
  %v2392 = vand.u32 %v210, 4294901760
  %v2393 = vsub.f32 %v210, %v2392
  %v2394 = vand.u32 %v2393, 4294901760
  %2395 = vmatmul.mubr.f32.gmra.mrb[0].mxu0 %v2394
  %v2396 = vpop.f32.mrb[0].mxu0
  %v2397 = vadd.f32 %v1836, %v2396
  %v2398 = vpop.f32.mrb[0].mxu0
  %2399 = vmatprep.mubr.f32.mxu0 0.0
  %v2400 = vand.u32 %v213, 4294901760
  %v2401 = vsub.f32 %v213, %v2400
  %v2402 = vand.u32 %v2401, 4294901760
  %2403 = vmatmul.mubr.f32.gmra.mrb[0].mxu0 %v2402
  %v2404 = vpop.f32.mrb[0].mxu0
  %v2405 = vadd.f32 %v1843, %v2404
  %v2406 = vpop.f32.mrb[0].mxu0
  %2407 = vmatprep.mubr.f32.mxu0 0.0
  %v2408 = vand.u32 %v216, 4294901760
  %v2409 = vsub.f32 %v216, %v2408
  %v2410 = vand.u32 %v2409, 4294901760
  %2411 = vmatmul.mubr.f32.gmra.mrb[0].mxu0 %v2410
  %v2412 = vpop.f32.mrb[0].mxu0
  %v2413 = vadd.f32 %v1850, %v2412
  %v2414 = vpop.f32.mrb[0].mxu0
  %2415 = vmatprep.mubr.f32.mxu0 0.0
  %v2416 = vand.u32 %v219, 4294901760
  %v2417 = vsub.f32 %v219, %v2416
  %v2418 = vand.u32 %v2417, 4294901760
  %2419 = vmatmul.mubr.f32.gmra.mrb[0].mxu0 %v2418
  %v2420 = vpop.f32.mrb[0].mxu0
  %v2421 = vadd.f32 %v1857, %v2420
  %v2422 = vpop.f32.mrb[0].mxu0
  %2423 = vmatprep.mubr.f32.mxu0 0.0
  %v2424 = vand.u32 %v222, 4294901760
  %v2425 = vsub.f32 %v222, %v2424
  %v2426 = vand.u32 %v2425, 4294901760
  %2427 = vmatmul.mubr.f32.gmra.mrb[0].mxu0 %v2426
  %v2428 = vpop.f32.mrb[0].mxu0
  %v2429 = vadd.f32 %v1864, %v2428
  %v2430 = vpop.f32.mrb[0].mxu0
  %2431 = vmatprep.mubr.f32.mxu0 0.0
  %v2432 = vand.u32 %v225, 4294901760
  %v2433 = vsub.f32 %v225, %v2432
  %v2434 = vand.u32 %v2433, 4294901760
  %2435 = vmatmul.mubr.f32.gmra.mrb[0].mxu0 %v2434
  %v2436 = vpop.f32.mrb[0].mxu0
  %v2437 = vadd.f32 %v1871, %v2436
  %v2438 = vpop.f32.mrb[0].mxu0
  %2439 = vmatprep.mubr.f32.mxu0 0.0
  %v2440 = vand.u32 %v228, 4294901760
  %v2441 = vsub.f32 %v228, %v2440
  %v2442 = vand.u32 %v2441, 4294901760
  %2443 = vmatmul.mubr.f32.gmra.mrb[0].mxu0 %v2442
  %v2444 = vpop.f32.mrb[0].mxu0
  %v2445 = vadd.f32 %v1878, %v2444
  %v2446 = vpop.f32.mrb[0].mxu0
  %2447 = vmatprep.mubr.f32.mxu0 0.0
  %v2448 = vand.u32 %v231, 4294901760
  %v2449 = vsub.f32 %v231, %v2448
  %v2450 = vand.u32 %v2449, 4294901760
  %2451 = vmatmul.mubr.f32.gmra.mrb[0].mxu0 %v2450
  %v2452 = vpop.f32.mrb[0].mxu0
  %v2453 = vadd.f32 %v1885, %v2452
  %v2454 = vpop.f32.mrb[0].mxu0
  %2455 = vmatprep.mubr.f32.mxu0 0.0
  %v2456 = vand.u32 %v234, 4294901760
  %v2457 = vsub.f32 %v234, %v2456
  %v2458 = vand.u32 %v2457, 4294901760
  %2459 = vmatmul.mubr.f32.gmra.mrb[0].mxu0 %v2458
  %v2460 = vpop.f32.mrb[0].mxu0
  %v2461 = vadd.f32 %v1892, %v2460
  %v2462 = vpop.f32.mrb[0].mxu0
  %2463 = vmatprep.mubr.f32.mxu0 0.0
  %v2464 = vand.u32 %v237, 4294901760
  %v2465 = vsub.f32 %v237, %v2464
  %v2466 = vand.u32 %v2465, 4294901760
  %2467 = vmatmul.mubr.f32.gmra.mrb[0].mxu0 %v2466
  %v2468 = vpop.f32.mrb[0].mxu0
  %v2469 = vadd.f32 %v1899, %v2468
  %v2470 = vpop.f32.mrb[0].mxu0
  %2471 = vmatprep.mubr.f32.mxu0 0.0
  %v2472 = vand.u32 %v240, 4294901760
  %v2473 = vsub.f32 %v240, %v2472
  %v2474 = vand.u32 %v2473, 4294901760
  %2475 = vmatmul.mubr.f32.gmra.mrb[0].mxu0 %v2474
  %v2476 = vpop.f32.mrb[0].mxu0
  %v2477 = vadd.f32 %v1906, %v2476
  %v2478 = vpop.f32.mrb[0].mxu0
  %2479 = vmatprep.mubr.f32.mxu0 0.0
  %v2480 = vand.u32 %v243, 4294901760
  %v2481 = vsub.f32 %v243, %v2480
  %v2482 = vand.u32 %v2481, 4294901760
  %2483 = vmatmul.mubr.f32.gmra.mrb[0].mxu0 %v2482
  %v2484 = vpop.f32.mrb[0].mxu0
  %v2485 = vadd.f32 %v1913, %v2484
  %v2486 = vpop.f32.mrb[0].mxu0
  %2487 = vmatprep.mubr.f32.mxu0 0.0
  %v2488 = vand.u32 %v246, 4294901760
  %v2489 = vsub.f32 %v246, %v2488
  %v2490 = vand.u32 %v2489, 4294901760
  %2491 = vmatmul.mubr.f32.gmra.mrb[0].mxu0 %v2490
  %v2492 = vpop.f32.mrb[0].mxu0
  %v2493 = vadd.f32 %v1920, %v2492
  %v2494 = vpop.f32.mrb[0].mxu0
  %2495 = vmatprep.mubr.f32.mxu0 0.0
  %v2496 = vand.u32 %v249, 4294901760
  %v2497 = vsub.f32 %v249, %v2496
  %v2498 = vand.u32 %v2497, 4294901760
  %2499 = vmatmul.mubr.f32.gmra.mrb[0].mxu0 %v2498
  %v2500 = vpop.f32.mrb[0].mxu0
  %v2501 = vadd.f32 %v1927, %v2500
  %v2502 = vpop.f32.mrb[0].mxu0
  %2503 = vmatprep.mubr.f32.mxu0 0.0
  %v2504 = vand.u32 %v252, 4294901760
  %v2505 = vsub.f32 %v252, %v2504
  %v2506 = vand.u32 %v2505, 4294901760
  %2507 = vmatmul.mubr.f32.gmra.mrb[0].mxu0 %v2506
  %v2508 = vpop.f32.mrb[0].mxu0
  %v2509 = vadd.f32 %v1934, %v2508
  %v2510 = vpop.f32.mrb[0].mxu0
  %2511 = vmatprep.mubr.f32.mxu0 0.0
  %v2512 = vand.u32 %v255, 4294901760
  %v2513 = vsub.f32 %v255, %v2512
  %v2514 = vand.u32 %v2513, 4294901760
  %2515 = vmatmul.mubr.f32.gmra.mrb[0].mxu0 %v2514
  %v2516 = vpop.f32.mrb[0].mxu0
  %v2517 = vadd.f32 %v1941, %v2516
  %v2518 = vpop.f32.mrb[0].mxu0
  %2519 = vmatprep.mubr.f32.mxu0 0.0
  %v2520 = vand.u32 %v258, 4294901760
  %v2521 = vsub.f32 %v258, %v2520
  %v2522 = vand.u32 %v2521, 4294901760
  %2523 = vmatmul.mubr.f32.gmra.mrb[0].mxu0 %v2522
  %v2524 = vpop.f32.mrb[0].mxu0
  %v2525 = vadd.f32 %v1948, %v2524
  %v2526 = vpop.f32.mrb[0].mxu0
  %2527 = vmatprep.mubr.f32.mxu0 0.0
  %v2528 = vand.u32 %v261, 4294901760
  %v2529 = vsub.f32 %v261, %v2528
  %v2530 = vand.u32 %v2529, 4294901760
  %2531 = vmatmul.mubr.f32.gmra.mrb[0].mxu0 %v2530
  %v2532 = vpop.f32.mrb[0].mxu0
  %v2533 = vadd.f32 %v1955, %v2532
  %v2534 = vpop.f32.mrb[0].mxu0
  %2535 = vmatprep.mubr.f32.mxu0 0.0
  %v2536 = vand.u32 %v264, 4294901760
  %v2537 = vsub.f32 %v264, %v2536
  %v2538 = vand.u32 %v2537, 4294901760
  %2539 = vmatmul.mubr.f32.gmra.mrb[0].mxu0 %v2538
  %v2540 = vpop.f32.mrb[0].mxu0
  %v2541 = vadd.f32 %v1962, %v2540
  %v2542 = vpop.f32.mrb[0].mxu0
  %2543 = vmatprep.mubr.f32.mxu0 0.0
  %v2544 = vand.u32 %v267, 4294901760
  %v2545 = vsub.f32 %v267, %v2544
  %v2546 = vand.u32 %v2545, 4294901760
  %2547 = vmatmul.mubr.f32.gmra.mrb[0].mxu0 %v2546
  %v2548 = vpop.f32.mrb[0].mxu0
  %v2549 = vadd.f32 %v1969, %v2548
  %v2550 = vpop.f32.mrb[0].mxu0
  %2551 = vmatprep.mubr.f32.mxu0 0.0
  %v2552 = vand.u32 %v270, 4294901760
  %v2553 = vsub.f32 %v270, %v2552
  %v2554 = vand.u32 %v2553, 4294901760
  %2555 = vmatmul.mubr.f32.gmra.mrb[0].mxu0 %v2554
  %v2556 = vpop.f32.mrb[0].mxu0
  %v2557 = vadd.f32 %v1976, %v2556
  %v2558 = vpop.f32.mrb[0].mxu0
  %2559 = vmatprep.mubr.f32.mxu0 0.0
  %v2560 = vand.u32 %v273, 4294901760
  %v2561 = vsub.f32 %v273, %v2560
  %v2562 = vand.u32 %v2561, 4294901760
  %2563 = vmatmul.mubr.f32.gmra.mrb[0].mxu0 %v2562
  %v2564 = vpop.f32.mrb[0].mxu0
  %v2565 = vadd.f32 %v1983, %v2564
  %v2566 = vpop.f32.mrb[0].mxu0
  %2567 = vdwg.mxu0
  %2568 = vmatprep.subr.mxu0 0.0
  %v2569 = vand.u32 %v77, 4294901760
  %v2570 = vsub.f32 %v77, %v2569
  %v2571 = vand.u32 %v2570, 4294901760
  %2572 = vmatpush1.msra.mxu0 %v2571
  %2573 = vmatprep.subr.mxu0 0.0
  %v2574 = vand.u32 %v78, 4294901760
  %v2575 = vsub.f32 %v78, %v2574
  %v2576 = vand.u32 %v2575, 4294901760
  %2577 = vmatpush1.msra.mxu0 %v2576
  %2578 = vmatprep.subr.mxu0 0.0
  %v2579 = vand.u32 %v79, 4294901760
  %v2580 = vsub.f32 %v79, %v2579
  %v2581 = vand.u32 %v2580, 4294901760
  %2582 = vmatpush1.msra.mxu0 %v2581
  %2583 = vmatprep.subr.mxu0 0.0
  %v2584 = vand.u32 %v80, 4294901760
  %v2585 = vsub.f32 %v80, %v2584
  %v2586 = vand.u32 %v2585, 4294901760
  %2587 = vmatpush1.msra.mxu0 %v2586
  %2588 = vmatprep.subr.mxu0 0.0
  %v2589 = vand.u32 %v277, 4294901760
  %v2590 = vsub.f32 %v277, %v2589
  %v2591 = vand.u32 %v2590, 4294901760
  %2592 = vmatpush1.msra.mxu0 %v2591
  %2593 = vmatprep.subr.mxu0 0.0
  %2594 = vmatpush1.msra.mxu0 0.0
  %2595 = vmatprep.subr.mxu0 0.0
  %2596 = vmatpush1.msra.mxu0 0.0
  %2597 = vmatprep.subr.mxu0 0.0
  %2598 = vmatpush1.msra.mxu0 0.0
  %2599 = vmatprep.subr.mxu0 0.0
  %2600 = vmatpush1.msra.mxu0 0.0
  %2601 = vmatprep.subr.mxu0 0.0
  %2602 = vmatpush1.msra.mxu0 0.0
  %2603 = vmatprep.subr.mxu0 0.0
  %2604 = vmatpush1.msra.mxu0 0.0
  %2605 = vmatprep.subr.mxu0 0.0
  %2606 = vmatpush1.msra.mxu0 0.0
  %2607 = vmatprep.subr.mxu0 0.0
  %2608 = vmatpush1.msra.mxu0 0.0
  %2609 = vmatprep.subr.mxu0 0.0
  %2610 = vmatpush1.msra.mxu0 0.0
  %2611 = vmatprep.subr.mxu0 0.0
  %2612 = vmatpush1.msra.mxu0 0.0
  %2613 = vmatprep.subr.mxu0 0.0
  %2614 = vmatpush1.msra.mxu0 0.0
  %2615 = vmatprep.subr.mxu0 0.0
  %2616 = vmatpush1.msra.mxu0 0.0
  %2617 = vmatprep.subr.mxu0 0.0
  %2618 = vmatpush1.msra.mxu0 0.0
  %2619 = vmatprep.subr.mxu0 0.0
  %2620 = vmatpush1.msra.mxu0 0.0
  %2621 = vmatprep.subr.mxu0 0.0
  %2622 = vmatpush1.msra.mxu0 0.0
  %2623 = vmatprep.subr.mxu0 0.0
  %2624 = vmatpush1.msra.mxu0 0.0
  %2625 = vmatprep.subr.mxu0 0.0
  %2626 = vmatpush1.msra.mxu0 0.0
  %2627 = vmatprep.subr.mxu0 0.0
  %2628 = vmatpush1.msra.mxu0 0.0
  %2629 = vmatprep.subr.mxu0 0.0
  %2630 = vmatpush1.msra.mxu0 0.0
  %2631 = vmatprep.subr.mxu0 0.0
  %2632 = vmatpush1.msra.mxu0 0.0
  %2633 = vmatprep.subr.mxu0 0.0
  %2634 = vmatpush1.msra.mxu0 0.0
  %2635 = vmatprep.subr.mxu0 0.0
  %2636 = vmatpush1.msra.mxu0 0.0
  %2637 = vmatprep.subr.mxu0 0.0
  %2638 = vmatpush1.msra.mxu0 0.0
  %2639 = vmatprep.subr.mxu0 0.0
  %2640 = vmatpush1.msra.mxu0 0.0
  %2641 = vmatprep.subr.mxu0 0.0
  %2642 = vmatpush1.msra.mxu0 0.0
  %2643 = vmatprep.subr.mxu0 0.0
  %2644 = vmatpush1.msra.mxu0 0.0
  %2645 = vmatprep.subr.mxu0 0.0
  %2646 = vmatpush1.msra.mxu0 0.0
  %2647 = vmatprep.mubr.f32.mxu0 0.0
  %v2648 = vand.u32 %v84, 4294901760
  %2649 = vmatmul.mubr.f32.gmra.mrb[0].mxu0 %v2648
  %v2650 = vpop.f32.mrb[0].mxu0
  %v2651 = vadd.f32 %v2061, %v2650
  %v2652 = vpop.f32.mrb[0].mxu0
  %2653 = vmatprep.mubr.f32.mxu0 0.0
  %v2654 = vand.u32 %v87, 4294901760
  %2655 = vmatmul.mubr.f32.gmra.mrb[0].mxu0 %v2654
  %v2656 = vpop.f32.mrb[0].mxu0
  %v2657 = vadd.f32 %v2069, %v2656
  %v2658 = vpop.f32.mrb[0].mxu0
  %2659 = vmatprep.mubr.f32.mxu0 0.0
  %v2660 = vand.u32 %v90, 4294901760
  %2661 = vmatmul.mubr.f32.gmra.mrb[0].mxu0 %v2660
  %v2662 = vpop.f32.mrb[0].mxu0
  %v2663 = vadd.f32 %v2077, %v2662
  %v2664 = vpop.f32.mrb[0].mxu0
  %2665 = vmatprep.mubr.f32.mxu0 0.0
  %v2666 = vand.u32 %v93, 4294901760
  %2667 = vmatmul.mubr.f32.gmra.mrb[0].mxu0 %v2666
  %v2668 = vpop.f32.mrb[0].mxu0
  %v2669 = vadd.f32 %v2085, %v2668
  %v2670 = vpop.f32.mrb[0].mxu0
  %2671 = vmatprep.mubr.f32.mxu0 0.0
  %v2672 = vand.u32 %v96, 4294901760
  %2673 = vmatmul.mubr.f32.gmra.mrb[0].mxu0 %v2672
  %v2674 = vpop.f32.mrb[0].mxu0
  %v2675 = vadd.f32 %v2093, %v2674
  %v2676 = vpop.f32.mrb[0].mxu0
  %2677 = vmatprep.mubr.f32.mxu0 0.0
  %v2678 = vand.u32 %v99, 4294901760
  %2679 = vmatmul.mubr.f32.gmra.mrb[0].mxu0 %v2678
  %v2680 = vpop.f32.mrb[0].mxu0
  %v2681 = vadd.f32 %v2101, %v2680
  %v2682 = vpop.f32.mrb[0].mxu0
  %2683 = vmatprep.mubr.f32.mxu0 0.0
  %v2684 = vand.u32 %v102, 4294901760
  %2685 = vmatmul.mubr.f32.gmra.mrb[0].mxu0 %v2684
  %v2686 = vpop.f32.mrb[0].mxu0
  %v2687 = vadd.f32 %v2109, %v2686
  %v2688 = vpop.f32.mrb[0].mxu0
  %2689 = vmatprep.mubr.f32.mxu0 0.0
  %v2690 = vand.u32 %v105, 4294901760
  %2691 = vmatmul.mubr.f32.gmra.mrb[0].mxu0 %v2690
  %v2692 = vpop.f32.mrb[0].mxu0
  %v2693 = vadd.f32 %v2117, %v2692
  %v2694 = vpop.f32.mrb[0].mxu0
  %2695 = vmatprep.mubr.f32.mxu0 0.0
  %v2696 = vand.u32 %v108, 4294901760
  %2697 = vmatmul.mubr.f32.gmra.mrb[0].mxu0 %v2696
  %v2698 = vpop.f32.mrb[0].mxu0
  %v2699 = vadd.f32 %v2125, %v2698
  %v2700 = vpop.f32.mrb[0].mxu0
  %2701 = vmatprep.mubr.f32.mxu0 0.0
  %v2702 = vand.u32 %v111, 4294901760
  %2703 = vmatmul.mubr.f32.gmra.mrb[0].mxu0 %v2702
  %v2704 = vpop.f32.mrb[0].mxu0
  %v2705 = vadd.f32 %v2133, %v2704
  %v2706 = vpop.f32.mrb[0].mxu0
  %2707 = vmatprep.mubr.f32.mxu0 0.0
  %v2708 = vand.u32 %v114, 4294901760
  %2709 = vmatmul.mubr.f32.gmra.mrb[0].mxu0 %v2708
  %v2710 = vpop.f32.mrb[0].mxu0
  %v2711 = vadd.f32 %v2141, %v2710
  %v2712 = vpop.f32.mrb[0].mxu0
  %2713 = vmatprep.mubr.f32.mxu0 0.0
  %v2714 = vand.u32 %v117, 4294901760
  %2715 = vmatmul.mubr.f32.gmra.mrb[0].mxu0 %v2714
  %v2716 = vpop.f32.mrb[0].mxu0
  %v2717 = vadd.f32 %v2149, %v2716
  %v2718 = vpop.f32.mrb[0].mxu0
  %2719 = vmatprep.mubr.f32.mxu0 0.0
  %v2720 = vand.u32 %v120, 4294901760
  %2721 = vmatmul.mubr.f32.gmra.mrb[0].mxu0 %v2720
  %v2722 = vpop.f32.mrb[0].mxu0
  %v2723 = vadd.f32 %v2157, %v2722
  %v2724 = vpop.f32.mrb[0].mxu0
  %2725 = vmatprep.mubr.f32.mxu0 0.0
  %v2726 = vand.u32 %v123, 4294901760
  %2727 = vmatmul.mubr.f32.gmra.mrb[0].mxu0 %v2726
  %v2728 = vpop.f32.mrb[0].mxu0
  %v2729 = vadd.f32 %v2165, %v2728
  %v2730 = vpop.f32.mrb[0].mxu0
  %2731 = vmatprep.mubr.f32.mxu0 0.0
  %v2732 = vand.u32 %v126, 4294901760
  %2733 = vmatmul.mubr.f32.gmra.mrb[0].mxu0 %v2732
  %v2734 = vpop.f32.mrb[0].mxu0
  %v2735 = vadd.f32 %v2173, %v2734
  %v2736 = vpop.f32.mrb[0].mxu0
  %2737 = vmatprep.mubr.f32.mxu0 0.0
  %v2738 = vand.u32 %v129, 4294901760
  %2739 = vmatmul.mubr.f32.gmra.mrb[0].mxu0 %v2738
  %v2740 = vpop.f32.mrb[0].mxu0
  %v2741 = vadd.f32 %v2181, %v2740
  %v2742 = vpop.f32.mrb[0].mxu0
  %2743 = vmatprep.mubr.f32.mxu0 0.0
  %v2744 = vand.u32 %v132, 4294901760
  %2745 = vmatmul.mubr.f32.gmra.mrb[0].mxu0 %v2744
  %v2746 = vpop.f32.mrb[0].mxu0
  %v2747 = vadd.f32 %v2189, %v2746
  %v2748 = vpop.f32.mrb[0].mxu0
  %2749 = vmatprep.mubr.f32.mxu0 0.0
  %v2750 = vand.u32 %v135, 4294901760
  %2751 = vmatmul.mubr.f32.gmra.mrb[0].mxu0 %v2750
  %v2752 = vpop.f32.mrb[0].mxu0
  %v2753 = vadd.f32 %v2197, %v2752
  %v2754 = vpop.f32.mrb[0].mxu0
  %2755 = vmatprep.mubr.f32.mxu0 0.0
  %v2756 = vand.u32 %v138, 4294901760
  %2757 = vmatmul.mubr.f32.gmra.mrb[0].mxu0 %v2756
  %v2758 = vpop.f32.mrb[0].mxu0
  %v2759 = vadd.f32 %v2205, %v2758
  %v2760 = vpop.f32.mrb[0].mxu0
  %2761 = vmatprep.mubr.f32.mxu0 0.0
  %v2762 = vand.u32 %v141, 4294901760
  %2763 = vmatmul.mubr.f32.gmra.mrb[0].mxu0 %v2762
  %v2764 = vpop.f32.mrb[0].mxu0
  %v2765 = vadd.f32 %v2213, %v2764
  %v2766 = vpop.f32.mrb[0].mxu0
  %2767 = vmatprep.mubr.f32.mxu0 0.0
  %v2768 = vand.u32 %v144, 4294901760
  %2769 = vmatmul.mubr.f32.gmra.mrb[0].mxu0 %v2768
  %v2770 = vpop.f32.mrb[0].mxu0
  %v2771 = vadd.f32 %v2221, %v2770
  %v2772 = vpop.f32.mrb[0].mxu0
  %2773 = vmatprep.mubr.f32.mxu0 0.0
  %v2774 = vand.u32 %v147, 4294901760
  %2775 = vmatmul.mubr.f32.gmra.mrb[0].mxu0 %v2774
  %v2776 = vpop.f32.mrb[0].mxu0
  %v2777 = vadd.f32 %v2229, %v2776
  %v2778 = vpop.f32.mrb[0].mxu0
  %2779 = vmatprep.mubr.f32.mxu0 0.0
  %v2780 = vand.u32 %v150, 4294901760
  %2781 = vmatmul.mubr.f32.gmra.mrb[0].mxu0 %v2780
  %v2782 = vpop.f32.mrb[0].mxu0
  %v2783 = vadd.f32 %v2237, %v2782
  %v2784 = vpop.f32.mrb[0].mxu0
  %2785 = vmatprep.mubr.f32.mxu0 0.0
  %v2786 = vand.u32 %v153, 4294901760
  %2787 = vmatmul.mubr.f32.gmra.mrb[0].mxu0 %v2786
  %v2788 = vpop.f32.mrb[0].mxu0
  %v2789 = vadd.f32 %v2245, %v2788
  %v2790 = vpop.f32.mrb[0].mxu0
  %2791 = vmatprep.mubr.f32.mxu0 0.0
  %v2792 = vand.u32 %v156, 4294901760
  %2793 = vmatmul.mubr.f32.gmra.mrb[0].mxu0 %v2792
  %v2794 = vpop.f32.mrb[0].mxu0
  %v2795 = vadd.f32 %v2253, %v2794
  %v2796 = vpop.f32.mrb[0].mxu0
  %2797 = vmatprep.mubr.f32.mxu0 0.0
  %v2798 = vand.u32 %v159, 4294901760
  %2799 = vmatmul.mubr.f32.gmra.mrb[0].mxu0 %v2798
  %v2800 = vpop.f32.mrb[0].mxu0
  %v2801 = vadd.f32 %v2261, %v2800
  %v2802 = vpop.f32.mrb[0].mxu0
  %2803 = vmatprep.mubr.f32.mxu0 0.0
  %v2804 = vand.u32 %v162, 4294901760
  %2805 = vmatmul.mubr.f32.gmra.mrb[0].mxu0 %v2804
  %v2806 = vpop.f32.mrb[0].mxu0
  %v2807 = vadd.f32 %v2269, %v2806
  %v2808 = vpop.f32.mrb[0].mxu0
  %2809 = vmatprep.mubr.f32.mxu0 0.0
  %v2810 = vand.u32 %v165, 4294901760
  %2811 = vmatmul.mubr.f32.gmra.mrb[0].mxu0 %v2810
  %v2812 = vpop.f32.mrb[0].mxu0
  %v2813 = vadd.f32 %v2277, %v2812
  %v2814 = vpop.f32.mrb[0].mxu0
  %2815 = vmatprep.mubr.f32.mxu0 0.0
  %v2816 = vand.u32 %v168, 4294901760
  %2817 = vmatmul.mubr.f32.gmra.mrb[0].mxu0 %v2816
  %v2818 = vpop.f32.mrb[0].mxu0
  %v2819 = vadd.f32 %v2285, %v2818
  %v2820 = vpop.f32.mrb[0].mxu0
  %2821 = vmatprep.mubr.f32.mxu0 0.0
  %v2822 = vand.u32 %v171, 4294901760
  %2823 = vmatmul.mubr.f32.gmra.mrb[0].mxu0 %v2822
  %v2824 = vpop.f32.mrb[0].mxu0
  %v2825 = vadd.f32 %v2293, %v2824
  %v2826 = vpop.f32.mrb[0].mxu0
  %2827 = vmatprep.mubr.f32.mxu0 0.0
  %v2828 = vand.u32 %v174, 4294901760
  %2829 = vmatmul.mubr.f32.gmra.mrb[0].mxu0 %v2828
  %v2830 = vpop.f32.mrb[0].mxu0
  %v2831 = vadd.f32 %v2301, %v2830
  %v2832 = vpop.f32.mrb[0].mxu0
  %2833 = vmatprep.mubr.f32.mxu0 0.0
  %v2834 = vand.u32 %v177, 4294901760
  %2835 = vmatmul.mubr.f32.gmra.mrb[0].mxu0 %v2834
  %v2836 = vpop.f32.mrb[0].mxu0
  %v2837 = vadd.f32 %v2309, %v2836
  %v2838 = vpop.f32.mrb[0].mxu0
  %2839 = vmatprep.mubr.f32.mxu0 0.0
  %v2840 = vand.u32 %v180, 4294901760
  %2841 = vmatmul.mubr.f32.gmra.mrb[0].mxu0 %v2840
  %v2842 = vpop.f32.mrb[0].mxu0
  %v2843 = vadd.f32 %v2317, %v2842
  %v2844 = vpop.f32.mrb[0].mxu0
  %2845 = vmatprep.mubr.f32.mxu0 0.0
  %v2846 = vand.u32 %v183, 4294901760
  %2847 = vmatmul.mubr.f32.gmra.mrb[0].mxu0 %v2846
  %v2848 = vpop.f32.mrb[0].mxu0
  %v2849 = vadd.f32 %v2325, %v2848
  %v2850 = vpop.f32.mrb[0].mxu0
  %2851 = vmatprep.mubr.f32.mxu0 0.0
  %v2852 = vand.u32 %v186, 4294901760
  %2853 = vmatmul.mubr.f32.gmra.mrb[0].mxu0 %v2852
  %v2854 = vpop.f32.mrb[0].mxu0
  %v2855 = vadd.f32 %v2333, %v2854
  %v2856 = vpop.f32.mrb[0].mxu0
  %2857 = vmatprep.mubr.f32.mxu0 0.0
  %v2858 = vand.u32 %v189, 4294901760
  %2859 = vmatmul.mubr.f32.gmra.mrb[0].mxu0 %v2858
  %v2860 = vpop.f32.mrb[0].mxu0
  %v2861 = vadd.f32 %v2341, %v2860
  %v2862 = vpop.f32.mrb[0].mxu0
  %2863 = vmatprep.mubr.f32.mxu0 0.0
  %v2864 = vand.u32 %v192, 4294901760
  %2865 = vmatmul.mubr.f32.gmra.mrb[0].mxu0 %v2864
  %v2866 = vpop.f32.mrb[0].mxu0
  %v2867 = vadd.f32 %v2349, %v2866
  %v2868 = vpop.f32.mrb[0].mxu0
  %2869 = vmatprep.mubr.f32.mxu0 0.0
  %v2870 = vand.u32 %v195, 4294901760
  %2871 = vmatmul.mubr.f32.gmra.mrb[0].mxu0 %v2870
  %v2872 = vpop.f32.mrb[0].mxu0
  %v2873 = vadd.f32 %v2357, %v2872
  %v2874 = vpop.f32.mrb[0].mxu0
  %2875 = vmatprep.mubr.f32.mxu0 0.0
  %v2876 = vand.u32 %v198, 4294901760
  %2877 = vmatmul.mubr.f32.gmra.mrb[0].mxu0 %v2876
  %v2878 = vpop.f32.mrb[0].mxu0
  %v2879 = vadd.f32 %v2365, %v2878
  %v2880 = vpop.f32.mrb[0].mxu0
  %2881 = vmatprep.mubr.f32.mxu0 0.0
  %v2882 = vand.u32 %v201, 4294901760
  %2883 = vmatmul.mubr.f32.gmra.mrb[0].mxu0 %v2882
  %v2884 = vpop.f32.mrb[0].mxu0
  %v2885 = vadd.f32 %v2373, %v2884
  %v2886 = vpop.f32.mrb[0].mxu0
  %2887 = vmatprep.mubr.f32.mxu0 0.0
  %v2888 = vand.u32 %v204, 4294901760
  %2889 = vmatmul.mubr.f32.gmra.mrb[0].mxu0 %v2888
  %v2890 = vpop.f32.mrb[0].mxu0
  %v2891 = vadd.f32 %v2381, %v2890
  %v2892 = vpop.f32.mrb[0].mxu0
  %2893 = vmatprep.mubr.f32.mxu0 0.0
  %v2894 = vand.u32 %v207, 4294901760
  %2895 = vmatmul.mubr.f32.gmra.mrb[0].mxu0 %v2894
  %v2896 = vpop.f32.mrb[0].mxu0
  %v2897 = vadd.f32 %v2389, %v2896
  %v2898 = vpop.f32.mrb[0].mxu0
  %2899 = vmatprep.mubr.f32.mxu0 0.0
  %v2900 = vand.u32 %v210, 4294901760
  %2901 = vmatmul.mubr.f32.gmra.mrb[0].mxu0 %v2900
  %v2902 = vpop.f32.mrb[0].mxu0
  %v2903 = vadd.f32 %v2397, %v2902
  %v2904 = vpop.f32.mrb[0].mxu0
  %2905 = vmatprep.mubr.f32.mxu0 0.0
  %v2906 = vand.u32 %v213, 4294901760
  %2907 = vmatmul.mubr.f32.gmra.mrb[0].mxu0 %v2906
  %v2908 = vpop.f32.mrb[0].mxu0
  %v2909 = vadd.f32 %v2405, %v2908
  %v2910 = vpop.f32.mrb[0].mxu0
  %2911 = vmatprep.mubr.f32.mxu0 0.0
  %v2912 = vand.u32 %v216, 4294901760
  %2913 = vmatmul.mubr.f32.gmra.mrb[0].mxu0 %v2912
  %v2914 = vpop.f32.mrb[0].mxu0
  %v2915 = vadd.f32 %v2413, %v2914
  %v2916 = vpop.f32.mrb[0].mxu0
  %2917 = vmatprep.mubr.f32.mxu0 0.0
  %v2918 = vand.u32 %v219, 4294901760
  %2919 = vmatmul.mubr.f32.gmra.mrb[0].mxu0 %v2918
  %v2920 = vpop.f32.mrb[0].mxu0
  %v2921 = vadd.f32 %v2421, %v2920
  %v2922 = vpop.f32.mrb[0].mxu0
  %2923 = vmatprep.mubr.f32.mxu0 0.0
  %v2924 = vand.u32 %v222, 4294901760
  %2925 = vmatmul.mubr.f32.gmra.mrb[0].mxu0 %v2924
  %v2926 = vpop.f32.mrb[0].mxu0
  %v2927 = vadd.f32 %v2429, %v2926
  %v2928 = vpop.f32.mrb[0].mxu0
  %2929 = vmatprep.mubr.f32.mxu0 0.0
  %v2930 = vand.u32 %v225, 4294901760
  %2931 = vmatmul.mubr.f32.gmra.mrb[0].mxu0 %v2930
  %v2932 = vpop.f32.mrb[0].mxu0
  %v2933 = vadd.f32 %v2437, %v2932
  %v2934 = vpop.f32.mrb[0].mxu0
  %2935 = vmatprep.mubr.f32.mxu0 0.0
  %v2936 = vand.u32 %v228, 4294901760
  %2937 = vmatmul.mubr.f32.gmra.mrb[0].mxu0 %v2936
  %v2938 = vpop.f32.mrb[0].mxu0
  %v2939 = vadd.f32 %v2445, %v2938
  %v2940 = vpop.f32.mrb[0].mxu0
  %2941 = vmatprep.mubr.f32.mxu0 0.0
  %v2942 = vand.u32 %v231, 4294901760
  %2943 = vmatmul.mubr.f32.gmra.mrb[0].mxu0 %v2942
  %v2944 = vpop.f32.mrb[0].mxu0
  %v2945 = vadd.f32 %v2453, %v2944
  %v2946 = vpop.f32.mrb[0].mxu0
  %2947 = vmatprep.mubr.f32.mxu0 0.0
  %v2948 = vand.u32 %v234, 4294901760
  %2949 = vmatmul.mubr.f32.gmra.mrb[0].mxu0 %v2948
  %v2950 = vpop.f32.mrb[0].mxu0
  %v2951 = vadd.f32 %v2461, %v2950
  %v2952 = vpop.f32.mrb[0].mxu0
  %2953 = vmatprep.mubr.f32.mxu0 0.0
  %v2954 = vand.u32 %v237, 4294901760
  %2955 = vmatmul.mubr.f32.gmra.mrb[0].mxu0 %v2954
  %v2956 = vpop.f32.mrb[0].mxu0
  %v2957 = vadd.f32 %v2469, %v2956
  %v2958 = vpop.f32.mrb[0].mxu0
  %2959 = vmatprep.mubr.f32.mxu0 0.0
  %v2960 = vand.u32 %v240, 4294901760
  %2961 = vmatmul.mubr.f32.gmra.mrb[0].mxu0 %v2960
  %v2962 = vpop.f32.mrb[0].mxu0
  %v2963 = vadd.f32 %v2477, %v2962
  %v2964 = vpop.f32.mrb[0].mxu0
  %2965 = vmatprep.mubr.f32.mxu0 0.0
  %v2966 = vand.u32 %v243, 4294901760
  %2967 = vmatmul.mubr.f32.gmra.mrb[0].mxu0 %v2966
  %v2968 = vpop.f32.mrb[0].mxu0
  %v2969 = vadd.f32 %v2485, %v2968
  %v2970 = vpop.f32.mrb[0].mxu0
  %2971 = vmatprep.mubr.f32.mxu0 0.0
  %v2972 = vand.u32 %v246, 4294901760
  %2973 = vmatmul.mubr.f32.gmra.mrb[0].mxu0 %v2972
  %v2974 = vpop.f32.mrb[0].mxu0
  %v2975 = vadd.f32 %v2493, %v2974
  %v2976 = vpop.f32.mrb[0].mxu0
  %2977 = vmatprep.mubr.f32.mxu0 0.0
  %v2978 = vand.u32 %v249, 4294901760
  %2979 = vmatmul.mubr.f32.gmra.mrb[0].mxu0 %v2978
  %v2980 = vpop.f32.mrb[0].mxu0
  %v2981 = vadd.f32 %v2501, %v2980
  %v2982 = vpop.f32.mrb[0].mxu0
  %2983 = vmatprep.mubr.f32.mxu0 0.0
  %v2984 = vand.u32 %v252, 4294901760
  %2985 = vmatmul.mubr.f32.gmra.mrb[0].mxu0 %v2984
  %v2986 = vpop.f32.mrb[0].mxu0
  %v2987 = vadd.f32 %v2509, %v2986
  %v2988 = vpop.f32.mrb[0].mxu0
  %2989 = vmatprep.mubr.f32.mxu0 0.0
  %v2990 = vand.u32 %v255, 4294901760
  %2991 = vmatmul.mubr.f32.gmra.mrb[0].mxu0 %v2990
  %v2992 = vpop.f32.mrb[0].mxu0
  %v2993 = vadd.f32 %v2517, %v2992
  %v2994 = vpop.f32.mrb[0].mxu0
  %2995 = vmatprep.mubr.f32.mxu0 0.0
  %v2996 = vand.u32 %v258, 4294901760
  %2997 = vmatmul.mubr.f32.gmra.mrb[0].mxu0 %v2996
  %v2998 = vpop.f32.mrb[0].mxu0
  %v2999 = vadd.f32 %v2525, %v2998
  %v3000 = vpop.f32.mrb[0].mxu0
  %3001 = vmatprep.mubr.f32.mxu0 0.0
  %v3002 = vand.u32 %v261, 4294901760
  %3003 = vmatmul.mubr.f32.gmra.mrb[0].mxu0 %v3002
  %v3004 = vpop.f32.mrb[0].mxu0
  %v3005 = vadd.f32 %v2533, %v3004
  %v3006 = vpop.f32.mrb[0].mxu0
  %3007 = vmatprep.mubr.f32.mxu0 0.0
  %v3008 = vand.u32 %v264, 4294901760
  %3009 = vmatmul.mubr.f32.gmra.mrb[0].mxu0 %v3008
  %v3010 = vpop.f32.mrb[0].mxu0
  %v3011 = vadd.f32 %v2541, %v3010
  %v3012 = vpop.f32.mrb[0].mxu0
  %3013 = vmatprep.mubr.f32.mxu0 0.0
  %v3014 = vand.u32 %v267, 4294901760
  %3015 = vmatmul.mubr.f32.gmra.mrb[0].mxu0 %v3014
  %v3016 = vpop.f32.mrb[0].mxu0
  %v3017 = vadd.f32 %v2549, %v3016
  %v3018 = vpop.f32.mrb[0].mxu0
  %3019 = vmatprep.mubr.f32.mxu0 0.0
  %v3020 = vand.u32 %v270, 4294901760
  %3021 = vmatmul.mubr.f32.gmra.mrb[0].mxu0 %v3020
  %v3022 = vpop.f32.mrb[0].mxu0
  %v3023 = vadd.f32 %v2557, %v3022
  %v3024 = vpop.f32.mrb[0].mxu0
  %3025 = vmatprep.mubr.f32.mxu0 0.0
  %v3026 = vand.u32 %v273, 4294901760
  %3027 = vmatmul.mubr.f32.gmra.mrb[0].mxu0 %v3026
  %v3028 = vpop.f32.mrb[0].mxu0
  %v3029 = vadd.f32 %v2565, %v3028
  %v3030 = vpop.f32.mrb[0].mxu0
  %3031 = vdwg.mxu0
  %3032 = vmatprep.subr.mxu0 0.0
  %v3033 = vand.u32 %v77, 4294901760
  %3034 = vmatpush1.msra.mxu0 %v3033
  %3035 = vmatprep.subr.mxu0 0.0
  %v3036 = vand.u32 %v78, 4294901760
  %3037 = vmatpush1.msra.mxu0 %v3036
  %3038 = vmatprep.subr.mxu0 0.0
  %v3039 = vand.u32 %v79, 4294901760
  %3040 = vmatpush1.msra.mxu0 %v3039
  %3041 = vmatprep.subr.mxu0 0.0
  %v3042 = vand.u32 %v80, 4294901760
  %3043 = vmatpush1.msra.mxu0 %v3042
  %3044 = vmatprep.subr.mxu0 0.0
  %v3045 = vand.u32 %v277, 4294901760
  %3046 = vmatpush1.msra.mxu0 %v3045
  %3047 = vmatprep.subr.mxu0 0.0
  %3048 = vmatpush1.msra.mxu0 0.0
  %3049 = vmatprep.subr.mxu0 0.0
  %3050 = vmatpush1.msra.mxu0 0.0
  %3051 = vmatprep.subr.mxu0 0.0
  %3052 = vmatpush1.msra.mxu0 0.0
  %3053 = vmatprep.subr.mxu0 0.0
  %3054 = vmatpush1.msra.mxu0 0.0
  %3055 = vmatprep.subr.mxu0 0.0
  %3056 = vmatpush1.msra.mxu0 0.0
  %3057 = vmatprep.subr.mxu0 0.0
  %3058 = vmatpush1.msra.mxu0 0.0
  %3059 = vmatprep.subr.mxu0 0.0
  %3060 = vmatpush1.msra.mxu0 0.0
  %3061 = vmatprep.subr.mxu0 0.0
  %3062 = vmatpush1.msra.mxu0 0.0
  %3063 = vmatprep.subr.mxu0 0.0
  %3064 = vmatpush1.msra.mxu0 0.0
  %3065 = vmatprep.subr.mxu0 0.0
  %3066 = vmatpush1.msra.mxu0 0.0
  %3067 = vmatprep.subr.mxu0 0.0
  %3068 = vmatpush1.msra.mxu0 0.0
  %3069 = vmatprep.subr.mxu0 0.0
  %3070 = vmatpush1.msra.mxu0 0.0
  %3071 = vmatprep.subr.mxu0 0.0
  %3072 = vmatpush1.msra.mxu0 0.0
  %3073 = vmatprep.subr.mxu0 0.0
  %3074 = vmatpush1.msra.mxu0 0.0
  %3075 = vmatprep.subr.mxu0 0.0
  %3076 = vmatpush1.msra.mxu0 0.0
  %3077 = vmatprep.subr.mxu0 0.0
  %3078 = vmatpush1.msra.mxu0 0.0
  %3079 = vmatprep.subr.mxu0 0.0
  %3080 = vmatpush1.msra.mxu0 0.0
  %3081 = vmatprep.subr.mxu0 0.0
  %3082 = vmatpush1.msra.mxu0 0.0
  %3083 = vmatprep.subr.mxu0 0.0
  %3084 = vmatpush1.msra.mxu0 0.0
  %3085 = vmatprep.subr.mxu0 0.0
  %3086 = vmatpush1.msra.mxu0 0.0
  %3087 = vmatprep.subr.mxu0 0.0
  %3088 = vmatpush1.msra.mxu0 0.0
  %3089 = vmatprep.subr.mxu0 0.0
  %3090 = vmatpush1.msra.mxu0 0.0
  %3091 = vmatprep.subr.mxu0 0.0
  %3092 = vmatpush1.msra.mxu0 0.0
  %3093 = vmatprep.subr.mxu0 0.0
  %3094 = vmatpush1.msra.mxu0 0.0
  %3095 = vmatprep.subr.mxu0 0.0
  %3096 = vmatpush1.msra.mxu0 0.0
  %3097 = vmatprep.subr.mxu0 0.0
  %3098 = vmatpush1.msra.mxu0 0.0
  %3099 = vmatprep.subr.mxu0 0.0
  %3100 = vmatpush1.msra.mxu0 0.0
  %3101 = vmatprep.mubr.f32.mxu0 0.0
  %v3102 = vand.u32 %v84, 4294901760
  %3103 = vmatmul.mubr.f32.gmra.mrb[0].mxu0 %v3102
  %v3104 = vpop.f32.mrb[0].mxu0
  %v3105 = vadd.f32 %v2651, %v3104
  %v3106 = vpop.f32.mrb[0].mxu0
  %3107 = vmatprep.mubr.f32.mxu0 0.0
  %v3108 = vand.u32 %v87, 4294901760
  %3109 = vmatmul.mubr.f32.gmra.mrb[0].mxu0 %v3108
  %v3110 = vpop.f32.mrb[0].mxu0
  %v3111 = vadd.f32 %v2657, %v3110
  %v3112 = vpop.f32.mrb[0].mxu0
  %3113 = vmatprep.mubr.f32.mxu0 0.0
  %v3114 = vand.u32 %v90, 4294901760
  %3115 = vmatmul.mubr.f32.gmra.mrb[0].mxu0 %v3114
  %v3116 = vpop.f32.mrb[0].mxu0
  %v3117 = vadd.f32 %v2663, %v3116
  %v3118 = vpop.f32.mrb[0].mxu0
  %3119 = vmatprep.mubr.f32.mxu0 0.0
  %v3120 = vand.u32 %v93, 4294901760
  %3121 = vmatmul.mubr.f32.gmra.mrb[0].mxu0 %v3120
  %v3122 = vpop.f32.mrb[0].mxu0
  %v3123 = vadd.f32 %v2669, %v3122
  %v3124 = vpop.f32.mrb[0].mxu0
  %3125 = vmatprep.mubr.f32.mxu0 0.0
  %v3126 = vand.u32 %v96, 4294901760
  %3127 = vmatmul.mubr.f32.gmra.mrb[0].mxu0 %v3126
  %v3128 = vpop.f32.mrb[0].mxu0
  %v3129 = vadd.f32 %v2675, %v3128
  %v3130 = vpop.f32.mrb[0].mxu0
  %3131 = vmatprep.mubr.f32.mxu0 0.0
  %v3132 = vand.u32 %v99, 4294901760
  %3133 = vmatmul.mubr.f32.gmra.mrb[0].mxu0 %v3132
  %v3134 = vpop.f32.mrb[0].mxu0
  %v3135 = vadd.f32 %v2681, %v3134
  %v3136 = vpop.f32.mrb[0].mxu0
  %3137 = vmatprep.mubr.f32.mxu0 0.0
  %v3138 = vand.u32 %v102, 4294901760
  %3139 = vmatmul.mubr.f32.gmra.mrb[0].mxu0 %v3138
  %v3140 = vpop.f32.mrb[0].mxu0
  %v3141 = vadd.f32 %v2687, %v3140
  %v3142 = vpop.f32.mrb[0].mxu0
  %3143 = vmatprep.mubr.f32.mxu0 0.0
  %v3144 = vand.u32 %v105, 4294901760
  %3145 = vmatmul.mubr.f32.gmra.mrb[0].mxu0 %v3144
  %v3146 = vpop.f32.mrb[0].mxu0
  %v3147 = vadd.f32 %v2693, %v3146
  %v3148 = vpop.f32.mrb[0].mxu0
  %3149 = vmatprep.mubr.f32.mxu0 0.0
  %v3150 = vand.u32 %v108, 4294901760
  %3151 = vmatmul.mubr.f32.gmra.mrb[0].mxu0 %v3150
  %v3152 = vpop.f32.mrb[0].mxu0
  %v3153 = vadd.f32 %v2699, %v3152
  %v3154 = vpop.f32.mrb[0].mxu0
  %3155 = vmatprep.mubr.f32.mxu0 0.0
  %v3156 = vand.u32 %v111, 4294901760
  %3157 = vmatmul.mubr.f32.gmra.mrb[0].mxu0 %v3156
  %v3158 = vpop.f32.mrb[0].mxu0
  %v3159 = vadd.f32 %v2705, %v3158
  %v3160 = vpop.f32.mrb[0].mxu0
  %3161 = vmatprep.mubr.f32.mxu0 0.0
  %v3162 = vand.u32 %v114, 4294901760
  %3163 = vmatmul.mubr.f32.gmra.mrb[0].mxu0 %v3162
  %v3164 = vpop.f32.mrb[0].mxu0
  %v3165 = vadd.f32 %v2711, %v3164
  %v3166 = vpop.f32.mrb[0].mxu0
  %3167 = vmatprep.mubr.f32.mxu0 0.0
  %v3168 = vand.u32 %v117, 4294901760
  %3169 = vmatmul.mubr.f32.gmra.mrb[0].mxu0 %v3168
  %v3170 = vpop.f32.mrb[0].mxu0
  %v3171 = vadd.f32 %v2717, %v3170
  %v3172 = vpop.f32.mrb[0].mxu0
  %3173 = vmatprep.mubr.f32.mxu0 0.0
  %v3174 = vand.u32 %v120, 4294901760
  %3175 = vmatmul.mubr.f32.gmra.mrb[0].mxu0 %v3174
  %v3176 = vpop.f32.mrb[0].mxu0
  %v3177 = vadd.f32 %v2723, %v3176
  %v3178 = vpop.f32.mrb[0].mxu0
  %3179 = vmatprep.mubr.f32.mxu0 0.0
  %v3180 = vand.u32 %v123, 4294901760
  %3181 = vmatmul.mubr.f32.gmra.mrb[0].mxu0 %v3180
  %v3182 = vpop.f32.mrb[0].mxu0
  %v3183 = vadd.f32 %v2729, %v3182
  %v3184 = vpop.f32.mrb[0].mxu0
  %3185 = vmatprep.mubr.f32.mxu0 0.0
  %v3186 = vand.u32 %v126, 4294901760
  %3187 = vmatmul.mubr.f32.gmra.mrb[0].mxu0 %v3186
  %v3188 = vpop.f32.mrb[0].mxu0
  %v3189 = vadd.f32 %v2735, %v3188
  %v3190 = vpop.f32.mrb[0].mxu0
  %3191 = vmatprep.mubr.f32.mxu0 0.0
  %v3192 = vand.u32 %v129, 4294901760
  %3193 = vmatmul.mubr.f32.gmra.mrb[0].mxu0 %v3192
  %v3194 = vpop.f32.mrb[0].mxu0
  %v3195 = vadd.f32 %v2741, %v3194
  %v3196 = vpop.f32.mrb[0].mxu0
  %3197 = vmatprep.mubr.f32.mxu0 0.0
  %v3198 = vand.u32 %v132, 4294901760
  %3199 = vmatmul.mubr.f32.gmra.mrb[0].mxu0 %v3198
  %v3200 = vpop.f32.mrb[0].mxu0
  %v3201 = vadd.f32 %v2747, %v3200
  %v3202 = vpop.f32.mrb[0].mxu0
  %3203 = vmatprep.mubr.f32.mxu0 0.0
  %v3204 = vand.u32 %v135, 4294901760
  %3205 = vmatmul.mubr.f32.gmra.mrb[0].mxu0 %v3204
  %v3206 = vpop.f32.mrb[0].mxu0
  %v3207 = vadd.f32 %v2753, %v3206
  %v3208 = vpop.f32.mrb[0].mxu0
  %3209 = vmatprep.mubr.f32.mxu0 0.0
  %v3210 = vand.u32 %v138, 4294901760
  %3211 = vmatmul.mubr.f32.gmra.mrb[0].mxu0 %v3210
  %v3212 = vpop.f32.mrb[0].mxu0
  %v3213 = vadd.f32 %v2759, %v3212
  %v3214 = vpop.f32.mrb[0].mxu0
  %3215 = vmatprep.mubr.f32.mxu0 0.0
  %v3216 = vand.u32 %v141, 4294901760
  %3217 = vmatmul.mubr.f32.gmra.mrb[0].mxu0 %v3216
  %v3218 = vpop.f32.mrb[0].mxu0
  %v3219 = vadd.f32 %v2765, %v3218
  %v3220 = vpop.f32.mrb[0].mxu0
  %3221 = vmatprep.mubr.f32.mxu0 0.0
  %v3222 = vand.u32 %v144, 4294901760
  %3223 = vmatmul.mubr.f32.gmra.mrb[0].mxu0 %v3222
  %v3224 = vpop.f32.mrb[0].mxu0
  %v3225 = vadd.f32 %v2771, %v3224
  %v3226 = vpop.f32.mrb[0].mxu0
  %3227 = vmatprep.mubr.f32.mxu0 0.0
  %v3228 = vand.u32 %v147, 4294901760
  %3229 = vmatmul.mubr.f32.gmra.mrb[0].mxu0 %v3228
  %v3230 = vpop.f32.mrb[0].mxu0
  %v3231 = vadd.f32 %v2777, %v3230
  %v3232 = vpop.f32.mrb[0].mxu0
  %3233 = vmatprep.mubr.f32.mxu0 0.0
  %v3234 = vand.u32 %v150, 4294901760
  %3235 = vmatmul.mubr.f32.gmra.mrb[0].mxu0 %v3234
  %v3236 = vpop.f32.mrb[0].mxu0
  %v3237 = vadd.f32 %v2783, %v3236
  %v3238 = vpop.f32.mrb[0].mxu0
  %3239 = vmatprep.mubr.f32.mxu0 0.0
  %v3240 = vand.u32 %v153, 4294901760
  %3241 = vmatmul.mubr.f32.gmra.mrb[0].mxu0 %v3240
  %v3242 = vpop.f32.mrb[0].mxu0
  %v3243 = vadd.f32 %v2789, %v3242
  %v3244 = vpop.f32.mrb[0].mxu0
  %3245 = vmatprep.mubr.f32.mxu0 0.0
  %v3246 = vand.u32 %v156, 4294901760
  %3247 = vmatmul.mubr.f32.gmra.mrb[0].mxu0 %v3246
  %v3248 = vpop.f32.mrb[0].mxu0
  %v3249 = vadd.f32 %v2795, %v3248
  %v3250 = vpop.f32.mrb[0].mxu0
  %3251 = vmatprep.mubr.f32.mxu0 0.0
  %v3252 = vand.u32 %v159, 4294901760
  %3253 = vmatmul.mubr.f32.gmra.mrb[0].mxu0 %v3252
  %v3254 = vpop.f32.mrb[0].mxu0
  %v3255 = vadd.f32 %v2801, %v3254
  %v3256 = vpop.f32.mrb[0].mxu0
  %3257 = vmatprep.mubr.f32.mxu0 0.0
  %v3258 = vand.u32 %v162, 4294901760
  %3259 = vmatmul.mubr.f32.gmra.mrb[0].mxu0 %v3258
  %v3260 = vpop.f32.mrb[0].mxu0
  %v3261 = vadd.f32 %v2807, %v3260
  %v3262 = vpop.f32.mrb[0].mxu0
  %3263 = vmatprep.mubr.f32.mxu0 0.0
  %v3264 = vand.u32 %v165, 4294901760
  %3265 = vmatmul.mubr.f32.gmra.mrb[0].mxu0 %v3264
  %v3266 = vpop.f32.mrb[0].mxu0
  %v3267 = vadd.f32 %v2813, %v3266
  %v3268 = vpop.f32.mrb[0].mxu0
  %3269 = vmatprep.mubr.f32.mxu0 0.0
  %v3270 = vand.u32 %v168, 4294901760
  %3271 = vmatmul.mubr.f32.gmra.mrb[0].mxu0 %v3270
  %v3272 = vpop.f32.mrb[0].mxu0
  %v3273 = vadd.f32 %v2819, %v3272
  %v3274 = vpop.f32.mrb[0].mxu0
  %3275 = vmatprep.mubr.f32.mxu0 0.0
  %v3276 = vand.u32 %v171, 4294901760
  %3277 = vmatmul.mubr.f32.gmra.mrb[0].mxu0 %v3276
  %v3278 = vpop.f32.mrb[0].mxu0
  %v3279 = vadd.f32 %v2825, %v3278
  %v3280 = vpop.f32.mrb[0].mxu0
  %3281 = vmatprep.mubr.f32.mxu0 0.0
  %v3282 = vand.u32 %v174, 4294901760
  %3283 = vmatmul.mubr.f32.gmra.mrb[0].mxu0 %v3282
  %v3284 = vpop.f32.mrb[0].mxu0
  %v3285 = vadd.f32 %v2831, %v3284
  %v3286 = vpop.f32.mrb[0].mxu0
  %3287 = vmatprep.mubr.f32.mxu0 0.0
  %v3288 = vand.u32 %v177, 4294901760
  %3289 = vmatmul.mubr.f32.gmra.mrb[0].mxu0 %v3288
  %v3290 = vpop.f32.mrb[0].mxu0
  %v3291 = vadd.f32 %v2837, %v3290
  %v3292 = vpop.f32.mrb[0].mxu0
  %3293 = vmatprep.mubr.f32.mxu0 0.0
  %v3294 = vand.u32 %v180, 4294901760
  %3295 = vmatmul.mubr.f32.gmra.mrb[0].mxu0 %v3294
  %v3296 = vpop.f32.mrb[0].mxu0
  %v3297 = vadd.f32 %v2843, %v3296
  %v3298 = vpop.f32.mrb[0].mxu0
  %3299 = vmatprep.mubr.f32.mxu0 0.0
  %v3300 = vand.u32 %v183, 4294901760
  %3301 = vmatmul.mubr.f32.gmra.mrb[0].mxu0 %v3300
  %v3302 = vpop.f32.mrb[0].mxu0
  %v3303 = vadd.f32 %v2849, %v3302
  %v3304 = vpop.f32.mrb[0].mxu0
  %3305 = vmatprep.mubr.f32.mxu0 0.0
  %v3306 = vand.u32 %v186, 4294901760
  %3307 = vmatmul.mubr.f32.gmra.mrb[0].mxu0 %v3306
  %v3308 = vpop.f32.mrb[0].mxu0
  %v3309 = vadd.f32 %v2855, %v3308
  %v3310 = vpop.f32.mrb[0].mxu0
  %3311 = vmatprep.mubr.f32.mxu0 0.0
  %v3312 = vand.u32 %v189, 4294901760
  %3313 = vmatmul.mubr.f32.gmra.mrb[0].mxu0 %v3312
  %v3314 = vpop.f32.mrb[0].mxu0
  %v3315 = vadd.f32 %v2861, %v3314
  %v3316 = vpop.f32.mrb[0].mxu0
  %3317 = vmatprep.mubr.f32.mxu0 0.0
  %v3318 = vand.u32 %v192, 4294901760
  %3319 = vmatmul.mubr.f32.gmra.mrb[0].mxu0 %v3318
  %v3320 = vpop.f32.mrb[0].mxu0
  %v3321 = vadd.f32 %v2867, %v3320
  %v3322 = vpop.f32.mrb[0].mxu0
  %3323 = vmatprep.mubr.f32.mxu0 0.0
  %v3324 = vand.u32 %v195, 4294901760
  %3325 = vmatmul.mubr.f32.gmra.mrb[0].mxu0 %v3324
  %v3326 = vpop.f32.mrb[0].mxu0
  %v3327 = vadd.f32 %v2873, %v3326
  %v3328 = vpop.f32.mrb[0].mxu0
  %3329 = vmatprep.mubr.f32.mxu0 0.0
  %v3330 = vand.u32 %v198, 4294901760
  %3331 = vmatmul.mubr.f32.gmra.mrb[0].mxu0 %v3330
  %v3332 = vpop.f32.mrb[0].mxu0
  %v3333 = vadd.f32 %v2879, %v3332
  %v3334 = vpop.f32.mrb[0].mxu0
  %3335 = vmatprep.mubr.f32.mxu0 0.0
  %v3336 = vand.u32 %v201, 4294901760
  %3337 = vmatmul.mubr.f32.gmra.mrb[0].mxu0 %v3336
  %v3338 = vpop.f32.mrb[0].mxu0
  %v3339 = vadd.f32 %v2885, %v3338
  %v3340 = vpop.f32.mrb[0].mxu0
  %3341 = vmatprep.mubr.f32.mxu0 0.0
  %v3342 = vand.u32 %v204, 4294901760
  %3343 = vmatmul.mubr.f32.gmra.mrb[0].mxu0 %v3342
  %v3344 = vpop.f32.mrb[0].mxu0
  %v3345 = vadd.f32 %v2891, %v3344
  %v3346 = vpop.f32.mrb[0].mxu0
  %3347 = vmatprep.mubr.f32.mxu0 0.0
  %v3348 = vand.u32 %v207, 4294901760
  %3349 = vmatmul.mubr.f32.gmra.mrb[0].mxu0 %v3348
  %v3350 = vpop.f32.mrb[0].mxu0
  %v3351 = vadd.f32 %v2897, %v3350
  %v3352 = vpop.f32.mrb[0].mxu0
  %3353 = vmatprep.mubr.f32.mxu0 0.0
  %v3354 = vand.u32 %v210, 4294901760
  %3355 = vmatmul.mubr.f32.gmra.mrb[0].mxu0 %v3354
  %v3356 = vpop.f32.mrb[0].mxu0
  %v3357 = vadd.f32 %v2903, %v3356
  %v3358 = vpop.f32.mrb[0].mxu0
  %3359 = vmatprep.mubr.f32.mxu0 0.0
  %v3360 = vand.u32 %v213, 4294901760
  %3361 = vmatmul.mubr.f32.gmra.mrb[0].mxu0 %v3360
  %v3362 = vpop.f32.mrb[0].mxu0
  %v3363 = vadd.f32 %v2909, %v3362
  %v3364 = vpop.f32.mrb[0].mxu0
  %3365 = vmatprep.mubr.f32.mxu0 0.0
  %v3366 = vand.u32 %v216, 4294901760
  %3367 = vmatmul.mubr.f32.gmra.mrb[0].mxu0 %v3366
  %v3368 = vpop.f32.mrb[0].mxu0
  %v3369 = vadd.f32 %v2915, %v3368
  %v3370 = vpop.f32.mrb[0].mxu0
  %3371 = vmatprep.mubr.f32.mxu0 0.0
  %v3372 = vand.u32 %v219, 4294901760
  %3373 = vmatmul.mubr.f32.gmra.mrb[0].mxu0 %v3372
  %v3374 = vpop.f32.mrb[0].mxu0
  %v3375 = vadd.f32 %v2921, %v3374
  %v3376 = vpop.f32.mrb[0].mxu0
  %3377 = vmatprep.mubr.f32.mxu0 0.0
  %v3378 = vand.u32 %v222, 4294901760
  %3379 = vmatmul.mubr.f32.gmra.mrb[0].mxu0 %v3378
  %v3380 = vpop.f32.mrb[0].mxu0
  %v3381 = vadd.f32 %v2927, %v3380
  %v3382 = vpop.f32.mrb[0].mxu0
  %3383 = vmatprep.mubr.f32.mxu0 0.0
  %v3384 = vand.u32 %v225, 4294901760
  %3385 = vmatmul.mubr.f32.gmra.mrb[0].mxu0 %v3384
  %v3386 = vpop.f32.mrb[0].mxu0
  %v3387 = vadd.f32 %v2933, %v3386
  %v3388 = vpop.f32.mrb[0].mxu0
  %3389 = vmatprep.mubr.f32.mxu0 0.0
  %v3390 = vand.u32 %v228, 4294901760
  %3391 = vmatmul.mubr.f32.gmra.mrb[0].mxu0 %v3390
  %v3392 = vpop.f32.mrb[0].mxu0
  %v3393 = vadd.f32 %v2939, %v3392
  %v3394 = vpop.f32.mrb[0].mxu0
  %3395 = vmatprep.mubr.f32.mxu0 0.0
  %v3396 = vand.u32 %v231, 4294901760
  %3397 = vmatmul.mubr.f32.gmra.mrb[0].mxu0 %v3396
  %v3398 = vpop.f32.mrb[0].mxu0
  %v3399 = vadd.f32 %v2945, %v3398
  %v3400 = vpop.f32.mrb[0].mxu0
  %3401 = vmatprep.mubr.f32.mxu0 0.0
  %v3402 = vand.u32 %v234, 4294901760
  %3403 = vmatmul.mubr.f32.gmra.mrb[0].mxu0 %v3402
  %v3404 = vpop.f32.mrb[0].mxu0
  %v3405 = vadd.f32 %v2951, %v3404
  %v3406 = vpop.f32.mrb[0].mxu0
  %3407 = vmatprep.mubr.f32.mxu0 0.0
  %v3408 = vand.u32 %v237, 4294901760
  %3409 = vmatmul.mubr.f32.gmra.mrb[0].mxu0 %v3408
  %v3410 = vpop.f32.mrb[0].mxu0
  %v3411 = vadd.f32 %v2957, %v3410
  %v3412 = vpop.f32.mrb[0].mxu0
  %3413 = vmatprep.mubr.f32.mxu0 0.0
  %v3414 = vand.u32 %v240, 4294901760
  %3415 = vmatmul.mubr.f32.gmra.mrb[0].mxu0 %v3414
  %v3416 = vpop.f32.mrb[0].mxu0
  %v3417 = vadd.f32 %v2963, %v3416
  %v3418 = vpop.f32.mrb[0].mxu0
  %3419 = vmatprep.mubr.f32.mxu0 0.0
  %v3420 = vand.u32 %v243, 4294901760
  %3421 = vmatmul.mubr.f32.gmra.mrb[0].mxu0 %v3420
  %v3422 = vpop.f32.mrb[0].mxu0
  %v3423 = vadd.f32 %v2969, %v3422
  %v3424 = vpop.f32.mrb[0].mxu0
  %3425 = vmatprep.mubr.f32.mxu0 0.0
  %v3426 = vand.u32 %v246, 4294901760
  %3427 = vmatmul.mubr.f32.gmra.mrb[0].mxu0 %v3426
  %v3428 = vpop.f32.mrb[0].mxu0
  %v3429 = vadd.f32 %v2975, %v3428
  %v3430 = vpop.f32.mrb[0].mxu0
  %3431 = vmatprep.mubr.f32.mxu0 0.0
  %v3432 = vand.u32 %v249, 4294901760
  %3433 = vmatmul.mubr.f32.gmra.mrb[0].mxu0 %v3432
  %v3434 = vpop.f32.mrb[0].mxu0
  %v3435 = vadd.f32 %v2981, %v3434
  %v3436 = vpop.f32.mrb[0].mxu0
  %3437 = vmatprep.mubr.f32.mxu0 0.0
  %v3438 = vand.u32 %v252, 4294901760
  %3439 = vmatmul.mubr.f32.gmra.mrb[0].mxu0 %v3438
  %v3440 = vpop.f32.mrb[0].mxu0
  %v3441 = vadd.f32 %v2987, %v3440
  %v3442 = vpop.f32.mrb[0].mxu0
  %3443 = vmatprep.mubr.f32.mxu0 0.0
  %v3444 = vand.u32 %v255, 4294901760
  %3445 = vmatmul.mubr.f32.gmra.mrb[0].mxu0 %v3444
  %v3446 = vpop.f32.mrb[0].mxu0
  %v3447 = vadd.f32 %v2993, %v3446
  %v3448 = vpop.f32.mrb[0].mxu0
  %3449 = vmatprep.mubr.f32.mxu0 0.0
  %v3450 = vand.u32 %v258, 4294901760
  %3451 = vmatmul.mubr.f32.gmra.mrb[0].mxu0 %v3450
  %v3452 = vpop.f32.mrb[0].mxu0
  %v3453 = vadd.f32 %v2999, %v3452
  %v3454 = vpop.f32.mrb[0].mxu0
  %3455 = vmatprep.mubr.f32.mxu0 0.0
  %v3456 = vand.u32 %v261, 4294901760
  %3457 = vmatmul.mubr.f32.gmra.mrb[0].mxu0 %v3456
  %v3458 = vpop.f32.mrb[0].mxu0
  %v3459 = vadd.f32 %v3005, %v3458
  %v3460 = vpop.f32.mrb[0].mxu0
  %3461 = vmatprep.mubr.f32.mxu0 0.0
  %v3462 = vand.u32 %v264, 4294901760
  %3463 = vmatmul.mubr.f32.gmra.mrb[0].mxu0 %v3462
  %v3464 = vpop.f32.mrb[0].mxu0
  %v3465 = vadd.f32 %v3011, %v3464
  %v3466 = vpop.f32.mrb[0].mxu0
  %3467 = vmatprep.mubr.f32.mxu0 0.0
  %v3468 = vand.u32 %v267, 4294901760
  %3469 = vmatmul.mubr.f32.gmra.mrb[0].mxu0 %v3468
  %v3470 = vpop.f32.mrb[0].mxu0
  %v3471 = vadd.f32 %v3017, %v3470
  %v3472 = vpop.f32.mrb[0].mxu0
  %3473 = vmatprep.mubr.f32.mxu0 0.0
  %v3474 = vand.u32 %v270, 4294901760
  %3475 = vmatmul.mubr.f32.gmra.mrb[0].mxu0 %v3474
  %v3476 = vpop.f32.mrb[0].mxu0
  %v3477 = vadd.f32 %v3023, %v3476
  %v3478 = vpop.f32.mrb[0].mxu0
  %3479 = vmatprep.mubr.f32.mxu0 0.0
  %v3480 = vand.u32 %v273, 4294901760
  %3481 = vmatmul.mubr.f32.gmra.mrb[0].mxu0 %v3480
  %v3482 = vpop.f32.mrb[0].mxu0
  %v3483 = vadd.f32 %v3029, %v3482
  %v3484 = vpop.f32.mrb[0].mxu0
  %3485 = vdwg.mxu0
  %vm3486 = vcmask 64512
  %3487 = vst.msk [vmem:[%s2] sm:$0xff] %vm3486, %v3105
  %3488 = vst.msk [vmem:[%s2 + $0x8] sm:$0xff] %vm3486, %v3111
  %3489 = vst.msk [vmem:[%s2 + $0x10] sm:$0xff] %vm3486, %v3117
  %3490 = vst.msk [vmem:[%s2 + $0x18] sm:$0xff] %vm3486, %v3123
  %3491 = vst.msk [vmem:[%s2 + $0x20] sm:$0xff] %vm3486, %v3129
  %3492 = vst.msk [vmem:[%s2 + $0x28] sm:$0xff] %vm3486, %v3135
  %3493 = vst.msk [vmem:[%s2 + $0x30] sm:$0xff] %vm3486, %v3141
  %3494 = vst.msk [vmem:[%s2 + $0x38] sm:$0xff] %vm3486, %v3147
  %3495 = vst.msk [vmem:[%s2 + $0x40] sm:$0xff] %vm3486, %v3153
  %3496 = vst.msk [vmem:[%s2 + $0x48] sm:$0xff] %vm3486, %v3159
  %3497 = vst.msk [vmem:[%s2 + $0x50] sm:$0xff] %vm3486, %v3165
  %3498 = vst.msk [vmem:[%s2 + $0x58] sm:$0xff] %vm3486, %v3171
  %3499 = vst.msk [vmem:[%s2 + $0x60] sm:$0xff] %vm3486, %v3177
  %3500 = vst.msk [vmem:[%s2 + $0x68] sm:$0xff] %vm3486, %v3183
  %3501 = vst.msk [vmem:[%s2 + $0x70] sm:$0xff] %vm3486, %v3189
  %3502 = vst.msk [vmem:[%s2 + $0x78] sm:$0xff] %vm3486, %v3195
  %3503 = vst.msk [vmem:[%s2 + $0x80] sm:$0xff] %vm3486, %v3201
  %3504 = vst.msk [vmem:[%s2 + $0x88] sm:$0xff] %vm3486, %v3207
  %3505 = vst.msk [vmem:[%s2 + $0x90] sm:$0xff] %vm3486, %v3213
  %3506 = vst.msk [vmem:[%s2 + $0x98] sm:$0xff] %vm3486, %v3219
  %3507 = vst.msk [vmem:[%s2 + $0xa0] sm:$0xff] %vm3486, %v3225
  %3508 = vst.msk [vmem:[%s2 + $0xa8] sm:$0xff] %vm3486, %v3231
  %3509 = vst.msk [vmem:[%s2 + $0xb0] sm:$0xff] %vm3486, %v3237
  %3510 = vst.msk [vmem:[%s2 + $0xb8] sm:$0xff] %vm3486, %v3243
  %3511 = vst.msk [vmem:[%s2 + $0xc0] sm:$0xff] %vm3486, %v3249
  %3512 = vst.msk [vmem:[%s2 + $0xc8] sm:$0xff] %vm3486, %v3255
  %3513 = vst.msk [vmem:[%s2 + $0xd0] sm:$0xff] %vm3486, %v3261
  %3514 = vst.msk [vmem:[%s2 + $0xd8] sm:$0xff] %vm3486, %v3267
  %3515 = vst.msk [vmem:[%s2 + $0xe0] sm:$0xff] %vm3486, %v3273
  %3516 = vst.msk [vmem:[%s2 + $0xe8] sm:$0xff] %vm3486, %v3279
  %3517 = vst.msk [vmem:[%s2 + $0xf0] sm:$0xff] %vm3486, %v3285
  %3518 = vst.msk [vmem:[%s2 + $0xf8] sm:$0xff] %vm3486, %v3291
  %3519 = vst.msk [vmem:[%s2 + $0x100] sm:$0xff] %vm3486, %v3297
  %3520 = vst.msk [vmem:[%s2 + $0x108] sm:$0xff] %vm3486, %v3303
  %3521 = vst.msk [vmem:[%s2 + $0x110] sm:$0xff] %vm3486, %v3309
  %3522 = vst.msk [vmem:[%s2 + $0x118] sm:$0xff] %vm3486, %v3315
  %3523 = vst.msk [vmem:[%s2 + $0x120] sm:$0xff] %vm3486, %v3321
  %3524 = vst.msk [vmem:[%s2 + $0x128] sm:$0xff] %vm3486, %v3327
  %3525 = vst.msk [vmem:[%s2 + $0x130] sm:$0xff] %vm3486, %v3333
  %3526 = vst.msk [vmem:[%s2 + $0x138] sm:$0xff] %vm3486, %v3339
  %3527 = vst.msk [vmem:[%s2 + $0x140] sm:$0xff] %vm3486, %v3345
  %3528 = vst.msk [vmem:[%s2 + $0x148] sm:$0xff] %vm3486, %v3351
  %3529 = vst.msk [vmem:[%s2 + $0x150] sm:$0xff] %vm3486, %v3357
  %3530 = vst.msk [vmem:[%s2 + $0x158] sm:$0xff] %vm3486, %v3363
  %3531 = vst.msk [vmem:[%s2 + $0x160] sm:$0xff] %vm3486, %v3369
  %3532 = vst.msk [vmem:[%s2 + $0x168] sm:$0xff] %vm3486, %v3375
  %3533 = vst.msk [vmem:[%s2 + $0x170] sm:$0xff] %vm3486, %v3381
  %3534 = vst.msk [vmem:[%s2 + $0x178] sm:$0xff] %vm3486, %v3387
  %3535 = vst.msk [vmem:[%s2 + $0x180] sm:$0xff] %vm3486, %v3393
  %3536 = vst.msk [vmem:[%s2 + $0x188] sm:$0xff] %vm3486, %v3399
  %3537 = vst.msk [vmem:[%s2 + $0x190] sm:$0xff] %vm3486, %v3405
  %3538 = vst.msk [vmem:[%s2 + $0x198] sm:$0xff] %vm3486, %v3411
  %3539 = vst.msk [vmem:[%s2 + $0x1a0] sm:$0xff] %vm3486, %v3417
  %3540 = vst.msk [vmem:[%s2 + $0x1a8] sm:$0xff] %vm3486, %v3423
  %3541 = vst.msk [vmem:[%s2 + $0x1b0] sm:$0xff] %vm3486, %v3429
  %3542 = vst.msk [vmem:[%s2 + $0x1b8] sm:$0xff] %vm3486, %v3435
  %3543 = vst.msk [vmem:[%s2 + $0x1c0] sm:$0xff] %vm3486, %v3441
  %3544 = vst.msk [vmem:[%s2 + $0x1c8] sm:$0xff] %vm3486, %v3447
  %3545 = vst.msk [vmem:[%s2 + $0x1d0] sm:$0xff] %vm3486, %v3453
  %3546 = vst.msk [vmem:[%s2 + $0x1d8] sm:$0xff] %vm3486, %v3459
  %3547 = vst.msk [vmem:[%s2 + $0x1e0] sm:$0xff] %vm3486, %v3465
  %3548 = vst.msk [vmem:[%s2 + $0x1e8] sm:$0xff] %vm3486, %v3471
  %3549 = vst.msk [vmem:[%s2 + $0x1f0] sm:$0xff] %vm3486, %v3477
  %3550 = vst.msk [vmem:[%s2 + $0x1f8] sm:$0xff] %vm3486, %v3483
  %v3551 = vsel %vm3486, %v3105, 0.0
  %v3552 = vsel %vm3486, %v3111, 0.0
  %v3553 = vadd.f32 %v3551, %v3552
  %v3554 = vsel %vm3486, %v3117, 0.0
  %v3555 = vadd.f32 %v3553, %v3554
  %v3556 = vsel %vm3486, %v3123, 0.0
  %v3557 = vadd.f32 %v3555, %v3556
  %v3558 = vsel %vm3486, %v3129, 0.0
  %v3559 = vadd.f32 %v3557, %v3558
  %v3560 = vsel %vm3486, %v3135, 0.0
  %v3561 = vadd.f32 %v3559, %v3560
  %v3562 = vsel %vm3486, %v3141, 0.0
  %v3563 = vadd.f32 %v3561, %v3562
  %v3564 = vsel %vm3486, %v3147, 0.0
  %v3565 = vadd.f32 %v3563, %v3564
  %v3566 = vsel %vm3486, %v3153, 0.0
  %v3567 = vadd.f32 %v3565, %v3566
  %v3568 = vsel %vm3486, %v3159, 0.0
  %v3569 = vadd.f32 %v3567, %v3568
  %v3570 = vsel %vm3486, %v3165, 0.0
  %v3571 = vadd.f32 %v3569, %v3570
  %v3572 = vsel %vm3486, %v3171, 0.0
  %v3573 = vadd.f32 %v3571, %v3572
  %v3574 = vsel %vm3486, %v3177, 0.0
  %v3575 = vadd.f32 %v3573, %v3574
  %v3576 = vsel %vm3486, %v3183, 0.0
  %v3577 = vadd.f32 %v3575, %v3576
  %v3578 = vsel %vm3486, %v3189, 0.0
  %v3579 = vadd.f32 %v3577, %v3578
  %v3580 = vsel %vm3486, %v3195, 0.0
  %v3581 = vadd.f32 %v3579, %v3580
  %v3582 = vsel %vm3486, %v3201, 0.0
  %v3583 = vadd.f32 %v3581, %v3582
  %v3584 = vsel %vm3486, %v3207, 0.0
  %v3585 = vadd.f32 %v3583, %v3584
  %v3586 = vsel %vm3486, %v3213, 0.0
  %v3587 = vadd.f32 %v3585, %v3586
  %v3588 = vsel %vm3486, %v3219, 0.0
  %v3589 = vadd.f32 %v3587, %v3588
  %v3590 = vsel %vm3486, %v3225, 0.0
  %v3591 = vadd.f32 %v3589, %v3590
  %v3592 = vsel %vm3486, %v3231, 0.0
  %v3593 = vadd.f32 %v3591, %v3592
  %v3594 = vsel %vm3486, %v3237, 0.0
  %v3595 = vadd.f32 %v3593, %v3594
  %v3596 = vsel %vm3486, %v3243, 0.0
  %v3597 = vadd.f32 %v3595, %v3596
  %v3598 = vsel %vm3486, %v3249, 0.0
  %v3599 = vadd.f32 %v3597, %v3598
  %v3600 = vsel %vm3486, %v3255, 0.0
  %v3601 = vadd.f32 %v3599, %v3600
  %v3602 = vsel %vm3486, %v3261, 0.0
  %v3603 = vadd.f32 %v3601, %v3602
  %v3604 = vsel %vm3486, %v3267, 0.0
  %v3605 = vadd.f32 %v3603, %v3604
  %v3606 = vsel %vm3486, %v3273, 0.0
  %v3607 = vadd.f32 %v3605, %v3606
  %v3608 = vsel %vm3486, %v3279, 0.0
  %v3609 = vadd.f32 %v3607, %v3608
  %v3610 = vsel %vm3486, %v3285, 0.0
  %v3611 = vadd.f32 %v3609, %v3610
  %v3612 = vsel %vm3486, %v3291, 0.0
  %v3613 = vadd.f32 %v3611, %v3612
  %v3614 = vsel %vm3486, %v3297, 0.0
  %v3615 = vadd.f32 %v3613, %v3614
  %v3616 = vsel %vm3486, %v3303, 0.0
  %v3617 = vadd.f32 %v3615, %v3616
  %v3618 = vsel %vm3486, %v3309, 0.0
  %v3619 = vadd.f32 %v3617, %v3618
  %v3620 = vsel %vm3486, %v3315, 0.0
  %v3621 = vadd.f32 %v3619, %v3620
  %v3622 = vsel %vm3486, %v3321, 0.0
  %v3623 = vadd.f32 %v3621, %v3622
  %v3624 = vsel %vm3486, %v3327, 0.0
  %v3625 = vadd.f32 %v3623, %v3624
  %v3626 = vsel %vm3486, %v3333, 0.0
  %v3627 = vadd.f32 %v3625, %v3626
  %v3628 = vsel %vm3486, %v3339, 0.0
  %v3629 = vadd.f32 %v3627, %v3628
  %v3630 = vsel %vm3486, %v3345, 0.0
  %v3631 = vadd.f32 %v3629, %v3630
  %v3632 = vsel %vm3486, %v3351, 0.0
  %v3633 = vadd.f32 %v3631, %v3632
  %v3634 = vsel %vm3486, %v3357, 0.0
  %v3635 = vadd.f32 %v3633, %v3634
  %v3636 = vsel %vm3486, %v3363, 0.0
  %v3637 = vadd.f32 %v3635, %v3636
  %v3638 = vsel %vm3486, %v3369, 0.0
  %v3639 = vadd.f32 %v3637, %v3638
  %v3640 = vsel %vm3486, %v3375, 0.0
  %v3641 = vadd.f32 %v3639, %v3640
  %v3642 = vsel %vm3486, %v3381, 0.0
  %v3643 = vadd.f32 %v3641, %v3642
  %v3644 = vsel %vm3486, %v3387, 0.0
  %v3645 = vadd.f32 %v3643, %v3644
  %v3646 = vsel %vm3486, %v3393, 0.0
  %v3647 = vadd.f32 %v3645, %v3646
  %v3648 = vsel %vm3486, %v3399, 0.0
  %v3649 = vadd.f32 %v3647, %v3648
  %v3650 = vsel %vm3486, %v3405, 0.0
  %v3651 = vadd.f32 %v3649, %v3650
  %v3652 = vsel %vm3486, %v3411, 0.0
  %v3653 = vadd.f32 %v3651, %v3652
  %v3654 = vsel %vm3486, %v3417, 0.0
  %v3655 = vadd.f32 %v3653, %v3654
  %v3656 = vsel %vm3486, %v3423, 0.0
  %v3657 = vadd.f32 %v3655, %v3656
  %v3658 = vsel %vm3486, %v3429, 0.0
  %v3659 = vadd.f32 %v3657, %v3658
  %v3660 = vsel %vm3486, %v3435, 0.0
  %v3661 = vadd.f32 %v3659, %v3660
  %v3662 = vsel %vm3486, %v3441, 0.0
  %v3663 = vadd.f32 %v3661, %v3662
  %v3664 = vsel %vm3486, %v3447, 0.0
  %v3665 = vadd.f32 %v3663, %v3664
  %v3666 = vsel %vm3486, %v3453, 0.0
  %v3667 = vadd.f32 %v3665, %v3666
  %v3668 = vsel %vm3486, %v3459, 0.0
  %v3669 = vadd.f32 %v3667, %v3668
  %v3670 = vsel %vm3486, %v3465, 0.0
  %v3671 = vadd.f32 %v3669, %v3670
  %v3672 = vsel %vm3486, %v3471, 0.0
  %v3673 = vadd.f32 %v3671, %v3672
  %v3674 = vsel %vm3486, %v3477, 0.0
  %v3675 = vadd.f32 %v3673, %v3674
  %v3676 = vsel %vm3486, %v3483, 0.0
  %v3677 = vadd.f32 %v3675, %v3676
  %v3678 = vrot.slane %v3677, 4
  %v3679 = vadd.f32 %v3677, %v3678
  %v3680 = vrot.slane %v3679, 2
  %v3681 = vadd.f32 %v3679, %v3680
  %v3682 = vrot.slane %v3681, 1
  %v3683 = vadd.f32 %v3681, %v3682
  %v3684 = vmul.f32 %v3105, %v3105
  %v3685 = vmul.f32 %v3111, %v3111
  %v3686 = vmul.f32 %v3117, %v3117
  %v3687 = vmul.f32 %v3123, %v3123
  %v3688 = vmul.f32 %v3129, %v3129
  %v3689 = vmul.f32 %v3135, %v3135
  %v3690 = vmul.f32 %v3141, %v3141
  %v3691 = vmul.f32 %v3147, %v3147
  %v3692 = vmul.f32 %v3153, %v3153
  %v3693 = vmul.f32 %v3159, %v3159
  %v3694 = vmul.f32 %v3165, %v3165
  %v3695 = vmul.f32 %v3171, %v3171
  %v3696 = vmul.f32 %v3177, %v3177
  %v3697 = vmul.f32 %v3183, %v3183
  %v3698 = vmul.f32 %v3189, %v3189
  %v3699 = vmul.f32 %v3195, %v3195
  %v3700 = vmul.f32 %v3201, %v3201
  %v3701 = vmul.f32 %v3207, %v3207
  %v3702 = vmul.f32 %v3213, %v3213
  %v3703 = vmul.f32 %v3219, %v3219
  %v3704 = vmul.f32 %v3225, %v3225
  %v3705 = vmul.f32 %v3231, %v3231
  %v3706 = vmul.f32 %v3237, %v3237
  %v3707 = vmul.f32 %v3243, %v3243
  %v3708 = vmul.f32 %v3249, %v3249
  %v3709 = vmul.f32 %v3255, %v3255
  %v3710 = vmul.f32 %v3261, %v3261
  %v3711 = vmul.f32 %v3267, %v3267
  %v3712 = vmul.f32 %v3273, %v3273
  %v3713 = vmul.f32 %v3279, %v3279
  %v3714 = vmul.f32 %v3285, %v3285
  %v3715 = vmul.f32 %v3291, %v3291
  %v3716 = vmul.f32 %v3297, %v3297
  %v3717 = vmul.f32 %v3303, %v3303
  %v3718 = vmul.f32 %v3309, %v3309
  %v3719 = vmul.f32 %v3315, %v3315
  %v3720 = vmul.f32 %v3321, %v3321
  %v3721 = vmul.f32 %v3327, %v3327
  %v3722 = vmul.f32 %v3333, %v3333
  %v3723 = vmul.f32 %v3339, %v3339
  %v3724 = vmul.f32 %v3345, %v3345
  %v3725 = vmul.f32 %v3351, %v3351
  %v3726 = vmul.f32 %v3357, %v3357
  %v3727 = vmul.f32 %v3363, %v3363
  %v3728 = vmul.f32 %v3369, %v3369
  %v3729 = vmul.f32 %v3375, %v3375
  %v3730 = vmul.f32 %v3381, %v3381
  %v3731 = vmul.f32 %v3387, %v3387
  %v3732 = vmul.f32 %v3393, %v3393
  %v3733 = vmul.f32 %v3399, %v3399
  %v3734 = vmul.f32 %v3405, %v3405
  %v3735 = vmul.f32 %v3411, %v3411
  %v3736 = vmul.f32 %v3417, %v3417
  %v3737 = vmul.f32 %v3423, %v3423
  %v3738 = vmul.f32 %v3429, %v3429
  %v3739 = vmul.f32 %v3435, %v3435
  %v3740 = vmul.f32 %v3441, %v3441
  %v3741 = vmul.f32 %v3447, %v3447
  %v3742 = vmul.f32 %v3453, %v3453
  %v3743 = vmul.f32 %v3459, %v3459
  %v3744 = vmul.f32 %v3465, %v3465
  %v3745 = vmul.f32 %v3471, %v3471
  %v3746 = vmul.f32 %v3477, %v3477
  %v3747 = vmul.f32 %v3483, %v3483
  %v3748 = vsel %vm3486, %v3684, 0.0
  %v3749 = vsel %vm3486, %v3685, 0.0
  %v3750 = vadd.f32 %v3748, %v3749
  %v3751 = vsel %vm3486, %v3686, 0.0
  %v3752 = vadd.f32 %v3750, %v3751
  %v3753 = vsel %vm3486, %v3687, 0.0
  %v3754 = vadd.f32 %v3752, %v3753
  %v3755 = vsel %vm3486, %v3688, 0.0
  %v3756 = vadd.f32 %v3754, %v3755
  %v3757 = vsel %vm3486, %v3689, 0.0
  %v3758 = vadd.f32 %v3756, %v3757
  %v3759 = vsel %vm3486, %v3690, 0.0
  %v3760 = vadd.f32 %v3758, %v3759
  %v3761 = vsel %vm3486, %v3691, 0.0
  %v3762 = vadd.f32 %v3760, %v3761
  %v3763 = vsel %vm3486, %v3692, 0.0
  %v3764 = vadd.f32 %v3762, %v3763
  %v3765 = vsel %vm3486, %v3693, 0.0
  %v3766 = vadd.f32 %v3764, %v3765
  %v3767 = vsel %vm3486, %v3694, 0.0
  %v3768 = vadd.f32 %v3766, %v3767
  %v3769 = vsel %vm3486, %v3695, 0.0
  %v3770 = vadd.f32 %v3768, %v3769
  %v3771 = vsel %vm3486, %v3696, 0.0
  %v3772 = vadd.f32 %v3770, %v3771
  %v3773 = vsel %vm3486, %v3697, 0.0
  %v3774 = vadd.f32 %v3772, %v3773
  %v3775 = vsel %vm3486, %v3698, 0.0
  %v3776 = vadd.f32 %v3774, %v3775
  %v3777 = vsel %vm3486, %v3699, 0.0
  %v3778 = vadd.f32 %v3776, %v3777
  %v3779 = vsel %vm3486, %v3700, 0.0
  %v3780 = vadd.f32 %v3778, %v3779
  %v3781 = vsel %vm3486, %v3701, 0.0
  %v3782 = vadd.f32 %v3780, %v3781
  %v3783 = vsel %vm3486, %v3702, 0.0
  %v3784 = vadd.f32 %v3782, %v3783
  %v3785 = vsel %vm3486, %v3703, 0.0
  %v3786 = vadd.f32 %v3784, %v3785
  %v3787 = vsel %vm3486, %v3704, 0.0
  %v3788 = vadd.f32 %v3786, %v3787
  %v3789 = vsel %vm3486, %v3705, 0.0
  %v3790 = vadd.f32 %v3788, %v3789
  %v3791 = vsel %vm3486, %v3706, 0.0
  %v3792 = vadd.f32 %v3790, %v3791
  %v3793 = vsel %vm3486, %v3707, 0.0
  %v3794 = vadd.f32 %v3792, %v3793
  %v3795 = vsel %vm3486, %v3708, 0.0
  %v3796 = vadd.f32 %v3794, %v3795
  %v3797 = vsel %vm3486, %v3709, 0.0
  %v3798 = vadd.f32 %v3796, %v3797
  %v3799 = vsel %vm3486, %v3710, 0.0
  %v3800 = vadd.f32 %v3798, %v3799
  %v3801 = vsel %vm3486, %v3711, 0.0
  %v3802 = vadd.f32 %v3800, %v3801
  %v3803 = vsel %vm3486, %v3712, 0.0
  %v3804 = vadd.f32 %v3802, %v3803
  %v3805 = vsel %vm3486, %v3713, 0.0
  %v3806 = vadd.f32 %v3804, %v3805
  %v3807 = vsel %vm3486, %v3714, 0.0
  %v3808 = vadd.f32 %v3806, %v3807
  %v3809 = vsel %vm3486, %v3715, 0.0
  %v3810 = vadd.f32 %v3808, %v3809
  %v3811 = vsel %vm3486, %v3716, 0.0
  %v3812 = vadd.f32 %v3810, %v3811
  %v3813 = vsel %vm3486, %v3717, 0.0
  %v3814 = vadd.f32 %v3812, %v3813
  %v3815 = vsel %vm3486, %v3718, 0.0
  %v3816 = vadd.f32 %v3814, %v3815
  %v3817 = vsel %vm3486, %v3719, 0.0
  %v3818 = vadd.f32 %v3816, %v3817
  %v3819 = vsel %vm3486, %v3720, 0.0
  %v3820 = vadd.f32 %v3818, %v3819
  %v3821 = vsel %vm3486, %v3721, 0.0
  %v3822 = vadd.f32 %v3820, %v3821
  %v3823 = vsel %vm3486, %v3722, 0.0
  %v3824 = vadd.f32 %v3822, %v3823
  %v3825 = vsel %vm3486, %v3723, 0.0
  %v3826 = vadd.f32 %v3824, %v3825
  %v3827 = vsel %vm3486, %v3724, 0.0
  %v3828 = vadd.f32 %v3826, %v3827
  %v3829 = vsel %vm3486, %v3725, 0.0
  %v3830 = vadd.f32 %v3828, %v3829
  %v3831 = vsel %vm3486, %v3726, 0.0
  %v3832 = vadd.f32 %v3830, %v3831
  %v3833 = vsel %vm3486, %v3727, 0.0
  %v3834 = vadd.f32 %v3832, %v3833
  %v3835 = vsel %vm3486, %v3728, 0.0
  %v3836 = vadd.f32 %v3834, %v3835
  %v3837 = vsel %vm3486, %v3729, 0.0
  %v3838 = vadd.f32 %v3836, %v3837
  %v3839 = vsel %vm3486, %v3730, 0.0
  %v3840 = vadd.f32 %v3838, %v3839
  %v3841 = vsel %vm3486, %v3731, 0.0
  %v3842 = vadd.f32 %v3840, %v3841
  %v3843 = vsel %vm3486, %v3732, 0.0
  %v3844 = vadd.f32 %v3842, %v3843
  %v3845 = vsel %vm3486, %v3733, 0.0
  %v3846 = vadd.f32 %v3844, %v3845
  %v3847 = vsel %vm3486, %v3734, 0.0
  %v3848 = vadd.f32 %v3846, %v3847
  %v3849 = vsel %vm3486, %v3735, 0.0
  %v3850 = vadd.f32 %v3848, %v3849
  %v3851 = vsel %vm3486, %v3736, 0.0
  %v3852 = vadd.f32 %v3850, %v3851
  %v3853 = vsel %vm3486, %v3737, 0.0
  %v3854 = vadd.f32 %v3852, %v3853
  %v3855 = vsel %vm3486, %v3738, 0.0
  %v3856 = vadd.f32 %v3854, %v3855
  %v3857 = vsel %vm3486, %v3739, 0.0
  %v3858 = vadd.f32 %v3856, %v3857
  %v3859 = vsel %vm3486, %v3740, 0.0
  %v3860 = vadd.f32 %v3858, %v3859
  %v3861 = vsel %vm3486, %v3741, 0.0
  %v3862 = vadd.f32 %v3860, %v3861
  %v3863 = vsel %vm3486, %v3742, 0.0
  %v3864 = vadd.f32 %v3862, %v3863
  %v3865 = vsel %vm3486, %v3743, 0.0
  %v3866 = vadd.f32 %v3864, %v3865
  %v3867 = vsel %vm3486, %v3744, 0.0
  %v3868 = vadd.f32 %v3866, %v3867
  %v3869 = vsel %vm3486, %v3745, 0.0
  %v3870 = vadd.f32 %v3868, %v3869
  %v3871 = vsel %vm3486, %v3746, 0.0
  %v3872 = vadd.f32 %v3870, %v3871
  %v3873 = vsel %vm3486, %v3747, 0.0
  %v3874 = vadd.f32 %v3872, %v3873
  %v3875 = vrot.slane %v3874, 4
  %v3876 = vadd.f32 %v3874, %v3875
  %v3877 = vrot.slane %v3876, 2
  %v3878 = vadd.f32 %v3876, %v3877
  %v3879 = vrot.slane %v3878, 1
  %v3880 = vadd.f32 %v3878, %v3879
  %3882 = vrot.lane.b32.xlu0 %v3880, 8
  %v3883 = vpop.permute.xlu0 %3882
  %v3885 = vsel %vm3486, %v3683, %v3883
  %v3886 = vlaneseq
  %v3887 = vshrl.u32 %v3886, 7
  %v3888 = vsub.s32 0, %v3887
  %v3889 = vrot.slane %v3885, %v3888
  %vm3890 = vcmask 130048
  %3891 = vst.msk [vmem:[%s3] sm:$0xff] %vm3890, %v3889
  // Predicated region
  $region10: #{conv_unit_forward.2} parent=0 // pred_check
    _
  $region11: #{conv_unit_forward.2} parent=0 // pred_check_branch
    %3893 = sbr.rel (0) target = $region13
  $region12: #{conv_unit_forward.2} parent=0 // pred_region
    _
  $region13: #{conv_unit_forward.2} parent=0 // pred_fallthru
    _
  // Predicated region
  $region14: #{conv_unit_forward.2} parent=0 // pred_check
    _
  $region15: #{conv_unit_forward.2} parent=0 // pred_check_branch
    %3895 = sbr.rel (0) target = $region17
  $region16: #{conv_unit_forward.2} parent=0 // pred_region
    _
  $region17: #{conv_unit_forward.2} parent=0 // pred_fallthru
    _
  // Predicated region
  $region18: #{conv_unit_forward.2} parent=0 // pred_check
    _
  $region19: #{conv_unit_forward.2} parent=0 // pred_check_branch
    %3897 = sbr.rel (0) target = $region21
  $region20: #{conv_unit_forward.2} parent=0 // pred_region
    _
  $region21: #{conv_unit_forward.2} parent=0 // pred_fallthru
    _
  // Predicated region
  $region22: #{conv_unit_forward.2} parent=0 // pred_check
    _
  $region23: #{conv_unit_forward.2} parent=0 // pred_check_branch
    %3899 = sbr.rel (0) target = $region25
  $region24: #{conv_unit_forward.2} parent=0 // pred_region
    _
  $region25: #{conv_unit_forward.2} parent=0 // pred_fallthru
    _

</llo_original>
